<compile_context>
chip_gen: v7x
topology: tpu7x:2x2x1
jax: 0.10.0
libtpu: 0.0.40
codegen_flags: <defaults>
</compile_context>

<pallas_src>
import functools

import jax
import jax.numpy as jnp
from jax.experimental import pallas as pl
from jax.experimental.pallas import tpu as pltpu


# ----------------------------------------------------------------------------
# Model dimensions (synthetic small BERT + classifier head)
# ----------------------------------------------------------------------------
VOCAB = 100
HIDDEN = 32
N_HEADS = 4
HEAD_DIM = HIDDEN // N_HEADS
N_LAYERS = 2
INTERMEDIATE = 64
MAX_POS = 16
N_CLASSES = 5

ACT_DTYPE = jnp.bfloat16      # MXU input dtype for weights / activations


# ----------------------------------------------------------------------------
# Fused whole-model kernel (one grid step = one batch row)
# ----------------------------------------------------------------------------
def _bert_classifier_kernel(
        word_ref, pos_type_ref, mask_ref,
        emb_g_ref, emb_b_ref,
        wqkv_ref, bqkv_ref, wo_ref, bo_ref, ln1g_ref, ln1b_ref,
        wi_ref, bi_ref, wo2_ref, bo2_ref, ln2g_ref, ln2b_ref,
        pw_ref, pb_ref, fw_ref, fb_ref,
        out_ref,
        *, n_layers, n_heads, head_dim, scale, eps):
    H = n_heads * head_dim

    def layer_norm(x, g, b):
        # x: [S, H] f32, g/b: [1, H] f32.  Stats in f32.
        mu = jnp.mean(x, axis=-1, keepdims=True)
        xc = x - mu
        var = jnp.mean(xc * xc, axis=-1, keepdims=True)
        return xc * (jax.lax.rsqrt(var + eps) * g.astype(jnp.float32)) \
            + b.astype(jnp.float32)

    # --- embeddings: word + (pos + type) fused with embedding LayerNorm ---
    x = word_ref[0].astype(jnp.float32) + pos_type_ref[...].astype(jnp.float32)
    hidden = layer_norm(x, emb_g_ref[...], emb_b_ref[...])          # [S, H] f32

    mask = mask_ref[0].astype(jnp.float32)                          # [1, S] additive key mask

    # --- encoder layers (static Python loop, weights indexed statically) ---
    for l in range(n_layers):
        # fused QKV projection: one MXU matmul for Q, K and V
        qkv = jnp.dot(hidden.astype(ACT_DTYPE), wqkv_ref[l],
                      preferred_element_type=jnp.float32)
        qkv = (qkv + bqkv_ref[l].astype(jnp.float32)).astype(ACT_DTYPE)  # [S, 3H]

        # multi-head self-attention, entirely in VMEM (static per-head slices)
        ctx_heads = []
        for h in range(n_heads):
            lo = h * head_dim
            qh = qkv[:, lo:lo + head_dim]                            # [S, Dh]
            kh = qkv[:, H + lo:H + lo + head_dim]                    # [S, Dh]
            vh = qkv[:, 2 * H + lo:2 * H + lo + head_dim]            # [S, Dh]
            s = jax.lax.dot_general(qh, kh, (((1,), (1,)), ((), ())),
                                    preferred_element_type=jnp.float32)  # [S, S]
            s = s * scale + mask                                     # mask padded keys
            s = s - jnp.max(s, axis=-1, keepdims=True)
            p = jnp.exp(s)
            p = p * pl.reciprocal(jnp.sum(p, axis=-1, keepdims=True), approx=True)
            ctx_heads.append(jnp.dot(p.astype(ACT_DTYPE), vh,
                                     preferred_element_type=jnp.float32))  # [S, Dh]
        ctx = jnp.concatenate(ctx_heads, axis=-1)                    # [S, H] f32

        # attention output projection + residual + LayerNorm (fused)
        # (hidden_dropout_prob=0.1 is identity in eval mode)
        y = jnp.dot(ctx.astype(ACT_DTYPE), wo_ref[l],
                    preferred_element_type=jnp.float32)
        y = y + bo_ref[l].astype(jnp.float32) + hidden
        hidden = layer_norm(y, ln1g_ref[l], ln1b_ref[l])

        # FFN: dense -> GELU -> dense + residual + LayerNorm (fused)
        inter = jnp.dot(hidden.astype(ACT_DTYPE), wi_ref[l],
                        preferred_element_type=jnp.float32)
        inter = inter + bi_ref[l].astype(jnp.float32)
        # TODO(synk): HF BERT uses exact erf GELU; tanh approximation used here.
        inter = jax.nn.gelu(inter, approximate=True)
        y = jnp.dot(inter.astype(ACT_DTYPE), wo2_ref[l],
                    preferred_element_type=jnp.float32)
        y = y + bo2_ref[l].astype(jnp.float32) + hidden
        hidden = layer_norm(y, ln2g_ref[l], ln2b_ref[l])

    # --- pooler (tanh on CLS token) + dropout (identity at eval) + fc ---
    cls = hidden[0:1, :]                                             # [1, H]
    pooled = jnp.dot(cls.astype(ACT_DTYPE), pw_ref[...],
                     preferred_element_type=jnp.float32)
    pooled = jnp.tanh(pooled + pb_ref[...].astype(jnp.float32))
    # TODO(synk): nn.Dropout(p=0.3) on pooled_output is identity in eval mode.
    logits = jnp.dot(pooled.astype(ACT_DTYPE), fw_ref[...],
                     preferred_element_type=jnp.float32)
    out_ref[0] = (logits + fb_ref[...].astype(jnp.float32)).astype(out_ref.dtype)


# ----------------------------------------------------------------------------
# Parameters
# ----------------------------------------------------------------------------
def init_params(key):
    keys = iter(jax.random.split(key, 64))

    def w(shape):
        return jax.random.normal(next(keys), shape, jnp.float32) * 0.02

    params = {
        "word_emb": w((VOCAB, HIDDEN)),
        "pos_emb": w((MAX_POS, HIDDEN)),
        "type_emb": w((2, HIDDEN)),
        "emb_ln_g": jnp.ones((HIDDEN,), jnp.float32),
        "emb_ln_b": jnp.zeros((HIDDEN,), jnp.float32),
        "layers": [],
        "pooler_w": w((HIDDEN, HIDDEN)),
        "pooler_b": jnp.zeros((HIDDEN,), jnp.float32),
        "fc_w": w((HIDDEN, N_CLASSES)),
        "fc_b": jnp.zeros((N_CLASSES,), jnp.float32),
    }
    for _ in range(N_LAYERS):
        params["layers"].append({
            "wq": w((HIDDEN, HIDDEN)), "bq": jnp.zeros((HIDDEN,), jnp.float32),
            "wk": w((HIDDEN, HIDDEN)), "bk": jnp.zeros((HIDDEN,), jnp.float32),
            "wv": w((HIDDEN, HIDDEN)), "bv": jnp.zeros((HIDDEN,), jnp.float32),
            "wo": w((HIDDEN, HIDDEN)), "bo": jnp.zeros((HIDDEN,), jnp.float32),
            "ln1_g": jnp.ones((HIDDEN,), jnp.float32),
            "ln1_b": jnp.zeros((HIDDEN,), jnp.float32),
            "wi": w((HIDDEN, INTERMEDIATE)), "bi": jnp.zeros((INTERMEDIATE,), jnp.float32),
            "wo2": w((INTERMEDIATE, HIDDEN)), "bo2": jnp.zeros((HIDDEN,), jnp.float32),
            "ln2_g": jnp.ones((HIDDEN,), jnp.float32),
            "ln2_b": jnp.zeros((HIDDEN,), jnp.float32),
        })
    return params


def prepare_inference_params(params):
    """Fuse QKV, stack per-layer weights as [L, ...], cast MXU weights to bf16."""
    layers = params["layers"]

    def stack(name):
        return jnp.stack([lyr[name] for lyr in layers])

    return {
        "word_emb": params["word_emb"],
        "pos_emb": params["pos_emb"],
        "type_emb": params["type_emb"],
        "emb_ln_g": params["emb_ln_g"].reshape(1, HIDDEN),
        "emb_ln_b": params["emb_ln_b"].reshape(1, HIDDEN),
        # fused QKV: [L, H, 3H] / [L, 1, 3H]
        "wqkv": jnp.stack([jnp.concatenate([l["wq"], l["wk"], l["wv"]], axis=1)
                           for l in layers]).astype(ACT_DTYPE),
        "bqkv": jnp.stack([jnp.concatenate([l["bq"], l["bk"], l["bv"]])
                           for l in layers])[:, None, :],
        "wo": stack("wo").astype(ACT_DTYPE),
        "bo": stack("bo")[:, None, :],
        "ln1_g": stack("ln1_g")[:, None, :],
        "ln1_b": stack("ln1_b")[:, None, :],
        "wi": stack("wi").astype(ACT_DTYPE),
        "bi": stack("bi")[:, None, :],
        "wo2": stack("wo2").astype(ACT_DTYPE),
        "bo2": stack("bo2")[:, None, :],
        "ln2_g": stack("ln2_g")[:, None, :],
        "ln2_b": stack("ln2_b")[:, None, :],
        "pooler_w": params["pooler_w"].astype(ACT_DTYPE),
        "pooler_b": params["pooler_b"].reshape(1, HIDDEN),
        "fc_w": params["fc_w"].astype(ACT_DTYPE),
        "fc_b": params["fc_b"].reshape(1, N_CLASSES),
    }


# ----------------------------------------------------------------------------
# Forward pass (mirrors BertClassifier.forward, inference mode)
# ----------------------------------------------------------------------------
def bert_classifier_forward(params, input_ids, attention_mask):
    B, S = input_ids.shape
    H, L, I = HIDDEN, N_LAYERS, INTERMEDIATE

    # Embedding table gather stays in XLA (data-dependent gather); the add + LN
    # is fused into the kernel.
    word = params["word_emb"][input_ids]                              # [B, S, H] f32
    pos_type = params["pos_emb"][:S] + params["type_emb"][0][None, :]  # [S, H]  f32
    # additive key mask, one row per batch: [B, 1, S]  (kept in f32)
    mask_add = ((1.0 - attention_mask.astype(jnp.float32)) * -1e9)[:, None, :]

    kernel = functools.partial(
        _bert_classifier_kernel,
        n_layers=L, n_heads=N_HEADS, head_dim=HEAD_DIM,
        scale=1.0 / (HEAD_DIM ** 0.5), eps=1e-12)

    def bcast(shape):
        nd = len(shape)

        def imap(b):
            return (0,) * nd

        return pl.BlockSpec(shape, imap)

    in_specs = [
        pl.BlockSpec((1, S, H), lambda b: (b, 0, 0)),      # word embeddings (per batch)
        bcast((S, H)),                                     # pos + type embeddings
        pl.BlockSpec((1, 1, S), lambda b: (b, 0, 0)),      # additive mask (per batch)
        bcast((1, H)), bcast((1, H)),                      # embedding LN gamma / beta
        bcast((L, H, 3 * H)), bcast((L, 1, 3 * H)),        # wqkv / bqkv
        bcast((L, H, H)), bcast((L, 1, H)),                # wo / bo
        bcast((L, 1, H)), bcast((L, 1, H)),                # ln1 gamma / beta
        bcast((L, H, I)), bcast((L, 1, I)),                # wi / bi
        bcast((L, I, H)), bcast((L, 1, H)),                # wo2 / bo2
        bcast((L, 1, H)), bcast((L, 1, H)),                # ln2 gamma / beta
        bcast((H, H)), bcast((1, H)),                      # pooler w / b
        bcast((H, N_CLASSES)), bcast((1, N_CLASSES)),      # fc w / b
    ]

    logits3 = pl.pallas_call(
        kernel,
        out_shape=jax.ShapeDtypeStruct((B, 1, N_CLASSES), jnp.float32),
        grid=(B,),
        in_specs=in_specs,
        out_specs=pl.BlockSpec((1, 1, N_CLASSES), lambda b: (b, 0, 0)),
        compiler_params=pltpu.CompilerParams(dimension_semantics=("parallel",)),
    )(word, pos_type, mask_add,
      params["emb_ln_g"], params["emb_ln_b"],
      params["wqkv"], params["bqkv"], params["wo"], params["bo"],
      params["ln1_g"], params["ln1_b"],
      params["wi"], params["bi"], params["wo2"], params["bo2"],
      params["ln2_g"], params["ln2_b"],
      params["pooler_w"], params["pooler_b"],
      params["fc_w"], params["fc_b"])

    return logits3[:, 0, :]                                           # [B, n_classes]


if __name__ == "__main__":
    key = jax.random.PRNGKey(0)
    k_param, k_ids = jax.random.split(key)

    B, S = 2, 8
    raw_params = init_params(k_param)
    params = prepare_inference_params(raw_params)
    input_ids = jax.random.randint(k_ids, (B, S), 0, VOCAB, dtype=jnp.int32)
    attention_mask = jnp.ones((B, S), jnp.int32).at[1, 6:].set(0)  # pad last 2 tokens of row 1

    logits = bert_classifier_forward(params, input_ids, attention_mask)
    jax.block_until_ready(logits)
    assert logits.shape == (B, N_CLASSES)
    assert bool(jnp.all(jnp.isfinite(logits)))
    print("KERNEL_OK")
</pallas_src>

<mosaic_0001>
module attributes {stable_mosaic.version = 11 : i64} {
  func.func @_bert_classifier_kernel(%arg0: i32, %arg1: memref<1x8x32xf32, #tpu.memory_space<vmem>>, %arg2: memref<8x32xf32, #tpu.memory_space<vmem>>, %arg3: memref<1x1x8xf32, #tpu.memory_space<vmem>>, %arg4: memref<1x32xf32, #tpu.memory_space<vmem>>, %arg5: memref<1x32xf32, #tpu.memory_space<vmem>>, %arg6: memref<2x32x96xbf16, #tpu.memory_space<vmem>>, %arg7: memref<2x1x96xf32, #tpu.memory_space<vmem>>, %arg8: memref<2x32x32xbf16, #tpu.memory_space<vmem>>, %arg9: memref<2x1x32xf32, #tpu.memory_space<vmem>>, %arg10: memref<2x1x32xf32, #tpu.memory_space<vmem>>, %arg11: memref<2x1x32xf32, #tpu.memory_space<vmem>>, %arg12: memref<2x32x64xbf16, #tpu.memory_space<vmem>>, %arg13: memref<2x1x64xf32, #tpu.memory_space<vmem>>, %arg14: memref<2x64x32xbf16, #tpu.memory_space<vmem>>, %arg15: memref<2x1x32xf32, #tpu.memory_space<vmem>>, %arg16: memref<2x1x32xf32, #tpu.memory_space<vmem>>, %arg17: memref<2x1x32xf32, #tpu.memory_space<vmem>>, %arg18: memref<32x32xbf16, #tpu.memory_space<vmem>>, %arg19: memref<1x32xf32, #tpu.memory_space<vmem>>, %arg20: memref<32x5xbf16, #tpu.memory_space<vmem>>, %arg21: memref<1x5xf32, #tpu.memory_space<vmem>>, %arg22: memref<1x1x5xf32, #tpu.memory_space<vmem>>) attributes {dimension_semantics = [#tpu.dimension_semantics<parallel>], iteration_bounds = array<i64: 2>, scalar_prefetch = 0 : i64, scratch_operands = 0 : i64, tpu.core_type = #tpu.core_type<tc>, window_params = [{transform_indices = @transform_0, window_bounds = array<i64: 1, 8, 32>}, {pipeline_mode = #tpu.pipeline_mode<synchronous>, transform_indices = @transform_1, window_bounds = array<i64: 8, 32>}, {transform_indices = @transform_2, window_bounds = array<i64: 1, 1, 8>}, {pipeline_mode = #tpu.pipeline_mode<synchronous>, transform_indices = @transform_3, window_bounds = array<i64: 1, 32>}, {pipeline_mode = #tpu.pipeline_mode<synchronous>, transform_indices = @transform_4, window_bounds = array<i64: 1, 32>}, {pipeline_mode = #tpu.pipeline_mode<synchronous>, transform_indices = @transform_5, window_bounds = array<i64: 2, 32, 96>}, {pipeline_mode = #tpu.pipeline_mode<synchronous>, transform_indices = @transform_6, window_bounds = array<i64: 2, 1, 96>}, {pipeline_mode = #tpu.pipeline_mode<synchronous>, transform_indices = @transform_7, window_bounds = array<i64: 2, 32, 32>}, {pipeline_mode = #tpu.pipeline_mode<synchronous>, transform_indices = @transform_8, window_bounds = array<i64: 2, 1, 32>}, {pipeline_mode = #tpu.pipeline_mode<synchronous>, transform_indices = @transform_9, window_bounds = array<i64: 2, 1, 32>}, {pipeline_mode = #tpu.pipeline_mode<synchronous>, transform_indices = @transform_10, window_bounds = array<i64: 2, 1, 32>}, {pipeline_mode = #tpu.pipeline_mode<synchronous>, transform_indices = @transform_11, window_bounds = array<i64: 2, 32, 64>}, {pipeline_mode = #tpu.pipeline_mode<synchronous>, transform_indices = @transform_12, window_bounds = array<i64: 2, 1, 64>}, {pipeline_mode = #tpu.pipeline_mode<synchronous>, transform_indices = @transform_13, window_bounds = array<i64: 2, 64, 32>}, {pipeline_mode = #tpu.pipeline_mode<synchronous>, transform_indices = @transform_14, window_bounds = array<i64: 2, 1, 32>}, {pipeline_mode = #tpu.pipeline_mode<synchronous>, transform_indices = @transform_15, window_bounds = array<i64: 2, 1, 32>}, {pipeline_mode = #tpu.pipeline_mode<synchronous>, transform_indices = @transform_16, window_bounds = array<i64: 2, 1, 32>}, {pipeline_mode = #tpu.pipeline_mode<synchronous>, transform_indices = @transform_17, window_bounds = array<i64: 32, 32>}, {pipeline_mode = #tpu.pipeline_mode<synchronous>, transform_indices = @transform_18, window_bounds = array<i64: 1, 32>}, {pipeline_mode = #tpu.pipeline_mode<synchronous>, transform_indices = @transform_19, window_bounds = array<i64: 32, 5>}, {pipeline_mode = #tpu.pipeline_mode<synchronous>, transform_indices = @transform_20, window_bounds = array<i64: 1, 5>}, {transform_indices = @transform_21, window_bounds = array<i64: 1, 1, 5>}]} {
    %c0 = arith.constant 0 : index
    %c0_0 = arith.constant 0 : index
    %c0_1 = arith.constant 0 : index
    %0 = vector.load %arg1[%c0, %c0_0, %c0_1] : memref<1x8x32xf32, #tpu.memory_space<vmem>>, vector<1x8x32xf32>
    %1 = vector.shape_cast %0 : vector<1x8x32xf32> to vector<8x32xf32>
    %c0_2 = arith.constant 0 : index
    %c0_3 = arith.constant 0 : index
    %2 = vector.load %arg2[%c0_2, %c0_3] : memref<8x32xf32, #tpu.memory_space<vmem>>, vector<8x32xf32>
    %3 = arith.addf %1, %2 : vector<8x32xf32>
    %c0_4 = arith.constant 0 : index
    %c0_5 = arith.constant 0 : index
    %4 = vector.load %arg4[%c0_4, %c0_5] : memref<1x32xf32, #tpu.memory_space<vmem>>, vector<1x32xf32>
    %c0_6 = arith.constant 0 : index
    %c0_7 = arith.constant 0 : index
    %5 = vector.load %arg5[%c0_6, %c0_7] : memref<1x32xf32, #tpu.memory_space<vmem>>, vector<1x32xf32>
    %cst = arith.constant dense<0.000000e+00> : vector<8xf32>
    %6 = vector.multi_reduction <add>, %3, %cst [1] : vector<8x32xf32> to vector<8xf32>
    %7 = vector.shape_cast %6 : vector<8xf32> to vector<8x1xf32>
    %cst_8 = arith.constant 3.200000e+01 : f32
    %8 = vector.broadcast %cst_8 : f32 to vector<8x1xf32>
    %9 = arith.divf %7, %8 : vector<8x1xf32>
    %10 = vector.broadcast %9 : vector<8x1xf32> to vector<8x32xf32>
    %11 = arith.subf %3, %10 : vector<8x32xf32>
    %12 = arith.mulf %11, %11 : vector<8x32xf32>
    %cst_9 = arith.constant dense<0.000000e+00> : vector<8xf32>
    %13 = vector.multi_reduction <add>, %12, %cst_9 [1] : vector<8x32xf32> to vector<8xf32>
    %14 = vector.shape_cast %13 : vector<8xf32> to vector<8x1xf32>
    %cst_10 = arith.constant 3.200000e+01 : f32
    %15 = vector.broadcast %cst_10 : f32 to vector<8x1xf32>
    %16 = arith.divf %14, %15 : vector<8x1xf32>
    %cst_11 = arith.constant 9.99999996E-13 : f32
    %17 = vector.broadcast %cst_11 : f32 to vector<8x1xf32>
    %18 = arith.addf %16, %17 : vector<8x1xf32>
    %19 = math.rsqrt %18 : vector<8x1xf32>
    %20 = vector.broadcast %19 : vector<8x1xf32> to vector<8x32xf32>
    %21 = vector.broadcast %4 : vector<1x32xf32> to vector<8x32xf32>
    %22 = arith.mulf %20, %21 : vector<8x32xf32>
    %23 = arith.mulf %11, %22 : vector<8x32xf32>
    %24 = vector.broadcast %5 : vector<1x32xf32> to vector<8x32xf32>
    %25 = arith.addf %23, %24 : vector<8x32xf32>
    %c0_12 = arith.constant 0 : index
    %c0_13 = arith.constant 0 : index
    %c0_14 = arith.constant 0 : index
    %26 = vector.load %arg3[%c0_12, %c0_13, %c0_14] : memref<1x1x8xf32, #tpu.memory_space<vmem>>, vector<1x1x8xf32>
    %27 = vector.shape_cast %26 : vector<1x1x8xf32> to vector<1x8xf32>
    %28 = arith.truncf %25 : vector<8x32xf32> to vector<8x32xbf16>
    %c0_15 = arith.constant 0 : index
    %c0_16 = arith.constant 0 : index
    %c0_17 = arith.constant 0 : index
    %29 = vector.load %arg6[%c0_15, %c0_16, %c0_17] : memref<2x32x96xbf16, #tpu.memory_space<vmem>>, vector<1x32x96xbf16>
    %30 = vector.shape_cast %29 : vector<1x32x96xbf16> to vector<32x96xbf16>
    %cst_18 = arith.constant dense<0.000000e+00> : vector<8x96xf32>
    %31 = tpu.matmul %28, %30, %cst_18 {dimension_numbers = #tpu.dot_dimension_numbers<[1], [0], [0], [1], [0, 0, 1, 1], [], []>} : vector<8x32xbf16>, vector<32x96xbf16>, vector<8x96xf32> -> vector<8x96xf32>
    %c0_19 = arith.constant 0 : index
    %c0_20 = arith.constant 0 : index
    %c0_21 = arith.constant 0 : index
    %32 = vector.load %arg7[%c0_19, %c0_20, %c0_21] : memref<2x1x96xf32, #tpu.memory_space<vmem>>, vector<1x1x96xf32>
    %33 = vector.shape_cast %32 : vector<1x1x96xf32> to vector<1x96xf32>
    %34 = vector.broadcast %33 : vector<1x96xf32> to vector<8x96xf32>
    %35 = arith.addf %31, %34 : vector<8x96xf32>
    %36 = arith.truncf %35 : vector<8x96xf32> to vector<8x96xbf16>
    %37 = vector.extract_strided_slice %36 {offsets = [0, 0], sizes = [8, 8], strides = [1, 1]} : vector<8x96xbf16> to vector<8x8xbf16>
    %38 = vector.extract_strided_slice %36 {offsets = [0, 32], sizes = [8, 8], strides = [1, 1]} : vector<8x96xbf16> to vector<8x8xbf16>
    %39 = vector.extract_strided_slice %36 {offsets = [0, 64], sizes = [8, 8], strides = [1, 1]} : vector<8x96xbf16> to vector<8x8xbf16>
    %cst_22 = arith.constant dense<0.000000e+00> : vector<8x8xf32>
    %40 = tpu.matmul %37, %38, %cst_22 {dimension_numbers = #tpu.dot_dimension_numbers<[1], [1], [0], [0], [0, 0, 1, 0], [], []>} : vector<8x8xbf16>, vector<8x8xbf16>, vector<8x8xf32> -> vector<8x8xf32>
    %cst_23 = arith.constant 0.353553385 : f32
    %41 = vector.broadcast %cst_23 : f32 to vector<8x8xf32>
    %42 = arith.mulf %40, %41 : vector<8x8xf32>
    %43 = vector.broadcast %27 : vector<1x8xf32> to vector<8x8xf32>
    %44 = arith.addf %42, %43 : vector<8x8xf32>
    %cst_24 = arith.constant dense<0xFF800000> : vector<8xf32>
    %45 = vector.multi_reduction <maximumf>, %44, %cst_24 [1] : vector<8x8xf32> to vector<8xf32>
    %46 = vector.shape_cast %45 : vector<8xf32> to vector<8x1xf32>
    %47 = vector.broadcast %46 : vector<8x1xf32> to vector<8x8xf32>
    %48 = arith.subf %44, %47 : vector<8x8xf32>
    %49 = math.exp %48 : vector<8x8xf32>
    %cst_25 = arith.constant dense<0.000000e+00> : vector<8xf32>
    %50 = vector.multi_reduction <add>, %49, %cst_25 [1] : vector<8x8xf32> to vector<8xf32>
    %51 = vector.shape_cast %50 : vector<8xf32> to vector<8x1xf32>
    %52 = tpu.reciprocal %51 {approx = true} : vector<8x1xf32> -> vector<8x1xf32>
    %53 = vector.broadcast %52 : vector<8x1xf32> to vector<8x8xf32>
    %54 = arith.mulf %49, %53 : vector<8x8xf32>
    %55 = arith.truncf %54 : vector<8x8xf32> to vector<8x8xbf16>
    %cst_26 = arith.constant dense<0.000000e+00> : vector<8x8xf32>
    %56 = tpu.matmul %55, %39, %cst_26 {dimension_numbers = #tpu.dot_dimension_numbers<[1], [0], [0], [1], [0, 0, 1, 1], [], []>} : vector<8x8xbf16>, vector<8x8xbf16>, vector<8x8xf32> -> vector<8x8xf32>
    %57 = vector.extract_strided_slice %36 {offsets = [0, 8], sizes = [8, 8], strides = [1, 1]} : vector<8x96xbf16> to vector<8x8xbf16>
    %58 = vector.extract_strided_slice %36 {offsets = [0, 40], sizes = [8, 8], strides = [1, 1]} : vector<8x96xbf16> to vector<8x8xbf16>
    %59 = vector.extract_strided_slice %36 {offsets = [0, 72], sizes = [8, 8], strides = [1, 1]} : vector<8x96xbf16> to vector<8x8xbf16>
    %cst_27 = arith.constant dense<0.000000e+00> : vector<8x8xf32>
    %60 = tpu.matmul %57, %58, %cst_27 {dimension_numbers = #tpu.dot_dimension_numbers<[1], [1], [0], [0], [0, 0, 1, 0], [], []>} : vector<8x8xbf16>, vector<8x8xbf16>, vector<8x8xf32> -> vector<8x8xf32>
    %cst_28 = arith.constant 0.353553385 : f32
    %61 = vector.broadcast %cst_28 : f32 to vector<8x8xf32>
    %62 = arith.mulf %60, %61 : vector<8x8xf32>
    %63 = vector.broadcast %27 : vector<1x8xf32> to vector<8x8xf32>
    %64 = arith.addf %62, %63 : vector<8x8xf32>
    %cst_29 = arith.constant dense<0xFF800000> : vector<8xf32>
    %65 = vector.multi_reduction <maximumf>, %64, %cst_29 [1] : vector<8x8xf32> to vector<8xf32>
    %66 = vector.shape_cast %65 : vector<8xf32> to vector<8x1xf32>
    %67 = vector.broadcast %66 : vector<8x1xf32> to vector<8x8xf32>
    %68 = arith.subf %64, %67 : vector<8x8xf32>
    %69 = math.exp %68 : vector<8x8xf32>
    %cst_30 = arith.constant dense<0.000000e+00> : vector<8xf32>
    %70 = vector.multi_reduction <add>, %69, %cst_30 [1] : vector<8x8xf32> to vector<8xf32>
    %71 = vector.shape_cast %70 : vector<8xf32> to vector<8x1xf32>
    %72 = tpu.reciprocal %71 {approx = true} : vector<8x1xf32> -> vector<8x1xf32>
    %73 = vector.broadcast %72 : vector<8x1xf32> to vector<8x8xf32>
    %74 = arith.mulf %69, %73 : vector<8x8xf32>
    %75 = arith.truncf %74 : vector<8x8xf32> to vector<8x8xbf16>
    %cst_31 = arith.constant dense<0.000000e+00> : vector<8x8xf32>
    %76 = tpu.matmul %75, %59, %cst_31 {dimension_numbers = #tpu.dot_dimension_numbers<[1], [0], [0], [1], [0, 0, 1, 1], [], []>} : vector<8x8xbf16>, vector<8x8xbf16>, vector<8x8xf32> -> vector<8x8xf32>
    %77 = vector.extract_strided_slice %36 {offsets = [0, 16], sizes = [8, 8], strides = [1, 1]} : vector<8x96xbf16> to vector<8x8xbf16>
    %78 = vector.extract_strided_slice %36 {offsets = [0, 48], sizes = [8, 8], strides = [1, 1]} : vector<8x96xbf16> to vector<8x8xbf16>
    %79 = vector.extract_strided_slice %36 {offsets = [0, 80], sizes = [8, 8], strides = [1, 1]} : vector<8x96xbf16> to vector<8x8xbf16>
    %cst_32 = arith.constant dense<0.000000e+00> : vector<8x8xf32>
    %80 = tpu.matmul %77, %78, %cst_32 {dimension_numbers = #tpu.dot_dimension_numbers<[1], [1], [0], [0], [0, 0, 1, 0], [], []>} : vector<8x8xbf16>, vector<8x8xbf16>, vector<8x8xf32> -> vector<8x8xf32>
    %cst_33 = arith.constant 0.353553385 : f32
    %81 = vector.broadcast %cst_33 : f32 to vector<8x8xf32>
    %82 = arith.mulf %80, %81 : vector<8x8xf32>
    %83 = vector.broadcast %27 : vector<1x8xf32> to vector<8x8xf32>
    %84 = arith.addf %82, %83 : vector<8x8xf32>
    %cst_34 = arith.constant dense<0xFF800000> : vector<8xf32>
    %85 = vector.multi_reduction <maximumf>, %84, %cst_34 [1] : vector<8x8xf32> to vector<8xf32>
    %86 = vector.shape_cast %85 : vector<8xf32> to vector<8x1xf32>
    %87 = vector.broadcast %86 : vector<8x1xf32> to vector<8x8xf32>
    %88 = arith.subf %84, %87 : vector<8x8xf32>
    %89 = math.exp %88 : vector<8x8xf32>
    %cst_35 = arith.constant dense<0.000000e+00> : vector<8xf32>
    %90 = vector.multi_reduction <add>, %89, %cst_35 [1] : vector<8x8xf32> to vector<8xf32>
    %91 = vector.shape_cast %90 : vector<8xf32> to vector<8x1xf32>
    %92 = tpu.reciprocal %91 {approx = true} : vector<8x1xf32> -> vector<8x1xf32>
    %93 = vector.broadcast %92 : vector<8x1xf32> to vector<8x8xf32>
    %94 = arith.mulf %89, %93 : vector<8x8xf32>
    %95 = arith.truncf %94 : vector<8x8xf32> to vector<8x8xbf16>
    %cst_36 = arith.constant dense<0.000000e+00> : vector<8x8xf32>
    %96 = tpu.matmul %95, %79, %cst_36 {dimension_numbers = #tpu.dot_dimension_numbers<[1], [0], [0], [1], [0, 0, 1, 1], [], []>} : vector<8x8xbf16>, vector<8x8xbf16>, vector<8x8xf32> -> vector<8x8xf32>
    %97 = vector.extract_strided_slice %36 {offsets = [0, 24], sizes = [8, 8], strides = [1, 1]} : vector<8x96xbf16> to vector<8x8xbf16>
    %98 = vector.extract_strided_slice %36 {offsets = [0, 56], sizes = [8, 8], strides = [1, 1]} : vector<8x96xbf16> to vector<8x8xbf16>
    %99 = vector.extract_strided_slice %36 {offsets = [0, 88], sizes = [8, 8], strides = [1, 1]} : vector<8x96xbf16> to vector<8x8xbf16>
    %cst_37 = arith.constant dense<0.000000e+00> : vector<8x8xf32>
    %100 = tpu.matmul %97, %98, %cst_37 {dimension_numbers = #tpu.dot_dimension_numbers<[1], [1], [0], [0], [0, 0, 1, 0], [], []>} : vector<8x8xbf16>, vector<8x8xbf16>, vector<8x8xf32> -> vector<8x8xf32>
    %cst_38 = arith.constant 0.353553385 : f32
    %101 = vector.broadcast %cst_38 : f32 to vector<8x8xf32>
    %102 = arith.mulf %100, %101 : vector<8x8xf32>
    %103 = vector.broadcast %27 : vector<1x8xf32> to vector<8x8xf32>
    %104 = arith.addf %102, %103 : vector<8x8xf32>
    %cst_39 = arith.constant dense<0xFF800000> : vector<8xf32>
    %105 = vector.multi_reduction <maximumf>, %104, %cst_39 [1] : vector<8x8xf32> to vector<8xf32>
    %106 = vector.shape_cast %105 : vector<8xf32> to vector<8x1xf32>
    %107 = vector.broadcast %106 : vector<8x1xf32> to vector<8x8xf32>
    %108 = arith.subf %104, %107 : vector<8x8xf32>
    %109 = math.exp %108 : vector<8x8xf32>
    %cst_40 = arith.constant dense<0.000000e+00> : vector<8xf32>
    %110 = vector.multi_reduction <add>, %109, %cst_40 [1] : vector<8x8xf32> to vector<8xf32>
    %111 = vector.shape_cast %110 : vector<8xf32> to vector<8x1xf32>
    %112 = tpu.reciprocal %111 {approx = true} : vector<8x1xf32> -> vector<8x1xf32>
    %113 = vector.broadcast %112 : vector<8x1xf32> to vector<8x8xf32>
    %114 = arith.mulf %109, %113 : vector<8x8xf32>
    %115 = arith.truncf %114 : vector<8x8xf32> to vector<8x8xbf16>
    %cst_41 = arith.constant dense<0.000000e+00> : vector<8x8xf32>
    %116 = tpu.matmul %115, %99, %cst_41 {dimension_numbers = #tpu.dot_dimension_numbers<[1], [0], [0], [1], [0, 0, 1, 1], [], []>} : vector<8x8xbf16>, vector<8x8xbf16>, vector<8x8xf32> -> vector<8x8xf32>
    %117 = tpu.concatenate %56, %76, %96, %116 in 1 : vector<8x8xf32>, vector<8x8xf32>, vector<8x8xf32>, vector<8x8xf32> -> vector<8x32xf32>
    %118 = arith.truncf %117 : vector<8x32xf32> to vector<8x32xbf16>
    %c0_42 = arith.constant 0 : index
    %c0_43 = arith.constant 0 : index
    %c0_44 = arith.constant 0 : index
    %119 = vector.load %arg8[%c0_42, %c0_43, %c0_44] : memref<2x32x32xbf16, #tpu.memory_space<vmem>>, vector<1x32x32xbf16>
    %120 = vector.shape_cast %119 : vector<1x32x32xbf16> to vector<32x32xbf16>
    %cst_45 = arith.constant dense<0.000000e+00> : vector<8x32xf32>
    %121 = tpu.matmul %118, %120, %cst_45 {dimension_numbers = #tpu.dot_dimension_numbers<[1], [0], [0], [1], [0, 0, 1, 1], [], []>} : vector<8x32xbf16>, vector<32x32xbf16>, vector<8x32xf32> -> vector<8x32xf32>
    %c0_46 = arith.constant 0 : index
    %c0_47 = arith.constant 0 : index
    %c0_48 = arith.constant 0 : index
    %122 = vector.load %arg9[%c0_46, %c0_47, %c0_48] : memref<2x1x32xf32, #tpu.memory_space<vmem>>, vector<1x1x32xf32>
    %123 = vector.shape_cast %122 : vector<1x1x32xf32> to vector<1x32xf32>
    %124 = vector.broadcast %123 : vector<1x32xf32> to vector<8x32xf32>
    %125 = arith.addf %121, %124 : vector<8x32xf32>
    %126 = arith.addf %125, %25 : vector<8x32xf32>
    %c0_49 = arith.constant 0 : index
    %c0_50 = arith.constant 0 : index
    %c0_51 = arith.constant 0 : index
    %127 = vector.load %arg10[%c0_49, %c0_50, %c0_51] : memref<2x1x32xf32, #tpu.memory_space<vmem>>, vector<1x1x32xf32>
    %128 = vector.shape_cast %127 : vector<1x1x32xf32> to vector<1x32xf32>
    %c0_52 = arith.constant 0 : index
    %c0_53 = arith.constant 0 : index
    %c0_54 = arith.constant 0 : index
    %129 = vector.load %arg11[%c0_52, %c0_53, %c0_54] : memref<2x1x32xf32, #tpu.memory_space<vmem>>, vector<1x1x32xf32>
    %130 = vector.shape_cast %129 : vector<1x1x32xf32> to vector<1x32xf32>
    %cst_55 = arith.constant dense<0.000000e+00> : vector<8xf32>
    %131 = vector.multi_reduction <add>, %126, %cst_55 [1] : vector<8x32xf32> to vector<8xf32>
    %132 = vector.shape_cast %131 : vector<8xf32> to vector<8x1xf32>
    %cst_56 = arith.constant 3.200000e+01 : f32
    %133 = vector.broadcast %cst_56 : f32 to vector<8x1xf32>
    %134 = arith.divf %132, %133 : vector<8x1xf32>
    %135 = vector.broadcast %134 : vector<8x1xf32> to vector<8x32xf32>
    %136 = arith.subf %126, %135 : vector<8x32xf32>
    %137 = arith.mulf %136, %136 : vector<8x32xf32>
    %cst_57 = arith.constant dense<0.000000e+00> : vector<8xf32>
    %138 = vector.multi_reduction <add>, %137, %cst_57 [1] : vector<8x32xf32> to vector<8xf32>
    %139 = vector.shape_cast %138 : vector<8xf32> to vector<8x1xf32>
    %cst_58 = arith.constant 3.200000e+01 : f32
    %140 = vector.broadcast %cst_58 : f32 to vector<8x1xf32>
    %141 = arith.divf %139, %140 : vector<8x1xf32>
    %cst_59 = arith.constant 9.99999996E-13 : f32
    %142 = vector.broadcast %cst_59 : f32 to vector<8x1xf32>
    %143 = arith.addf %141, %142 : vector<8x1xf32>
    %144 = math.rsqrt %143 : vector<8x1xf32>
    %145 = vector.broadcast %144 : vector<8x1xf32> to vector<8x32xf32>
    %146 = vector.broadcast %128 : vector<1x32xf32> to vector<8x32xf32>
    %147 = arith.mulf %145, %146 : vector<8x32xf32>
    %148 = arith.mulf %136, %147 : vector<8x32xf32>
    %149 = vector.broadcast %130 : vector<1x32xf32> to vector<8x32xf32>
    %150 = arith.addf %148, %149 : vector<8x32xf32>
    %151 = arith.truncf %150 : vector<8x32xf32> to vector<8x32xbf16>
    %c0_60 = arith.constant 0 : index
    %c0_61 = arith.constant 0 : index
    %c0_62 = arith.constant 0 : index
    %152 = vector.load %arg12[%c0_60, %c0_61, %c0_62] : memref<2x32x64xbf16, #tpu.memory_space<vmem>>, vector<1x32x64xbf16>
    %153 = vector.shape_cast %152 : vector<1x32x64xbf16> to vector<32x64xbf16>
    %cst_63 = arith.constant dense<0.000000e+00> : vector<8x64xf32>
    %154 = tpu.matmul %151, %153, %cst_63 {dimension_numbers = #tpu.dot_dimension_numbers<[1], [0], [0], [1], [0, 0, 1, 1], [], []>} : vector<8x32xbf16>, vector<32x64xbf16>, vector<8x64xf32> -> vector<8x64xf32>
    %c0_64 = arith.constant 0 : index
    %c0_65 = arith.constant 0 : index
    %c0_66 = arith.constant 0 : index
    %155 = vector.load %arg13[%c0_64, %c0_65, %c0_66] : memref<2x1x64xf32, #tpu.memory_space<vmem>>, vector<1x1x64xf32>
    %156 = vector.shape_cast %155 : vector<1x1x64xf32> to vector<1x64xf32>
    %157 = vector.broadcast %156 : vector<1x64xf32> to vector<8x64xf32>
    %158 = arith.addf %154, %157 : vector<8x64xf32>
    %159 = arith.mulf %158, %158 : vector<8x64xf32>
    %160 = arith.mulf %158, %159 : vector<8x64xf32>
    %cst_67 = arith.constant 4.471500e-02 : f32
    %161 = vector.broadcast %cst_67 : f32 to vector<8x64xf32>
    %162 = arith.mulf %161, %160 : vector<8x64xf32>
    %163 = arith.addf %158, %162 : vector<8x64xf32>
    %cst_68 = arith.constant 0.797884583 : f32
    %164 = vector.broadcast %cst_68 : f32 to vector<8x64xf32>
    %165 = arith.mulf %164, %163 : vector<8x64xf32>
    %166 = math.tanh %165 : vector<8x64xf32>
    %cst_69 = arith.constant 1.000000e+00 : f32
    %167 = vector.broadcast %cst_69 : f32 to vector<8x64xf32>
    %168 = arith.addf %167, %166 : vector<8x64xf32>
    %cst_70 = arith.constant 5.000000e-01 : f32
    %169 = vector.broadcast %cst_70 : f32 to vector<8x64xf32>
    %170 = arith.mulf %169, %168 : vector<8x64xf32>
    %171 = arith.mulf %158, %170 : vector<8x64xf32>
    %172 = arith.truncf %171 : vector<8x64xf32> to vector<8x64xbf16>
    %c0_71 = arith.constant 0 : index
    %c0_72 = arith.constant 0 : index
    %c0_73 = arith.constant 0 : index
    %173 = vector.load %arg14[%c0_71, %c0_72, %c0_73] : memref<2x64x32xbf16, #tpu.memory_space<vmem>>, vector<1x64x32xbf16>
    %174 = vector.shape_cast %173 : vector<1x64x32xbf16> to vector<64x32xbf16>
    %cst_74 = arith.constant dense<0.000000e+00> : vector<8x32xf32>
    %175 = tpu.matmul %172, %174, %cst_74 {dimension_numbers = #tpu.dot_dimension_numbers<[1], [0], [0], [1], [0, 0, 1, 1], [], []>} : vector<8x64xbf16>, vector<64x32xbf16>, vector<8x32xf32> -> vector<8x32xf32>
    %c0_75 = arith.constant 0 : index
    %c0_76 = arith.constant 0 : index
    %c0_77 = arith.constant 0 : index
    %176 = vector.load %arg15[%c0_75, %c0_76, %c0_77] : memref<2x1x32xf32, #tpu.memory_space<vmem>>, vector<1x1x32xf32>
    %177 = vector.shape_cast %176 : vector<1x1x32xf32> to vector<1x32xf32>
    %178 = vector.broadcast %177 : vector<1x32xf32> to vector<8x32xf32>
    %179 = arith.addf %175, %178 : vector<8x32xf32>
    %180 = arith.addf %179, %150 : vector<8x32xf32>
    %c0_78 = arith.constant 0 : index
    %c0_79 = arith.constant 0 : index
    %c0_80 = arith.constant 0 : index
    %181 = vector.load %arg16[%c0_78, %c0_79, %c0_80] : memref<2x1x32xf32, #tpu.memory_space<vmem>>, vector<1x1x32xf32>
    %182 = vector.shape_cast %181 : vector<1x1x32xf32> to vector<1x32xf32>
    %c0_81 = arith.constant 0 : index
    %c0_82 = arith.constant 0 : index
    %c0_83 = arith.constant 0 : index
    %183 = vector.load %arg17[%c0_81, %c0_82, %c0_83] : memref<2x1x32xf32, #tpu.memory_space<vmem>>, vector<1x1x32xf32>
    %184 = vector.shape_cast %183 : vector<1x1x32xf32> to vector<1x32xf32>
    %cst_84 = arith.constant dense<0.000000e+00> : vector<8xf32>
    %185 = vector.multi_reduction <add>, %180, %cst_84 [1] : vector<8x32xf32> to vector<8xf32>
    %186 = vector.shape_cast %185 : vector<8xf32> to vector<8x1xf32>
    %cst_85 = arith.constant 3.200000e+01 : f32
    %187 = vector.broadcast %cst_85 : f32 to vector<8x1xf32>
    %188 = arith.divf %186, %187 : vector<8x1xf32>
    %189 = vector.broadcast %188 : vector<8x1xf32> to vector<8x32xf32>
    %190 = arith.subf %180, %189 : vector<8x32xf32>
    %191 = arith.mulf %190, %190 : vector<8x32xf32>
    %cst_86 = arith.constant dense<0.000000e+00> : vector<8xf32>
    %192 = vector.multi_reduction <add>, %191, %cst_86 [1] : vector<8x32xf32> to vector<8xf32>
    %193 = vector.shape_cast %192 : vector<8xf32> to vector<8x1xf32>
    %cst_87 = arith.constant 3.200000e+01 : f32
    %194 = vector.broadcast %cst_87 : f32 to vector<8x1xf32>
    %195 = arith.divf %193, %194 : vector<8x1xf32>
    %cst_88 = arith.constant 9.99999996E-13 : f32
    %196 = vector.broadcast %cst_88 : f32 to vector<8x1xf32>
    %197 = arith.addf %195, %196 : vector<8x1xf32>
    %198 = math.rsqrt %197 : vector<8x1xf32>
    %199 = vector.broadcast %198 : vector<8x1xf32> to vector<8x32xf32>
    %200 = vector.broadcast %182 : vector<1x32xf32> to vector<8x32xf32>
    %201 = arith.mulf %199, %200 : vector<8x32xf32>
    %202 = arith.mulf %190, %201 : vector<8x32xf32>
    %203 = vector.broadcast %184 : vector<1x32xf32> to vector<8x32xf32>
    %204 = arith.addf %202, %203 : vector<8x32xf32>
    %205 = arith.truncf %204 : vector<8x32xf32> to vector<8x32xbf16>
    %c1 = arith.constant 1 : index
    %c0_89 = arith.constant 0 : index
    %c0_90 = arith.constant 0 : index
    %206 = vector.load %arg6[%c1, %c0_89, %c0_90] : memref<2x32x96xbf16, #tpu.memory_space<vmem>>, vector<1x32x96xbf16>
    %207 = vector.shape_cast %206 : vector<1x32x96xbf16> to vector<32x96xbf16>
    %cst_91 = arith.constant dense<0.000000e+00> : vector<8x96xf32>
    %208 = tpu.matmul %205, %207, %cst_91 {dimension_numbers = #tpu.dot_dimension_numbers<[1], [0], [0], [1], [0, 0, 1, 1], [], []>} : vector<8x32xbf16>, vector<32x96xbf16>, vector<8x96xf32> -> vector<8x96xf32>
    %c1_92 = arith.constant 1 : index
    %c0_93 = arith.constant 0 : index
    %c0_94 = arith.constant 0 : index
    %209 = vector.load %arg7[%c1_92, %c0_93, %c0_94] : memref<2x1x96xf32, #tpu.memory_space<vmem>>, vector<1x1x96xf32>
    %210 = vector.shape_cast %209 : vector<1x1x96xf32> to vector<1x96xf32>
    %211 = vector.broadcast %210 : vector<1x96xf32> to vector<8x96xf32>
    %212 = arith.addf %208, %211 : vector<8x96xf32>
    %213 = arith.truncf %212 : vector<8x96xf32> to vector<8x96xbf16>
    %214 = vector.extract_strided_slice %213 {offsets = [0, 0], sizes = [8, 8], strides = [1, 1]} : vector<8x96xbf16> to vector<8x8xbf16>
    %215 = vector.extract_strided_slice %213 {offsets = [0, 32], sizes = [8, 8], strides = [1, 1]} : vector<8x96xbf16> to vector<8x8xbf16>
    %216 = vector.extract_strided_slice %213 {offsets = [0, 64], sizes = [8, 8], strides = [1, 1]} : vector<8x96xbf16> to vector<8x8xbf16>
    %cst_95 = arith.constant dense<0.000000e+00> : vector<8x8xf32>
    %217 = tpu.matmul %214, %215, %cst_95 {dimension_numbers = #tpu.dot_dimension_numbers<[1], [1], [0], [0], [0, 0, 1, 0], [], []>} : vector<8x8xbf16>, vector<8x8xbf16>, vector<8x8xf32> -> vector<8x8xf32>
    %cst_96 = arith.constant 0.353553385 : f32
    %218 = vector.broadcast %cst_96 : f32 to vector<8x8xf32>
    %219 = arith.mulf %217, %218 : vector<8x8xf32>
    %220 = vector.broadcast %27 : vector<1x8xf32> to vector<8x8xf32>
    %221 = arith.addf %219, %220 : vector<8x8xf32>
    %cst_97 = arith.constant dense<0xFF800000> : vector<8xf32>
    %222 = vector.multi_reduction <maximumf>, %221, %cst_97 [1] : vector<8x8xf32> to vector<8xf32>
    %223 = vector.shape_cast %222 : vector<8xf32> to vector<8x1xf32>
    %224 = vector.broadcast %223 : vector<8x1xf32> to vector<8x8xf32>
    %225 = arith.subf %221, %224 : vector<8x8xf32>
    %226 = math.exp %225 : vector<8x8xf32>
    %cst_98 = arith.constant dense<0.000000e+00> : vector<8xf32>
    %227 = vector.multi_reduction <add>, %226, %cst_98 [1] : vector<8x8xf32> to vector<8xf32>
    %228 = vector.shape_cast %227 : vector<8xf32> to vector<8x1xf32>
    %229 = tpu.reciprocal %228 {approx = true} : vector<8x1xf32> -> vector<8x1xf32>
    %230 = vector.broadcast %229 : vector<8x1xf32> to vector<8x8xf32>
    %231 = arith.mulf %226, %230 : vector<8x8xf32>
    %232 = arith.truncf %231 : vector<8x8xf32> to vector<8x8xbf16>
    %cst_99 = arith.constant dense<0.000000e+00> : vector<8x8xf32>
    %233 = tpu.matmul %232, %216, %cst_99 {dimension_numbers = #tpu.dot_dimension_numbers<[1], [0], [0], [1], [0, 0, 1, 1], [], []>} : vector<8x8xbf16>, vector<8x8xbf16>, vector<8x8xf32> -> vector<8x8xf32>
    %234 = vector.extract_strided_slice %213 {offsets = [0, 8], sizes = [8, 8], strides = [1, 1]} : vector<8x96xbf16> to vector<8x8xbf16>
    %235 = vector.extract_strided_slice %213 {offsets = [0, 40], sizes = [8, 8], strides = [1, 1]} : vector<8x96xbf16> to vector<8x8xbf16>
    %236 = vector.extract_strided_slice %213 {offsets = [0, 72], sizes = [8, 8], strides = [1, 1]} : vector<8x96xbf16> to vector<8x8xbf16>
    %cst_100 = arith.constant dense<0.000000e+00> : vector<8x8xf32>
    %237 = tpu.matmul %234, %235, %cst_100 {dimension_numbers = #tpu.dot_dimension_numbers<[1], [1], [0], [0], [0, 0, 1, 0], [], []>} : vector<8x8xbf16>, vector<8x8xbf16>, vector<8x8xf32> -> vector<8x8xf32>
    %cst_101 = arith.constant 0.353553385 : f32
    %238 = vector.broadcast %cst_101 : f32 to vector<8x8xf32>
    %239 = arith.mulf %237, %238 : vector<8x8xf32>
    %240 = vector.broadcast %27 : vector<1x8xf32> to vector<8x8xf32>
    %241 = arith.addf %239, %240 : vector<8x8xf32>
    %cst_102 = arith.constant dense<0xFF800000> : vector<8xf32>
    %242 = vector.multi_reduction <maximumf>, %241, %cst_102 [1] : vector<8x8xf32> to vector<8xf32>
    %243 = vector.shape_cast %242 : vector<8xf32> to vector<8x1xf32>
    %244 = vector.broadcast %243 : vector<8x1xf32> to vector<8x8xf32>
    %245 = arith.subf %241, %244 : vector<8x8xf32>
    %246 = math.exp %245 : vector<8x8xf32>
    %cst_103 = arith.constant dense<0.000000e+00> : vector<8xf32>
    %247 = vector.multi_reduction <add>, %246, %cst_103 [1] : vector<8x8xf32> to vector<8xf32>
    %248 = vector.shape_cast %247 : vector<8xf32> to vector<8x1xf32>
    %249 = tpu.reciprocal %248 {approx = true} : vector<8x1xf32> -> vector<8x1xf32>
    %250 = vector.broadcast %249 : vector<8x1xf32> to vector<8x8xf32>
    %251 = arith.mulf %246, %250 : vector<8x8xf32>
    %252 = arith.truncf %251 : vector<8x8xf32> to vector<8x8xbf16>
    %cst_104 = arith.constant dense<0.000000e+00> : vector<8x8xf32>
    %253 = tpu.matmul %252, %236, %cst_104 {dimension_numbers = #tpu.dot_dimension_numbers<[1], [0], [0], [1], [0, 0, 1, 1], [], []>} : vector<8x8xbf16>, vector<8x8xbf16>, vector<8x8xf32> -> vector<8x8xf32>
    %254 = vector.extract_strided_slice %213 {offsets = [0, 16], sizes = [8, 8], strides = [1, 1]} : vector<8x96xbf16> to vector<8x8xbf16>
    %255 = vector.extract_strided_slice %213 {offsets = [0, 48], sizes = [8, 8], strides = [1, 1]} : vector<8x96xbf16> to vector<8x8xbf16>
    %256 = vector.extract_strided_slice %213 {offsets = [0, 80], sizes = [8, 8], strides = [1, 1]} : vector<8x96xbf16> to vector<8x8xbf16>
    %cst_105 = arith.constant dense<0.000000e+00> : vector<8x8xf32>
    %257 = tpu.matmul %254, %255, %cst_105 {dimension_numbers = #tpu.dot_dimension_numbers<[1], [1], [0], [0], [0, 0, 1, 0], [], []>} : vector<8x8xbf16>, vector<8x8xbf16>, vector<8x8xf32> -> vector<8x8xf32>
    %cst_106 = arith.constant 0.353553385 : f32
    %258 = vector.broadcast %cst_106 : f32 to vector<8x8xf32>
    %259 = arith.mulf %257, %258 : vector<8x8xf32>
    %260 = vector.broadcast %27 : vector<1x8xf32> to vector<8x8xf32>
    %261 = arith.addf %259, %260 : vector<8x8xf32>
    %cst_107 = arith.constant dense<0xFF800000> : vector<8xf32>
    %262 = vector.multi_reduction <maximumf>, %261, %cst_107 [1] : vector<8x8xf32> to vector<8xf32>
    %263 = vector.shape_cast %262 : vector<8xf32> to vector<8x1xf32>
    %264 = vector.broadcast %263 : vector<8x1xf32> to vector<8x8xf32>
    %265 = arith.subf %261, %264 : vector<8x8xf32>
    %266 = math.exp %265 : vector<8x8xf32>
    %cst_108 = arith.constant dense<0.000000e+00> : vector<8xf32>
    %267 = vector.multi_reduction <add>, %266, %cst_108 [1] : vector<8x8xf32> to vector<8xf32>
    %268 = vector.shape_cast %267 : vector<8xf32> to vector<8x1xf32>
    %269 = tpu.reciprocal %268 {approx = true} : vector<8x1xf32> -> vector<8x1xf32>
    %270 = vector.broadcast %269 : vector<8x1xf32> to vector<8x8xf32>
    %271 = arith.mulf %266, %270 : vector<8x8xf32>
    %272 = arith.truncf %271 : vector<8x8xf32> to vector<8x8xbf16>
    %cst_109 = arith.constant dense<0.000000e+00> : vector<8x8xf32>
    %273 = tpu.matmul %272, %256, %cst_109 {dimension_numbers = #tpu.dot_dimension_numbers<[1], [0], [0], [1], [0, 0, 1, 1], [], []>} : vector<8x8xbf16>, vector<8x8xbf16>, vector<8x8xf32> -> vector<8x8xf32>
    %274 = vector.extract_strided_slice %213 {offsets = [0, 24], sizes = [8, 8], strides = [1, 1]} : vector<8x96xbf16> to vector<8x8xbf16>
    %275 = vector.extract_strided_slice %213 {offsets = [0, 56], sizes = [8, 8], strides = [1, 1]} : vector<8x96xbf16> to vector<8x8xbf16>
    %276 = vector.extract_strided_slice %213 {offsets = [0, 88], sizes = [8, 8], strides = [1, 1]} : vector<8x96xbf16> to vector<8x8xbf16>
    %cst_110 = arith.constant dense<0.000000e+00> : vector<8x8xf32>
    %277 = tpu.matmul %274, %275, %cst_110 {dimension_numbers = #tpu.dot_dimension_numbers<[1], [1], [0], [0], [0, 0, 1, 0], [], []>} : vector<8x8xbf16>, vector<8x8xbf16>, vector<8x8xf32> -> vector<8x8xf32>
    %cst_111 = arith.constant 0.353553385 : f32
    %278 = vector.broadcast %cst_111 : f32 to vector<8x8xf32>
    %279 = arith.mulf %277, %278 : vector<8x8xf32>
    %280 = vector.broadcast %27 : vector<1x8xf32> to vector<8x8xf32>
    %281 = arith.addf %279, %280 : vector<8x8xf32>
    %cst_112 = arith.constant dense<0xFF800000> : vector<8xf32>
    %282 = vector.multi_reduction <maximumf>, %281, %cst_112 [1] : vector<8x8xf32> to vector<8xf32>
    %283 = vector.shape_cast %282 : vector<8xf32> to vector<8x1xf32>
    %284 = vector.broadcast %283 : vector<8x1xf32> to vector<8x8xf32>
    %285 = arith.subf %281, %284 : vector<8x8xf32>
    %286 = math.exp %285 : vector<8x8xf32>
    %cst_113 = arith.constant dense<0.000000e+00> : vector<8xf32>
    %287 = vector.multi_reduction <add>, %286, %cst_113 [1] : vector<8x8xf32> to vector<8xf32>
    %288 = vector.shape_cast %287 : vector<8xf32> to vector<8x1xf32>
    %289 = tpu.reciprocal %288 {approx = true} : vector<8x1xf32> -> vector<8x1xf32>
    %290 = vector.broadcast %289 : vector<8x1xf32> to vector<8x8xf32>
    %291 = arith.mulf %286, %290 : vector<8x8xf32>
    %292 = arith.truncf %291 : vector<8x8xf32> to vector<8x8xbf16>
    %cst_114 = arith.constant dense<0.000000e+00> : vector<8x8xf32>
    %293 = tpu.matmul %292, %276, %cst_114 {dimension_numbers = #tpu.dot_dimension_numbers<[1], [0], [0], [1], [0, 0, 1, 1], [], []>} : vector<8x8xbf16>, vector<8x8xbf16>, vector<8x8xf32> -> vector<8x8xf32>
    %294 = tpu.concatenate %233, %253, %273, %293 in 1 : vector<8x8xf32>, vector<8x8xf32>, vector<8x8xf32>, vector<8x8xf32> -> vector<8x32xf32>
    %295 = arith.truncf %294 : vector<8x32xf32> to vector<8x32xbf16>
    %c1_115 = arith.constant 1 : index
    %c0_116 = arith.constant 0 : index
    %c0_117 = arith.constant 0 : index
    %296 = vector.load %arg8[%c1_115, %c0_116, %c0_117] : memref<2x32x32xbf16, #tpu.memory_space<vmem>>, vector<1x32x32xbf16>
    %297 = vector.shape_cast %296 : vector<1x32x32xbf16> to vector<32x32xbf16>
    %cst_118 = arith.constant dense<0.000000e+00> : vector<8x32xf32>
    %298 = tpu.matmul %295, %297, %cst_118 {dimension_numbers = #tpu.dot_dimension_numbers<[1], [0], [0], [1], [0, 0, 1, 1], [], []>} : vector<8x32xbf16>, vector<32x32xbf16>, vector<8x32xf32> -> vector<8x32xf32>
    %c1_119 = arith.constant 1 : index
    %c0_120 = arith.constant 0 : index
    %c0_121 = arith.constant 0 : index
    %299 = vector.load %arg9[%c1_119, %c0_120, %c0_121] : memref<2x1x32xf32, #tpu.memory_space<vmem>>, vector<1x1x32xf32>
    %300 = vector.shape_cast %299 : vector<1x1x32xf32> to vector<1x32xf32>
    %301 = vector.broadcast %300 : vector<1x32xf32> to vector<8x32xf32>
    %302 = arith.addf %298, %301 : vector<8x32xf32>
    %303 = arith.addf %302, %204 : vector<8x32xf32>
    %c1_122 = arith.constant 1 : index
    %c0_123 = arith.constant 0 : index
    %c0_124 = arith.constant 0 : index
    %304 = vector.load %arg10[%c1_122, %c0_123, %c0_124] : memref<2x1x32xf32, #tpu.memory_space<vmem>>, vector<1x1x32xf32>
    %305 = vector.shape_cast %304 : vector<1x1x32xf32> to vector<1x32xf32>
    %c1_125 = arith.constant 1 : index
    %c0_126 = arith.constant 0 : index
    %c0_127 = arith.constant 0 : index
    %306 = vector.load %arg11[%c1_125, %c0_126, %c0_127] : memref<2x1x32xf32, #tpu.memory_space<vmem>>, vector<1x1x32xf32>
    %307 = vector.shape_cast %306 : vector<1x1x32xf32> to vector<1x32xf32>
    %cst_128 = arith.constant dense<0.000000e+00> : vector<8xf32>
    %308 = vector.multi_reduction <add>, %303, %cst_128 [1] : vector<8x32xf32> to vector<8xf32>
    %309 = vector.shape_cast %308 : vector<8xf32> to vector<8x1xf32>
    %cst_129 = arith.constant 3.200000e+01 : f32
    %310 = vector.broadcast %cst_129 : f32 to vector<8x1xf32>
    %311 = arith.divf %309, %310 : vector<8x1xf32>
    %312 = vector.broadcast %311 : vector<8x1xf32> to vector<8x32xf32>
    %313 = arith.subf %303, %312 : vector<8x32xf32>
    %314 = arith.mulf %313, %313 : vector<8x32xf32>
    %cst_130 = arith.constant dense<0.000000e+00> : vector<8xf32>
    %315 = vector.multi_reduction <add>, %314, %cst_130 [1] : vector<8x32xf32> to vector<8xf32>
    %316 = vector.shape_cast %315 : vector<8xf32> to vector<8x1xf32>
    %cst_131 = arith.constant 3.200000e+01 : f32
    %317 = vector.broadcast %cst_131 : f32 to vector<8x1xf32>
    %318 = arith.divf %316, %317 : vector<8x1xf32>
    %cst_132 = arith.constant 9.99999996E-13 : f32
    %319 = vector.broadcast %cst_132 : f32 to vector<8x1xf32>
    %320 = arith.addf %318, %319 : vector<8x1xf32>
    %321 = math.rsqrt %320 : vector<8x1xf32>
    %322 = vector.broadcast %321 : vector<8x1xf32> to vector<8x32xf32>
    %323 = vector.broadcast %305 : vector<1x32xf32> to vector<8x32xf32>
    %324 = arith.mulf %322, %323 : vector<8x32xf32>
    %325 = arith.mulf %313, %324 : vector<8x32xf32>
    %326 = vector.broadcast %307 : vector<1x32xf32> to vector<8x32xf32>
    %327 = arith.addf %325, %326 : vector<8x32xf32>
    %328 = arith.truncf %327 : vector<8x32xf32> to vector<8x32xbf16>
    %c1_133 = arith.constant 1 : index
    %c0_134 = arith.constant 0 : index
    %c0_135 = arith.constant 0 : index
    %329 = vector.load %arg12[%c1_133, %c0_134, %c0_135] : memref<2x32x64xbf16, #tpu.memory_space<vmem>>, vector<1x32x64xbf16>
    %330 = vector.shape_cast %329 : vector<1x32x64xbf16> to vector<32x64xbf16>
    %cst_136 = arith.constant dense<0.000000e+00> : vector<8x64xf32>
    %331 = tpu.matmul %328, %330, %cst_136 {dimension_numbers = #tpu.dot_dimension_numbers<[1], [0], [0], [1], [0, 0, 1, 1], [], []>} : vector<8x32xbf16>, vector<32x64xbf16>, vector<8x64xf32> -> vector<8x64xf32>
    %c1_137 = arith.constant 1 : index
    %c0_138 = arith.constant 0 : index
    %c0_139 = arith.constant 0 : index
    %332 = vector.load %arg13[%c1_137, %c0_138, %c0_139] : memref<2x1x64xf32, #tpu.memory_space<vmem>>, vector<1x1x64xf32>
    %333 = vector.shape_cast %332 : vector<1x1x64xf32> to vector<1x64xf32>
    %334 = vector.broadcast %333 : vector<1x64xf32> to vector<8x64xf32>
    %335 = arith.addf %331, %334 : vector<8x64xf32>
    %336 = arith.mulf %335, %335 : vector<8x64xf32>
    %337 = arith.mulf %335, %336 : vector<8x64xf32>
    %cst_140 = arith.constant 4.471500e-02 : f32
    %338 = vector.broadcast %cst_140 : f32 to vector<8x64xf32>
    %339 = arith.mulf %338, %337 : vector<8x64xf32>
    %340 = arith.addf %335, %339 : vector<8x64xf32>
    %cst_141 = arith.constant 0.797884583 : f32
    %341 = vector.broadcast %cst_141 : f32 to vector<8x64xf32>
    %342 = arith.mulf %341, %340 : vector<8x64xf32>
    %343 = math.tanh %342 : vector<8x64xf32>
    %cst_142 = arith.constant 1.000000e+00 : f32
    %344 = vector.broadcast %cst_142 : f32 to vector<8x64xf32>
    %345 = arith.addf %344, %343 : vector<8x64xf32>
    %cst_143 = arith.constant 5.000000e-01 : f32
    %346 = vector.broadcast %cst_143 : f32 to vector<8x64xf32>
    %347 = arith.mulf %346, %345 : vector<8x64xf32>
    %348 = arith.mulf %335, %347 : vector<8x64xf32>
    %349 = arith.truncf %348 : vector<8x64xf32> to vector<8x64xbf16>
    %c1_144 = arith.constant 1 : index
    %c0_145 = arith.constant 0 : index
    %c0_146 = arith.constant 0 : index
    %350 = vector.load %arg14[%c1_144, %c0_145, %c0_146] : memref<2x64x32xbf16, #tpu.memory_space<vmem>>, vector<1x64x32xbf16>
    %351 = vector.shape_cast %350 : vector<1x64x32xbf16> to vector<64x32xbf16>
    %cst_147 = arith.constant dense<0.000000e+00> : vector<8x32xf32>
    %352 = tpu.matmul %349, %351, %cst_147 {dimension_numbers = #tpu.dot_dimension_numbers<[1], [0], [0], [1], [0, 0, 1, 1], [], []>} : vector<8x64xbf16>, vector<64x32xbf16>, vector<8x32xf32> -> vector<8x32xf32>
    %c1_148 = arith.constant 1 : index
    %c0_149 = arith.constant 0 : index
    %c0_150 = arith.constant 0 : index
    %353 = vector.load %arg15[%c1_148, %c0_149, %c0_150] : memref<2x1x32xf32, #tpu.memory_space<vmem>>, vector<1x1x32xf32>
    %354 = vector.shape_cast %353 : vector<1x1x32xf32> to vector<1x32xf32>
    %355 = vector.broadcast %354 : vector<1x32xf32> to vector<8x32xf32>
    %356 = arith.addf %352, %355 : vector<8x32xf32>
    %357 = arith.addf %356, %327 : vector<8x32xf32>
    %c1_151 = arith.constant 1 : index
    %c0_152 = arith.constant 0 : index
    %c0_153 = arith.constant 0 : index
    %358 = vector.load %arg16[%c1_151, %c0_152, %c0_153] : memref<2x1x32xf32, #tpu.memory_space<vmem>>, vector<1x1x32xf32>
    %359 = vector.shape_cast %358 : vector<1x1x32xf32> to vector<1x32xf32>
    %c1_154 = arith.constant 1 : index
    %c0_155 = arith.constant 0 : index
    %c0_156 = arith.constant 0 : index
    %360 = vector.load %arg17[%c1_154, %c0_155, %c0_156] : memref<2x1x32xf32, #tpu.memory_space<vmem>>, vector<1x1x32xf32>
    %361 = vector.shape_cast %360 : vector<1x1x32xf32> to vector<1x32xf32>
    %cst_157 = arith.constant dense<0.000000e+00> : vector<8xf32>
    %362 = vector.multi_reduction <add>, %357, %cst_157 [1] : vector<8x32xf32> to vector<8xf32>
    %363 = vector.shape_cast %362 : vector<8xf32> to vector<8x1xf32>
    %cst_158 = arith.constant 3.200000e+01 : f32
    %364 = vector.broadcast %cst_158 : f32 to vector<8x1xf32>
    %365 = arith.divf %363, %364 : vector<8x1xf32>
    %366 = vector.broadcast %365 : vector<8x1xf32> to vector<8x32xf32>
    %367 = arith.subf %357, %366 : vector<8x32xf32>
    %368 = arith.mulf %367, %367 : vector<8x32xf32>
    %cst_159 = arith.constant dense<0.000000e+00> : vector<8xf32>
    %369 = vector.multi_reduction <add>, %368, %cst_159 [1] : vector<8x32xf32> to vector<8xf32>
    %370 = vector.shape_cast %369 : vector<8xf32> to vector<8x1xf32>
    %cst_160 = arith.constant 3.200000e+01 : f32
    %371 = vector.broadcast %cst_160 : f32 to vector<8x1xf32>
    %372 = arith.divf %370, %371 : vector<8x1xf32>
    %cst_161 = arith.constant 9.99999996E-13 : f32
    %373 = vector.broadcast %cst_161 : f32 to vector<8x1xf32>
    %374 = arith.addf %372, %373 : vector<8x1xf32>
    %375 = math.rsqrt %374 : vector<8x1xf32>
    %376 = vector.broadcast %375 : vector<8x1xf32> to vector<8x32xf32>
    %377 = vector.broadcast %359 : vector<1x32xf32> to vector<8x32xf32>
    %378 = arith.mulf %376, %377 : vector<8x32xf32>
    %379 = arith.mulf %367, %378 : vector<8x32xf32>
    %380 = vector.broadcast %361 : vector<1x32xf32> to vector<8x32xf32>
    %381 = arith.addf %379, %380 : vector<8x32xf32>
    %382 = vector.extract_strided_slice %381 {offsets = [0, 0], sizes = [1, 32], strides = [1, 1]} : vector<8x32xf32> to vector<1x32xf32>
    %383 = arith.truncf %382 : vector<1x32xf32> to vector<1x32xbf16>
    %c0_162 = arith.constant 0 : index
    %c0_163 = arith.constant 0 : index
    %384 = vector.load %arg18[%c0_162, %c0_163] : memref<32x32xbf16, #tpu.memory_space<vmem>>, vector<32x32xbf16>
    %cst_164 = arith.constant dense<0.000000e+00> : vector<1x32xf32>
    %385 = tpu.matmul %383, %384, %cst_164 {dimension_numbers = #tpu.dot_dimension_numbers<[1], [0], [0], [1], [0, 0, 1, 1], [], []>} : vector<1x32xbf16>, vector<32x32xbf16>, vector<1x32xf32> -> vector<1x32xf32>
    %c0_165 = arith.constant 0 : index
    %c0_166 = arith.constant 0 : index
    %386 = vector.load %arg19[%c0_165, %c0_166] : memref<1x32xf32, #tpu.memory_space<vmem>>, vector<1x32xf32>
    %387 = arith.addf %385, %386 : vector<1x32xf32>
    %388 = math.tanh %387 : vector<1x32xf32>
    %389 = arith.truncf %388 : vector<1x32xf32> to vector<1x32xbf16>
    %c0_167 = arith.constant 0 : index
    %c0_168 = arith.constant 0 : index
    %390 = vector.load %arg20[%c0_167, %c0_168] : memref<32x5xbf16, #tpu.memory_space<vmem>>, vector<32x5xbf16>
    %cst_169 = arith.constant dense<0.000000e+00> : vector<1x5xf32>
    %391 = tpu.matmul %389, %390, %cst_169 {dimension_numbers = #tpu.dot_dimension_numbers<[1], [0], [0], [1], [0, 0, 1, 1], [], []>} : vector<1x32xbf16>, vector<32x5xbf16>, vector<1x5xf32> -> vector<1x5xf32>
    %c0_170 = arith.constant 0 : index
    %c0_171 = arith.constant 0 : index
    %392 = vector.load %arg21[%c0_170, %c0_171] : memref<1x5xf32, #tpu.memory_space<vmem>>, vector<1x5xf32>
    %393 = arith.addf %391, %392 : vector<1x5xf32>
    %c0_172 = arith.constant 0 : index
    %c0_173 = arith.constant 0 : index
    %c0_174 = arith.constant 0 : index
    %394 = vector.load %arg22[%c0_172, %c0_173, %c0_174] : memref<1x1x5xf32, #tpu.memory_space<vmem>>, vector<1x1x5xf32>
    %395 = vector.shape_cast %394 : vector<1x1x5xf32> to vector<1x5xf32>
    %396 = vector.shape_cast %393 : vector<1x5xf32> to vector<1x1x5xf32>
    tpu.vector_store %arg22[%c0_172, %c0_173, %c0_174], %396 {strides = array<i32>} : memref<1x1x5xf32, #tpu.memory_space<vmem>>, vector<1x1x5xf32>,
    return
  }
  func.func @transform_0(%arg0: i32) -> (i32, i32, i32) {
    %c0_i32 = arith.constant 0 : i32
    %c0_i32_0 = arith.constant 0 : i32
    %c0_i32_1 = arith.constant 0 : i32
    return %arg0, %c0_i32, %c0_i32_0 : i32, i32, i32
  }
  func.func @transform_1(%arg0: i32) -> (i32, i32) {
    %c0_i32 = arith.constant 0 : i32
    %c0_i32_0 = arith.constant 0 : i32
    %c0_i32_1 = arith.constant 0 : i32
    return %c0_i32, %c0_i32_0 : i32, i32
  }
  func.func @transform_2(%arg0: i32) -> (i32, i32, i32) {
    %c0_i32 = arith.constant 0 : i32
    %c0_i32_0 = arith.constant 0 : i32
    %c0_i32_1 = arith.constant 0 : i32
    return %arg0, %c0_i32, %c0_i32_0 : i32, i32, i32
  }
  func.func @transform_3(%arg0: i32) -> (i32, i32) {
    %c0_i32 = arith.constant 0 : i32
    %c0_i32_0 = arith.constant 0 : i32
    %c0_i32_1 = arith.constant 0 : i32
    return %c0_i32, %c0_i32_0 : i32, i32
  }
  func.func @transform_4(%arg0: i32) -> (i32, i32) {
    %c0_i32 = arith.constant 0 : i32
    %c0_i32_0 = arith.constant 0 : i32
    %c0_i32_1 = arith.constant 0 : i32
    return %c0_i32, %c0_i32_0 : i32, i32
  }
  func.func @transform_5(%arg0: i32) -> (i32, i32, i32) {
    %c0_i32 = arith.constant 0 : i32
    %c0_i32_0 = arith.constant 0 : i32
    %c0_i32_1 = arith.constant 0 : i32
    %c0_i32_2 = arith.constant 0 : i32
    return %c0_i32, %c0_i32_0, %c0_i32_1 : i32, i32, i32
  }
  func.func @transform_6(%arg0: i32) -> (i32, i32, i32) {
    %c0_i32 = arith.constant 0 : i32
    %c0_i32_0 = arith.constant 0 : i32
    %c0_i32_1 = arith.constant 0 : i32
    %c0_i32_2 = arith.constant 0 : i32
    return %c0_i32, %c0_i32_0, %c0_i32_1 : i32, i32, i32
  }
  func.func @transform_7(%arg0: i32) -> (i32, i32, i32) {
    %c0_i32 = arith.constant 0 : i32
    %c0_i32_0 = arith.constant 0 : i32
    %c0_i32_1 = arith.constant 0 : i32
    %c0_i32_2 = arith.constant 0 : i32
    return %c0_i32, %c0_i32_0, %c0_i32_1 : i32, i32, i32
  }
  func.func @transform_8(%arg0: i32) -> (i32, i32, i32) {
    %c0_i32 = arith.constant 0 : i32
    %c0_i32_0 = arith.constant 0 : i32
    %c0_i32_1 = arith.constant 0 : i32
    %c0_i32_2 = arith.constant 0 : i32
    return %c0_i32, %c0_i32_0, %c0_i32_1 : i32, i32, i32
  }
  func.func @transform_9(%arg0: i32) -> (i32, i32, i32) {
    %c0_i32 = arith.constant 0 : i32
    %c0_i32_0 = arith.constant 0 : i32
    %c0_i32_1 = arith.constant 0 : i32
    %c0_i32_2 = arith.constant 0 : i32
    return %c0_i32, %c0_i32_0, %c0_i32_1 : i32, i32, i32
  }
  func.func @transform_10(%arg0: i32) -> (i32, i32, i32) {
    %c0_i32 = arith.constant 0 : i32
    %c0_i32_0 = arith.constant 0 : i32
    %c0_i32_1 = arith.constant 0 : i32
    %c0_i32_2 = arith.constant 0 : i32
    return %c0_i32, %c0_i32_0, %c0_i32_1 : i32, i32, i32
  }
  func.func @transform_11(%arg0: i32) -> (i32, i32, i32) {
    %c0_i32 = arith.constant 0 : i32
    %c0_i32_0 = arith.constant 0 : i32
    %c0_i32_1 = arith.constant 0 : i32
    %c0_i32_2 = arith.constant 0 : i32
    return %c0_i32, %c0_i32_0, %c0_i32_1 : i32, i32, i32
  }
  func.func @transform_12(%arg0: i32) -> (i32, i32, i32) {
    %c0_i32 = arith.constant 0 : i32
    %c0_i32_0 = arith.constant 0 : i32
    %c0_i32_1 = arith.constant 0 : i32
    %c0_i32_2 = arith.constant 0 : i32
    return %c0_i32, %c0_i32_0, %c0_i32_1 : i32, i32, i32
  }
  func.func @transform_13(%arg0: i32) -> (i32, i32, i32) {
    %c0_i32 = arith.constant 0 : i32
    %c0_i32_0 = arith.constant 0 : i32
    %c0_i32_1 = arith.constant 0 : i32
    %c0_i32_2 = arith.constant 0 : i32
    return %c0_i32, %c0_i32_0, %c0_i32_1 : i32, i32, i32
  }
  func.func @transform_14(%arg0: i32) -> (i32, i32, i32) {
    %c0_i32 = arith.constant 0 : i32
    %c0_i32_0 = arith.constant 0 : i32
    %c0_i32_1 = arith.constant 0 : i32
    %c0_i32_2 = arith.constant 0 : i32
    return %c0_i32, %c0_i32_0, %c0_i32_1 : i32, i32, i32
  }
  func.func @transform_15(%arg0: i32) -> (i32, i32, i32) {
    %c0_i32 = arith.constant 0 : i32
    %c0_i32_0 = arith.constant 0 : i32
    %c0_i32_1 = arith.constant 0 : i32
    %c0_i32_2 = arith.constant 0 : i32
    return %c0_i32, %c0_i32_0, %c0_i32_1 : i32, i32, i32
  }
  func.func @transform_16(%arg0: i32) -> (i32, i32, i32) {
    %c0_i32 = arith.constant 0 : i32
    %c0_i32_0 = arith.constant 0 : i32
    %c0_i32_1 = arith.constant 0 : i32
    %c0_i32_2 = arith.constant 0 : i32
    return %c0_i32, %c0_i32_0, %c0_i32_1 : i32, i32, i32
  }
  func.func @transform_17(%arg0: i32) -> (i32, i32) {
    %c0_i32 = arith.constant 0 : i32
    %c0_i32_0 = arith.constant 0 : i32
    %c0_i32_1 = arith.constant 0 : i32
    return %c0_i32, %c0_i32_0 : i32, i32
  }
  func.func @transform_18(%arg0: i32) -> (i32, i32) {
    %c0_i32 = arith.constant 0 : i32
    %c0_i32_0 = arith.constant 0 : i32
    %c0_i32_1 = arith.constant 0 : i32
    return %c0_i32, %c0_i32_0 : i32, i32
  }
  func.func @transform_19(%arg0: i32) -> (i32, i32) {
    %c0_i32 = arith.constant 0 : i32
    %c0_i32_0 = arith.constant 0 : i32
    %c0_i32_1 = arith.constant 0 : i32
    return %c0_i32, %c0_i32_0 : i32, i32
  }
  func.func @transform_20(%arg0: i32) -> (i32, i32) {
    %c0_i32 = arith.constant 0 : i32
    %c0_i32_0 = arith.constant 0 : i32
    %c0_i32_1 = arith.constant 0 : i32
    return %c0_i32, %c0_i32_0 : i32, i32
  }
  func.func @transform_21(%arg0: i32) -> (i32, i32, i32) {
    %c0_i32 = arith.constant 0 : i32
    %c0_i32_0 = arith.constant 0 : i32
    %c0_i32_1 = arith.constant 0 : i32
    return %arg0, %c0_i32, %c0_i32_0 : i32, i32, i32
  }
}

</mosaic_0001>

<llo_original>
// kernel: tpu_custom_call.1
$region0: #{tpu_custom_call.1}
  #allocation0 [shape = 'u32[]', space=smem, size = 0x4, offset = 0x4, fixed_abs, tag = 'smem constant byte address 0x4 - core index']
  #allocation1 [shape = 'u32[144,128]{1,0:T(1,128)}', space=vmem, size = 0x12000, scoped, tag = 'internal scratch']
  %s0 = inlined_call_operand.vmem [shape: f32[2,8,32], index: 0, kind: input, shape index: {}]
  %s1 = inlined_call_operand.hbm [shape: f32[8,32], index: 1, kind: input, shape index: {}]
  %s2 = inlined_call_operand.hbm [shape: f32[2,1,8], index: 2, kind: input, shape index: {}]
  %s3 = inlined_call_operand.vmem [shape: f32[1,32], index: 3, kind: input, shape index: {}]
  %s4 = inlined_call_operand.hbm [shape: f32[1,32], index: 4, kind: input, shape index: {}]
  %s5 = inlined_call_operand.vmem [shape: bf16[2,32,96], index: 5, kind: input, shape index: {}]
  %s6 = inlined_call_operand.hbm [shape: f32[2,1,96], index: 6, kind: input, shape index: {}]
  %s7 = inlined_call_operand.vmem [shape: bf16[2,32,32], index: 7, kind: input, shape index: {}]
  %s8 = inlined_call_operand.hbm [shape: f32[2,1,32], index: 8, kind: input, shape index: {}]
  %s9 = inlined_call_operand.hbm [shape: f32[2,1,32], index: 9, kind: input, shape index: {}]
  %s10 = inlined_call_operand.hbm [shape: f32[2,1,32], index: 10, kind: input, shape index: {}]
  %s11 = inlined_call_operand.vmem [shape: bf16[2,32,64], index: 11, kind: input, shape index: {}]
  %s12 = inlined_call_operand.hbm [shape: f32[2,1,64], index: 12, kind: input, shape index: {}]
  %s13 = inlined_call_operand.vmem [shape: bf16[2,64,32], index: 13, kind: input, shape index: {}]
  %s14 = inlined_call_operand.vmem [shape: f32[2,1,32], index: 14, kind: input, shape index: {}]
  %s15 = inlined_call_operand.vmem [shape: f32[2,1,32], index: 15, kind: input, shape index: {}]
  %s16 = inlined_call_operand.vmem [shape: f32[2,1,32], index: 16, kind: input, shape index: {}]
  %s17 = inlined_call_operand.vmem [shape: bf16[32,32], index: 17, kind: input, shape index: {}]
  %s18 = inlined_call_operand.vmem [shape: f32[1,32], index: 18, kind: input, shape index: {}]
  %s19 = inlined_call_operand.vmem [shape: bf16[32,5], index: 19, kind: input, shape index: {}]
  %s20 = inlined_call_operand.vmem [shape: f32[1,5], index: 20, kind: input, shape index: {}]
  %s21 = inlined_call_operand.hbm [shape: f32[2,1,5], index: 21, kind: output, shape index: {}]
  %s22 = sld [smem:[#allocation0]]
  $region149: #{tpu_custom_call.1} parent=0
    _
  %s24 = ssub.s32 1, %s22
  %s25 = scalar_select 0, %s24, %s22
  $region1: #{tpu_custom_call.1} parent=0
    #allocation2 [shape = 'u8[4096]{0}', space=vmem, size = 0x1000, scoped, tag = 'input window, operand 1, single buffered']
    #allocation3 [shape = 's32[2]{0}', space=sflag, size = 0x8, scoped, tag = 'scoped memory for tpu_custom_call.1']
    #allocation4 [shape = 's32[2]{0}', space=sflag, size = 0x8, scoped, tag = 'scoped memory for tpu_custom_call.1']
    #allocation5 [shape = 'u8[1024]{0}', space=vmem, size = 0x400, scoped, tag = 'input window, operand 2']
    #allocation6 [shape = 's32[2]{0}', space=sflag, size = 0x8, scoped, tag = 'scoped memory for tpu_custom_call.1']
    #allocation7 [shape = 'u8[512]{0}', space=vmem, size = 0x400, scoped, tag = 'input window, operand 4, single buffered']
    #allocation8 [shape = 'u8[1024]{0}', space=vmem, size = 0x400, scoped, tag = 'input window, operand 6, single buffered']
    #allocation9 [shape = 's32[1]{0}', space=sflag, size = 0x4, scoped, tag = 'scoped memory for tpu_custom_call.1']
    #allocation10 [shape = 'u8[1024]{0}', space=vmem, size = 0x400, scoped, tag = 'input window, operand 8, single buffered']
    #allocation11 [shape = 'u8[1024]{0}', space=vmem, size = 0x400, scoped, tag = 'input window, operand 9, single buffered']
    #allocation12 [shape = 's32[1]{0}', space=sflag, size = 0x4, scoped, tag = 'scoped memory for tpu_custom_call.1']
    #allocation13 [shape = 'u8[1024]{0}', space=vmem, size = 0x400, scoped, tag = 'input window, operand 10, single buffered']
    #allocation14 [shape = 'u8[1024]{0}', space=vmem, size = 0x400, scoped, tag = 'input window, operand 12, single buffered']
    #allocation15 [shape = 's32[1]{0}', space=sflag, size = 0x4, scoped, tag = 'scoped memory for tpu_custom_call.1']
    #allocation16 [shape = 'u8[1024]{0}', space=vmem, size = 0x400, scoped, tag = 'output window, operand 0']
    %26 = vsyncpa [#allocation3], 0
    %27 = vsyncpa [#allocation6], 0
    %s28 = scalar_lea.sflag [#allocation6], 1
    %29 = vsyncpa %s28, 0
    %30 = vsyncpa [#allocation9], 0
    %31 = vsyncpa [#allocation12], 0
    %32 = vsyncpa [#allocation15], 0
    %33 = vsyncpa [#allocation4], 0
    %s34 = scalar_lea.sflag [#allocation4], 1
    %35 = vsyncpa %s34, 0
    loop: start=0, step=1, limit=4
    $region2: #{tpu_custom_call.1} parent=1 // loop_pre_header
      _
    $region3: #{tpu_custom_call.1} parent=1 // loop_header
      %s37 = sphi 0, %s41
      %p38 = scmp.ge.s32.totalorder %s37, 4
      %s47 = sphi 0, %s49
      %s50 = sphi 0, %s47
      %s51 = sphi 0, %s50
      %s67 = sphi 0, %s51
      %s71 = sphi 0, %s71
      %s73 = sphi 0, %s71
      %s74 = sphi 0, %s73
      %s88 = sphi 0, %s74
      %s94 = sphi 0, %s96
      %s97 = sphi 0, %s94
      %s98 = sphi 0, %s97
      %s114 = sphi 0, %s98
      %s118 = sphi 0, %s118
      %s120 = sphi 0, %s118
      %s121 = sphi 0, %s120
      %s135 = sphi 0, %s121
      %s139 = sphi 0, %s139
      %s141 = sphi 0, %s139
      %s142 = sphi 0, %s141
      %s156 = sphi 0, %s142
      %s160 = sphi 0, %s160
      %s162 = sphi 0, %s160
      %s163 = sphi 0, %s162
      %s177 = sphi 0, %s163
      %s181 = sphi 0, %s181
      %s183 = sphi 0, %s181
      %s184 = sphi 0, %s183
      %s198 = sphi 0, %s184
      %s202 = sphi 0, %s202
      %s204 = sphi 0, %s202
      %s205 = sphi 0, %s204
      %s219 = sphi 0, %s205
      %s223 = sphi 0, %s223
      %s225 = sphi 0, %s223
      %s226 = sphi 0, %s225
      %s240 = sphi 0, %s226
      %s244 = sphi 0, %s244
      %s246 = sphi 0, %s244
      %s247 = sphi 0, %s246
      %s261 = sphi 0, %s247
      %s265 = sphi 0, %s265
      %s267 = sphi 0, %s265
      %s268 = sphi 0, %s267
      %s282 = sphi 0, %s268
      %s286 = sphi 0, %s286
      %s288 = sphi 0, %s286
      %s289 = sphi 0, %s288
      %s303 = sphi 0, %s289
      %s307 = sphi 0, %s307
      %s309 = sphi 0, %s307
      %s310 = sphi 0, %s309
      %s324 = sphi 0, %s310
      %s328 = sphi 0, %s328
      %s330 = sphi 0, %s328
      %s331 = sphi 0, %s330
      %s345 = sphi 0, %s331
      %s349 = sphi 0, %s349
      %s351 = sphi 0, %s349
      %s352 = sphi 0, %s351
      %s366 = sphi 0, %s352
      %s370 = sphi 0, %s370
      %s372 = sphi 0, %s370
      %s373 = sphi 0, %s372
      %s387 = sphi 0, %s373
      %s391 = sphi 0, %s391
      %s393 = sphi 0, %s391
      %s394 = sphi 0, %s393
      %s408 = sphi 0, %s394
      %s412 = sphi 0, %s412
      %s414 = sphi 0, %s412
      %s415 = sphi 0, %s414
      %s429 = sphi 0, %s415
      %s433 = sphi 0, %s433
      %s435 = sphi 0, %s433
      %s436 = sphi 0, %s435
      %s450 = sphi 0, %s436
      %s454 = sphi 0, %s454
      %s456 = sphi 0, %s454
      %s457 = sphi 0, %s456
      %s471 = sphi 0, %s457
      %s475 = sphi 0, %s475
      %s477 = sphi 0, %s475
      %s478 = sphi 0, %s477
      %s492 = sphi 0, %s478
      %s498 = sphi 0, %s500
      %s501 = sphi 0, %s498
      %s502 = sphi 0, %s501
      %s518 = sphi 0, %s502
    $region4: #{tpu_custom_call.1} parent=1 // loop_header_branch
      %40 = sbr.rel (%p38) target = $region8
    $region5: #{tpu_custom_call.1} parent=1 // loop_body
      %s42 = ssub.s32 %s37, 1
      %s43 = ssub.s32 %s37, 2
      %s44 = sadd.s32 %s37, 1
      %s45 = ssub.s32 %s37, %s44
      %p46 = scmp.eq.s32.totalorder %s45, 0
      %s48 = sadd.s32 %s47, 1
      %s49 = scalar_select %p46, %s47, %s48
      %p52 = pneg %p46
      %p53 = scmp.eq.s32.totalorder %s37, 1
      %p54 = por %p52, %p53
      %p55 = scmp.ne.s32.totalorder %s47, %s50
      %p56 = scmp.eq.s32.totalorder %s37, 0
      %p57 = por %p55, %p56
      %p58 = scmp.ne.s32.totalorder %s47, %s50
      %p59 = scmp.eq.s32.totalorder %s42, 1
      %p60 = por %p58, %p59
      %p61 = scmp.ne.s32.totalorder %s50, %s51
      %p62 = scmp.eq.s32.totalorder %s42, 0
      %p63 = por %p61, %p62
      %p64 = scmp.ne.s32.totalorder %s50, %s51
      %p65 = scmp.eq.s32.totalorder %s43, 1
      %p66 = por %p64, %p65
      %p68 = scmp.ne.s32.totalorder %s51, %s67
      %p69 = scmp.eq.s32.totalorder %s43, 0
      %p70 = por %p68, %p69
      %s72 = sadd.s32 %s71, 1
      %p75 = scmp.eq.s32.totalorder %s37, 1
      %p76 = scmp.ne.s32.totalorder %s71, %s73
      %p77 = scmp.eq.s32.totalorder %s37, 0
      %p78 = por %p76, %p77
      %p79 = scmp.ne.s32.totalorder %s71, %s73
      %p80 = scmp.eq.s32.totalorder %s42, 1
      %p81 = por %p79, %p80
      %p82 = scmp.ne.s32.totalorder %s73, %s74
      %p83 = scmp.eq.s32.totalorder %s42, 0
      %p84 = por %p82, %p83
      %p85 = scmp.ne.s32.totalorder %s73, %s74
      %p86 = scmp.eq.s32.totalorder %s43, 1
      %p87 = por %p85, %p86
      %p89 = scmp.ne.s32.totalorder %s74, %s88
      %p90 = scmp.eq.s32.totalorder %s43, 0
      %p91 = por %p89, %p90
      %s92 = ssub.s32 %s37, %s44
      %p93 = scmp.eq.s32.totalorder %s92, 0
      %s95 = sadd.s32 %s94, 1
      %s96 = scalar_select %p93, %s94, %s95
      %p99 = pneg %p93
      %p100 = scmp.eq.s32.totalorder %s37, 1
      %p101 = por %p99, %p100
      %p102 = scmp.ne.s32.totalorder %s94, %s97
      %p103 = scmp.eq.s32.totalorder %s37, 0
      %p104 = por %p102, %p103
      %p105 = scmp.ne.s32.totalorder %s94, %s97
      %p106 = scmp.eq.s32.totalorder %s42, 1
      %p107 = por %p105, %p106
      %p108 = scmp.ne.s32.totalorder %s97, %s98
      %p109 = scmp.eq.s32.totalorder %s42, 0
      %p110 = por %p108, %p109
      %p111 = scmp.ne.s32.totalorder %s97, %s98
      %p112 = scmp.eq.s32.totalorder %s43, 1
      %p113 = por %p111, %p112
      %p115 = scmp.ne.s32.totalorder %s98, %s114
      %p116 = scmp.eq.s32.totalorder %s43, 0
      %p117 = por %p115, %p116
      %s119 = sadd.s32 %s118, 1
      %p122 = scmp.eq.s32.totalorder %s37, 1
      %p123 = scmp.ne.s32.totalorder %s118, %s120
      %p124 = scmp.eq.s32.totalorder %s37, 0
      %p125 = por %p123, %p124
      %p126 = scmp.ne.s32.totalorder %s118, %s120
      %p127 = scmp.eq.s32.totalorder %s42, 1
      %p128 = por %p126, %p127
      %p129 = scmp.ne.s32.totalorder %s120, %s121
      %p130 = scmp.eq.s32.totalorder %s42, 0
      %p131 = por %p129, %p130
      %p132 = scmp.ne.s32.totalorder %s120, %s121
      %p133 = scmp.eq.s32.totalorder %s43, 1
      %p134 = por %p132, %p133
      %p136 = scmp.ne.s32.totalorder %s121, %s135
      %p137 = scmp.eq.s32.totalorder %s43, 0
      %p138 = por %p136, %p137
      %s140 = sadd.s32 %s139, 1
      %p143 = scmp.eq.s32.totalorder %s37, 1
      %p144 = scmp.ne.s32.totalorder %s139, %s141
      %p145 = scmp.eq.s32.totalorder %s37, 0
      %p146 = por %p144, %p145
      %p147 = scmp.ne.s32.totalorder %s139, %s141
      %p148 = scmp.eq.s32.totalorder %s42, 1
      %p149 = por %p147, %p148
      %p150 = scmp.ne.s32.totalorder %s141, %s142
      %p151 = scmp.eq.s32.totalorder %s42, 0
      %p152 = por %p150, %p151
      %p153 = scmp.ne.s32.totalorder %s141, %s142
      %p154 = scmp.eq.s32.totalorder %s43, 1
      %p155 = por %p153, %p154
      %p157 = scmp.ne.s32.totalorder %s142, %s156
      %p158 = scmp.eq.s32.totalorder %s43, 0
      %p159 = por %p157, %p158
      %s161 = sadd.s32 %s160, 1
      %p164 = scmp.eq.s32.totalorder %s37, 1
      %p165 = scmp.ne.s32.totalorder %s160, %s162
      %p166 = scmp.eq.s32.totalorder %s37, 0
      %p167 = por %p165, %p166
      %p168 = scmp.ne.s32.totalorder %s160, %s162
      %p169 = scmp.eq.s32.totalorder %s42, 1
      %p170 = por %p168, %p169
      %p171 = scmp.ne.s32.totalorder %s162, %s163
      %p172 = scmp.eq.s32.totalorder %s42, 0
      %p173 = por %p171, %p172
      %p174 = scmp.ne.s32.totalorder %s162, %s163
      %p175 = scmp.eq.s32.totalorder %s43, 1
      %p176 = por %p174, %p175
      %p178 = scmp.ne.s32.totalorder %s163, %s177
      %p179 = scmp.eq.s32.totalorder %s43, 0
      %p180 = por %p178, %p179
      %s182 = sadd.s32 %s181, 1
      %p185 = scmp.eq.s32.totalorder %s37, 1
      %p186 = scmp.ne.s32.totalorder %s181, %s183
      %p187 = scmp.eq.s32.totalorder %s37, 0
      %p188 = por %p186, %p187
      %p189 = scmp.ne.s32.totalorder %s181, %s183
      %p190 = scmp.eq.s32.totalorder %s42, 1
      %p191 = por %p189, %p190
      %p192 = scmp.ne.s32.totalorder %s183, %s184
      %p193 = scmp.eq.s32.totalorder %s42, 0
      %p194 = por %p192, %p193
      %p195 = scmp.ne.s32.totalorder %s183, %s184
      %p196 = scmp.eq.s32.totalorder %s43, 1
      %p197 = por %p195, %p196
      %p199 = scmp.ne.s32.totalorder %s184, %s198
      %p200 = scmp.eq.s32.totalorder %s43, 0
      %p201 = por %p199, %p200
      %s203 = sadd.s32 %s202, 1
      %p206 = scmp.eq.s32.totalorder %s37, 1
      %p207 = scmp.ne.s32.totalorder %s202, %s204
      %p208 = scmp.eq.s32.totalorder %s37, 0
      %p209 = por %p207, %p208
      %p210 = scmp.ne.s32.totalorder %s202, %s204
      %p211 = scmp.eq.s32.totalorder %s42, 1
      %p212 = por %p210, %p211
      %p213 = scmp.ne.s32.totalorder %s204, %s205
      %p214 = scmp.eq.s32.totalorder %s42, 0
      %p215 = por %p213, %p214
      %p216 = scmp.ne.s32.totalorder %s204, %s205
      %p217 = scmp.eq.s32.totalorder %s43, 1
      %p218 = por %p216, %p217
      %p220 = scmp.ne.s32.totalorder %s205, %s219
      %p221 = scmp.eq.s32.totalorder %s43, 0
      %p222 = por %p220, %p221
      %s224 = sadd.s32 %s223, 1
      %p227 = scmp.eq.s32.totalorder %s37, 1
      %p228 = scmp.ne.s32.totalorder %s223, %s225
      %p229 = scmp.eq.s32.totalorder %s37, 0
      %p230 = por %p228, %p229
      %p231 = scmp.ne.s32.totalorder %s223, %s225
      %p232 = scmp.eq.s32.totalorder %s42, 1
      %p233 = por %p231, %p232
      %p234 = scmp.ne.s32.totalorder %s225, %s226
      %p235 = scmp.eq.s32.totalorder %s42, 0
      %p236 = por %p234, %p235
      %p237 = scmp.ne.s32.totalorder %s225, %s226
      %p238 = scmp.eq.s32.totalorder %s43, 1
      %p239 = por %p237, %p238
      %p241 = scmp.ne.s32.totalorder %s226, %s240
      %p242 = scmp.eq.s32.totalorder %s43, 0
      %p243 = por %p241, %p242
      %s245 = sadd.s32 %s244, 1
      %p248 = scmp.eq.s32.totalorder %s37, 1
      %p249 = scmp.ne.s32.totalorder %s244, %s246
      %p250 = scmp.eq.s32.totalorder %s37, 0
      %p251 = por %p249, %p250
      %p252 = scmp.ne.s32.totalorder %s244, %s246
      %p253 = scmp.eq.s32.totalorder %s42, 1
      %p254 = por %p252, %p253
      %p255 = scmp.ne.s32.totalorder %s246, %s247
      %p256 = scmp.eq.s32.totalorder %s42, 0
      %p257 = por %p255, %p256
      %p258 = scmp.ne.s32.totalorder %s246, %s247
      %p259 = scmp.eq.s32.totalorder %s43, 1
      %p260 = por %p258, %p259
      %p262 = scmp.ne.s32.totalorder %s247, %s261
      %p263 = scmp.eq.s32.totalorder %s43, 0
      %p264 = por %p262, %p263
      %s266 = sadd.s32 %s265, 1
      %p269 = scmp.eq.s32.totalorder %s37, 1
      %p270 = scmp.ne.s32.totalorder %s265, %s267
      %p271 = scmp.eq.s32.totalorder %s37, 0
      %p272 = por %p270, %p271
      %p273 = scmp.ne.s32.totalorder %s265, %s267
      %p274 = scmp.eq.s32.totalorder %s42, 1
      %p275 = por %p273, %p274
      %p276 = scmp.ne.s32.totalorder %s267, %s268
      %p277 = scmp.eq.s32.totalorder %s42, 0
      %p278 = por %p276, %p277
      %p279 = scmp.ne.s32.totalorder %s267, %s268
      %p280 = scmp.eq.s32.totalorder %s43, 1
      %p281 = por %p279, %p280
      %p283 = scmp.ne.s32.totalorder %s268, %s282
      %p284 = scmp.eq.s32.totalorder %s43, 0
      %p285 = por %p283, %p284
      %s287 = sadd.s32 %s286, 1
      %p290 = scmp.eq.s32.totalorder %s37, 1
      %p291 = scmp.ne.s32.totalorder %s286, %s288
      %p292 = scmp.eq.s32.totalorder %s37, 0
      %p293 = por %p291, %p292
      %p294 = scmp.ne.s32.totalorder %s286, %s288
      %p295 = scmp.eq.s32.totalorder %s42, 1
      %p296 = por %p294, %p295
      %p297 = scmp.ne.s32.totalorder %s288, %s289
      %p298 = scmp.eq.s32.totalorder %s42, 0
      %p299 = por %p297, %p298
      %p300 = scmp.ne.s32.totalorder %s288, %s289
      %p301 = scmp.eq.s32.totalorder %s43, 1
      %p302 = por %p300, %p301
      %p304 = scmp.ne.s32.totalorder %s289, %s303
      %p305 = scmp.eq.s32.totalorder %s43, 0
      %p306 = por %p304, %p305
      %s308 = sadd.s32 %s307, 1
      %p311 = scmp.eq.s32.totalorder %s37, 1
      %p312 = scmp.ne.s32.totalorder %s307, %s309
      %p313 = scmp.eq.s32.totalorder %s37, 0
      %p314 = por %p312, %p313
      %p315 = scmp.ne.s32.totalorder %s307, %s309
      %p316 = scmp.eq.s32.totalorder %s42, 1
      %p317 = por %p315, %p316
      %p318 = scmp.ne.s32.totalorder %s309, %s310
      %p319 = scmp.eq.s32.totalorder %s42, 0
      %p320 = por %p318, %p319
      %p321 = scmp.ne.s32.totalorder %s309, %s310
      %p322 = scmp.eq.s32.totalorder %s43, 1
      %p323 = por %p321, %p322
      %p325 = scmp.ne.s32.totalorder %s310, %s324
      %p326 = scmp.eq.s32.totalorder %s43, 0
      %p327 = por %p325, %p326
      %s329 = sadd.s32 %s328, 1
      %p332 = scmp.eq.s32.totalorder %s37, 1
      %p333 = scmp.ne.s32.totalorder %s328, %s330
      %p334 = scmp.eq.s32.totalorder %s37, 0
      %p335 = por %p333, %p334
      %p336 = scmp.ne.s32.totalorder %s328, %s330
      %p337 = scmp.eq.s32.totalorder %s42, 1
      %p338 = por %p336, %p337
      %p339 = scmp.ne.s32.totalorder %s330, %s331
      %p340 = scmp.eq.s32.totalorder %s42, 0
      %p341 = por %p339, %p340
      %p342 = scmp.ne.s32.totalorder %s330, %s331
      %p343 = scmp.eq.s32.totalorder %s43, 1
      %p344 = por %p342, %p343
      %p346 = scmp.ne.s32.totalorder %s331, %s345
      %p347 = scmp.eq.s32.totalorder %s43, 0
      %p348 = por %p346, %p347
      %s350 = sadd.s32 %s349, 1
      %p353 = scmp.eq.s32.totalorder %s37, 1
      %p354 = scmp.ne.s32.totalorder %s349, %s351
      %p355 = scmp.eq.s32.totalorder %s37, 0
      %p356 = por %p354, %p355
      %p357 = scmp.ne.s32.totalorder %s349, %s351
      %p358 = scmp.eq.s32.totalorder %s42, 1
      %p359 = por %p357, %p358
      %p360 = scmp.ne.s32.totalorder %s351, %s352
      %p361 = scmp.eq.s32.totalorder %s42, 0
      %p362 = por %p360, %p361
      %p363 = scmp.ne.s32.totalorder %s351, %s352
      %p364 = scmp.eq.s32.totalorder %s43, 1
      %p365 = por %p363, %p364
      %p367 = scmp.ne.s32.totalorder %s352, %s366
      %p368 = scmp.eq.s32.totalorder %s43, 0
      %p369 = por %p367, %p368
      %s371 = sadd.s32 %s370, 1
      %p374 = scmp.eq.s32.totalorder %s37, 1
      %p375 = scmp.ne.s32.totalorder %s370, %s372
      %p376 = scmp.eq.s32.totalorder %s37, 0
      %p377 = por %p375, %p376
      %p378 = scmp.ne.s32.totalorder %s370, %s372
      %p379 = scmp.eq.s32.totalorder %s42, 1
      %p380 = por %p378, %p379
      %p381 = scmp.ne.s32.totalorder %s372, %s373
      %p382 = scmp.eq.s32.totalorder %s42, 0
      %p383 = por %p381, %p382
      %p384 = scmp.ne.s32.totalorder %s372, %s373
      %p385 = scmp.eq.s32.totalorder %s43, 1
      %p386 = por %p384, %p385
      %p388 = scmp.ne.s32.totalorder %s373, %s387
      %p389 = scmp.eq.s32.totalorder %s43, 0
      %p390 = por %p388, %p389
      %s392 = sadd.s32 %s391, 1
      %p395 = scmp.eq.s32.totalorder %s37, 1
      %p396 = scmp.ne.s32.totalorder %s391, %s393
      %p397 = scmp.eq.s32.totalorder %s37, 0
      %p398 = por %p396, %p397
      %p399 = scmp.ne.s32.totalorder %s391, %s393
      %p400 = scmp.eq.s32.totalorder %s42, 1
      %p401 = por %p399, %p400
      %p402 = scmp.ne.s32.totalorder %s393, %s394
      %p403 = scmp.eq.s32.totalorder %s42, 0
      %p404 = por %p402, %p403
      %p405 = scmp.ne.s32.totalorder %s393, %s394
      %p406 = scmp.eq.s32.totalorder %s43, 1
      %p407 = por %p405, %p406
      %p409 = scmp.ne.s32.totalorder %s394, %s408
      %p410 = scmp.eq.s32.totalorder %s43, 0
      %p411 = por %p409, %p410
      %s413 = sadd.s32 %s412, 1
      %p416 = scmp.eq.s32.totalorder %s37, 1
      %p417 = scmp.ne.s32.totalorder %s412, %s414
      %p418 = scmp.eq.s32.totalorder %s37, 0
      %p419 = por %p417, %p418
      %p420 = scmp.ne.s32.totalorder %s412, %s414
      %p421 = scmp.eq.s32.totalorder %s42, 1
      %p422 = por %p420, %p421
      %p423 = scmp.ne.s32.totalorder %s414, %s415
      %p424 = scmp.eq.s32.totalorder %s42, 0
      %p425 = por %p423, %p424
      %p426 = scmp.ne.s32.totalorder %s414, %s415
      %p427 = scmp.eq.s32.totalorder %s43, 1
      %p428 = por %p426, %p427
      %p430 = scmp.ne.s32.totalorder %s415, %s429
      %p431 = scmp.eq.s32.totalorder %s43, 0
      %p432 = por %p430, %p431
      %s434 = sadd.s32 %s433, 1
      %p437 = scmp.eq.s32.totalorder %s37, 1
      %p438 = scmp.ne.s32.totalorder %s433, %s435
      %p439 = scmp.eq.s32.totalorder %s37, 0
      %p440 = por %p438, %p439
      %p441 = scmp.ne.s32.totalorder %s433, %s435
      %p442 = scmp.eq.s32.totalorder %s42, 1
      %p443 = por %p441, %p442
      %p444 = scmp.ne.s32.totalorder %s435, %s436
      %p445 = scmp.eq.s32.totalorder %s42, 0
      %p446 = por %p444, %p445
      %p447 = scmp.ne.s32.totalorder %s435, %s436
      %p448 = scmp.eq.s32.totalorder %s43, 1
      %p449 = por %p447, %p448
      %p451 = scmp.ne.s32.totalorder %s436, %s450
      %p452 = scmp.eq.s32.totalorder %s43, 0
      %p453 = por %p451, %p452
      %s455 = sadd.s32 %s454, 1
      %p458 = scmp.eq.s32.totalorder %s37, 1
      %p459 = scmp.ne.s32.totalorder %s454, %s456
      %p460 = scmp.eq.s32.totalorder %s37, 0
      %p461 = por %p459, %p460
      %p462 = scmp.ne.s32.totalorder %s454, %s456
      %p463 = scmp.eq.s32.totalorder %s42, 1
      %p464 = por %p462, %p463
      %p465 = scmp.ne.s32.totalorder %s456, %s457
      %p466 = scmp.eq.s32.totalorder %s42, 0
      %p467 = por %p465, %p466
      %p468 = scmp.ne.s32.totalorder %s456, %s457
      %p469 = scmp.eq.s32.totalorder %s43, 1
      %p470 = por %p468, %p469
      %p472 = scmp.ne.s32.totalorder %s457, %s471
      %p473 = scmp.eq.s32.totalorder %s43, 0
      %p474 = por %p472, %p473
      %s476 = sadd.s32 %s475, 1
      %p479 = scmp.eq.s32.totalorder %s37, 1
      %p480 = scmp.ne.s32.totalorder %s475, %s477
      %p481 = scmp.eq.s32.totalorder %s37, 0
      %p482 = por %p480, %p481
      %p483 = scmp.ne.s32.totalorder %s475, %s477
      %p484 = scmp.eq.s32.totalorder %s42, 1
      %p485 = por %p483, %p484
      %p486 = scmp.ne.s32.totalorder %s477, %s478
      %p487 = scmp.eq.s32.totalorder %s42, 0
      %p488 = por %p486, %p487
      %p489 = scmp.ne.s32.totalorder %s477, %s478
      %p490 = scmp.eq.s32.totalorder %s43, 1
      %p491 = por %p489, %p490
      %p493 = scmp.ne.s32.totalorder %s478, %s492
      %p494 = scmp.eq.s32.totalorder %s43, 0
      %p495 = por %p493, %p494
      %s496 = ssub.s32 %s37, %s44
      %p497 = scmp.eq.s32.totalorder %s496, 0
      %s499 = sadd.s32 %s498, 1
      %s500 = scalar_select %p497, %s498, %s499
      %p503 = pneg %p497
      %p504 = scmp.eq.s32.totalorder %s37, 1
      %p505 = por %p503, %p504
      %p506 = scmp.ne.s32.totalorder %s498, %s501
      %p507 = scmp.eq.s32.totalorder %s37, 0
      %p508 = por %p506, %p507
      %p509 = scmp.ne.s32.totalorder %s498, %s501
      %p510 = scmp.eq.s32.totalorder %s42, 1
      %p511 = por %p509, %p510
      %p512 = scmp.ne.s32.totalorder %s501, %s502
      %p513 = scmp.eq.s32.totalorder %s42, 0
      %p514 = por %p512, %p513
      %p515 = scmp.ne.s32.totalorder %s501, %s502
      %p516 = scmp.eq.s32.totalorder %s43, 1
      %p517 = por %p515, %p516
      %p519 = scmp.ne.s32.totalorder %s502, %s518
      %p520 = scmp.eq.s32.totalorder %s43, 0
      %p521 = por %p519, %p520
      %p522 = scmp.le.s32.totalorder 1, %s37
      %p523 = scmp.lt.s32.totalorder %s37, 3
      %p524 = pnand %p522, %p523
      %p525 = pneg %p524
      // Predicated region
      $region9: #{tpu_custom_call.1} parent=5 // pred_check
        _
      $region10: #{tpu_custom_call.1} parent=5 // pred_check_branch
        %527 = sbr.rel (%p524) target = $region12
      $region11: #{tpu_custom_call.1} parent=5 // pred_region
        %s528 = ssub.s32 %s37, 1
        // Predicated region
        $region13: #{tpu_custom_call.1} parent=11 // pred_check
          %p529 = pneg %p84
        $region14: #{tpu_custom_call.1} parent=11 // pred_check_branch
          %531 = sbr.rel (%p529) target = $region16
        $region15: #{tpu_custom_call.1} parent=11 // pred_region
          %s533 = ssub.s32 128, 128
          %534 = vsyncadd [#allocation3], %s533
          %s536 = sshll.u32 [#allocation2], 4
          %s537 = int_to_ptr.vmem [resolvable:$true] %s536
          %539 = dma.hbm_to_vmem [thread:$0]  %s1, 128, %s537, [#allocation3]
        $region16: #{tpu_custom_call.1} parent=11 // pred_fallthru
          _
        // Predicated region
        $region17: #{tpu_custom_call.1} parent=11 // pred_check
          %p540 = pneg %p131
        $region18: #{tpu_custom_call.1} parent=11 // pred_check_branch
          %542 = sbr.rel (%p540) target = $region20
        $region19: #{tpu_custom_call.1} parent=11 // pred_region
          _
        $region20: #{tpu_custom_call.1} parent=11 // pred_fallthru
          _
        // Predicated region
        $region21: #{tpu_custom_call.1} parent=11 // pred_check
          %p543 = pneg %p152
        $region22: #{tpu_custom_call.1} parent=11 // pred_check_branch
          %545 = sbr.rel (%p543) target = $region24
        $region23: #{tpu_custom_call.1} parent=11 // pred_region
          %s547 = ssub.s32 16, 16
          %548 = vsyncadd [#allocation6], %s547
          %s550 = sshll.u32 [#allocation7], 4
          %s551 = int_to_ptr.vmem [resolvable:$true] %s550
          %553 = dma.hbm_to_vmem [thread:$0]  %s4, 16, %s551, [#allocation6]
        $region24: #{tpu_custom_call.1} parent=11 // pred_fallthru
          _
        // Predicated region
        $region25: #{tpu_custom_call.1} parent=11 // pred_check
          %p554 = pneg %p173
        $region26: #{tpu_custom_call.1} parent=11 // pred_check_branch
          %556 = sbr.rel (%p554) target = $region28
        $region27: #{tpu_custom_call.1} parent=11 // pred_region
          _
        $region28: #{tpu_custom_call.1} parent=11 // pred_fallthru
          _
        // Predicated region
        $region29: #{tpu_custom_call.1} parent=11 // pred_check
          %p557 = pneg %p194
        $region30: #{tpu_custom_call.1} parent=11 // pred_check_branch
          %559 = sbr.rel (%p557) target = $region32
        $region31: #{tpu_custom_call.1} parent=11 // pred_region
          %s561 = ssub.s32 32, 32
          %562 = vsyncadd [#allocation9], %s561
          %s563 = sshll.u32 [#allocation8], 4
          %s564 = int_to_ptr.vmem [resolvable:$true] %s563
          %569 = dma.hbm_to_vmem [thread:$0]  %s6, 32, %s564, [#allocation9], 16, 16, 1
        $region32: #{tpu_custom_call.1} parent=11 // pred_fallthru
          _
        // Predicated region
        $region33: #{tpu_custom_call.1} parent=11 // pred_check
          %p570 = pneg %p215
        $region34: #{tpu_custom_call.1} parent=11 // pred_check_branch
          %572 = sbr.rel (%p570) target = $region36
        $region35: #{tpu_custom_call.1} parent=11 // pred_region
          _
        $region36: #{tpu_custom_call.1} parent=11 // pred_fallthru
          _
        // Predicated region
        $region37: #{tpu_custom_call.1} parent=11 // pred_check
          %p573 = pneg %p236
        $region38: #{tpu_custom_call.1} parent=11 // pred_check_branch
          %575 = sbr.rel (%p573) target = $region40
        $region39: #{tpu_custom_call.1} parent=11 // pred_region
          %s577 = ssub.s32 32, 32
          %578 = vsyncadd [#allocation9], %s577
          %s579 = sshll.u32 [#allocation10], 4
          %s580 = int_to_ptr.vmem [resolvable:$true] %s579
          %585 = dma.hbm_to_vmem [thread:$0]  %s8, 32, %s580, [#allocation9], 16, 16, 1
        $region40: #{tpu_custom_call.1} parent=11 // pred_fallthru
          _
        // Predicated region
        $region41: #{tpu_custom_call.1} parent=11 // pred_check
          %p586 = pneg %p257
        $region42: #{tpu_custom_call.1} parent=11 // pred_check_branch
          %588 = sbr.rel (%p586) target = $region44
        $region43: #{tpu_custom_call.1} parent=11 // pred_region
          %s590 = ssub.s32 32, 32
          %591 = vsyncadd [#allocation12], %s590
          %s592 = sshll.u32 [#allocation11], 4
          %s593 = int_to_ptr.vmem [resolvable:$true] %s592
          %598 = dma.hbm_to_vmem [thread:$0]  %s9, 32, %s593, [#allocation12], 16, 16, 1
        $region44: #{tpu_custom_call.1} parent=11 // pred_fallthru
          _
        // Predicated region
        $region45: #{tpu_custom_call.1} parent=11 // pred_check
          %p599 = pneg %p278
        $region46: #{tpu_custom_call.1} parent=11 // pred_check_branch
          %601 = sbr.rel (%p599) target = $region48
        $region47: #{tpu_custom_call.1} parent=11 // pred_region
          %s603 = ssub.s32 32, 32
          %604 = vsyncadd [#allocation12], %s603
          %s605 = sshll.u32 [#allocation13], 4
          %s606 = int_to_ptr.vmem [resolvable:$true] %s605
          %611 = dma.hbm_to_vmem [thread:$0]  %s10, 32, %s606, [#allocation12], 16, 16, 1
        $region48: #{tpu_custom_call.1} parent=11 // pred_fallthru
          _
        // Predicated region
        $region49: #{tpu_custom_call.1} parent=11 // pred_check
          %p612 = pneg %p299
        $region50: #{tpu_custom_call.1} parent=11 // pred_check_branch
          %614 = sbr.rel (%p612) target = $region52
        $region51: #{tpu_custom_call.1} parent=11 // pred_region
          _
        $region52: #{tpu_custom_call.1} parent=11 // pred_fallthru
          _
        // Predicated region
        $region53: #{tpu_custom_call.1} parent=11 // pred_check
          %p615 = pneg %p320
        $region54: #{tpu_custom_call.1} parent=11 // pred_check_branch
          %617 = sbr.rel (%p615) target = $region56
        $region55: #{tpu_custom_call.1} parent=11 // pred_region
          %s619 = ssub.s32 32, 32
          %620 = vsyncadd [#allocation15], %s619
          %s621 = sshll.u32 [#allocation14], 4
          %s622 = int_to_ptr.vmem [resolvable:$true] %s621
          %627 = dma.hbm_to_vmem [thread:$0]  %s12, 32, %s622, [#allocation15], 16, 16, 1
        $region56: #{tpu_custom_call.1} parent=11 // pred_fallthru
          _
        // Predicated region
        $region57: #{tpu_custom_call.1} parent=11 // pred_check
          %p628 = pneg %p341
        $region58: #{tpu_custom_call.1} parent=11 // pred_check_branch
          %630 = sbr.rel (%p628) target = $region60
        $region59: #{tpu_custom_call.1} parent=11 // pred_region
          _
        $region60: #{tpu_custom_call.1} parent=11 // pred_fallthru
          _
        // Predicated region
        $region61: #{tpu_custom_call.1} parent=11 // pred_check
          %p631 = pneg %p362
        $region62: #{tpu_custom_call.1} parent=11 // pred_check_branch
          %633 = sbr.rel (%p631) target = $region64
        $region63: #{tpu_custom_call.1} parent=11 // pred_region
          _
        $region64: #{tpu_custom_call.1} parent=11 // pred_fallthru
          _
        // Predicated region
        $region65: #{tpu_custom_call.1} parent=11 // pred_check
          %p634 = pneg %p383
        $region66: #{tpu_custom_call.1} parent=11 // pred_check_branch
          %636 = sbr.rel (%p634) target = $region68
        $region67: #{tpu_custom_call.1} parent=11 // pred_region
          _
        $region68: #{tpu_custom_call.1} parent=11 // pred_fallthru
          _
        // Predicated region
        $region69: #{tpu_custom_call.1} parent=11 // pred_check
          %p637 = pneg %p404
        $region70: #{tpu_custom_call.1} parent=11 // pred_check_branch
          %639 = sbr.rel (%p637) target = $region72
        $region71: #{tpu_custom_call.1} parent=11 // pred_region
          _
        $region72: #{tpu_custom_call.1} parent=11 // pred_fallthru
          _
        // Predicated region
        $region73: #{tpu_custom_call.1} parent=11 // pred_check
          %p640 = pneg %p425
        $region74: #{tpu_custom_call.1} parent=11 // pred_check_branch
          %642 = sbr.rel (%p640) target = $region76
        $region75: #{tpu_custom_call.1} parent=11 // pred_region
          _
        $region76: #{tpu_custom_call.1} parent=11 // pred_fallthru
          _
        // Predicated region
        $region77: #{tpu_custom_call.1} parent=11 // pred_check
          %p643 = pneg %p446
        $region78: #{tpu_custom_call.1} parent=11 // pred_check_branch
          %645 = sbr.rel (%p643) target = $region80
        $region79: #{tpu_custom_call.1} parent=11 // pred_region
          _
        $region80: #{tpu_custom_call.1} parent=11 // pred_fallthru
          _
        // Predicated region
        $region81: #{tpu_custom_call.1} parent=11 // pred_check
          %p646 = pneg %p467
        $region82: #{tpu_custom_call.1} parent=11 // pred_check_branch
          %648 = sbr.rel (%p646) target = $region84
        $region83: #{tpu_custom_call.1} parent=11 // pred_region
          _
        $region84: #{tpu_custom_call.1} parent=11 // pred_fallthru
          _
        // Predicated region
        $region85: #{tpu_custom_call.1} parent=11 // pred_check
          %p649 = pneg %p488
        $region86: #{tpu_custom_call.1} parent=11 // pred_check_branch
          %651 = sbr.rel (%p649) target = $region88
        $region87: #{tpu_custom_call.1} parent=11 // pred_region
          _
        $region88: #{tpu_custom_call.1} parent=11 // pred_fallthru
          _
      $region12: #{tpu_custom_call.1} parent=5 // pred_fallthru
        _
      %p652 = scmp.lt.s32.totalorder %s37, 2
      // Predicated region
      $region89: #{tpu_custom_call.1} parent=5 // pred_check
        %p653 = pneg %p652
      $region90: #{tpu_custom_call.1} parent=5 // pred_check_branch
        %655 = sbr.rel (%p653) target = $region92
      $region91: #{tpu_custom_call.1} parent=5 // pred_region
        // Predicated region
        $region93: #{tpu_custom_call.1} parent=91 // pred_check
          %p656 = pneg %p57
        $region94: #{tpu_custom_call.1} parent=91 // pred_check_branch
          %658 = sbr.rel (%p656) target = $region96
        $region95: #{tpu_custom_call.1} parent=91 // pred_region
          %p659 = scmp.lt.s32.totalorder %s37, 1
          %s660 = scalar_select %p659, %s37, 1
          %s661 = smul.addr %s660, 8
          %s662 = scalar_lea.vmem %s0, %s661
        $region96: #{tpu_custom_call.1} parent=91 // pred_fallthru
          _
        // Predicated region
        $region97: #{tpu_custom_call.1} parent=91 // pred_check
          %p663 = pneg %p104
        $region98: #{tpu_custom_call.1} parent=91 // pred_check_branch
          %665 = sbr.rel (%p663) target = $region100
        $region99: #{tpu_custom_call.1} parent=91 // pred_region
          %s666 = sand.u32 %s37, 1
          %s667 = scalar_lea.sflag [#allocation6], %s666
          %s668 = sand.u32 %s94, 1
          %s669 = scalar_lea.vmem [#allocation5], %s668
          %s671 = ssub.s32 16, 16
          %672 = vsyncadd %s667, %s671
          %s673 = smul.addr %s37, 16
          %s674 = scalar_lea.hbm %s2, %s673
          %s676 = sshll.u32 %s669, 4
          %s677 = int_to_ptr.vmem [resolvable:$true] %s676
          %679 = dma.hbm_to_vmem [thread:$0]  %s674, 16, %s677, %s667
        $region100: #{tpu_custom_call.1} parent=91 // pred_fallthru
          _
      $region92: #{tpu_custom_call.1} parent=5 // pred_fallthru
        _
      %p680 = scmp.le.s32.totalorder 1, %s37
      %p681 = scmp.lt.s32.totalorder %s37, 3
      %p682 = pnand %p680, %p681
      %p683 = pneg %p682
      // Predicated region
      $region101: #{tpu_custom_call.1} parent=5 // pred_check
        _
      $region102: #{tpu_custom_call.1} parent=5 // pred_check_branch
        %685 = sbr.rel (%p682) target = $region104
      $region103: #{tpu_custom_call.1} parent=5 // pred_region
        %s686 = ssub.s32 %s37, 1
        // Predicated region
        $region105: #{tpu_custom_call.1} parent=103 // pred_check
          %p687 = pneg %p84
        $region106: #{tpu_custom_call.1} parent=103 // pred_check_branch
          %689 = sbr.rel (%p687) target = $region108
        $region107: #{tpu_custom_call.1} parent=103 // pred_region
          %690 = dma.done [#allocation3], 128
        $region108: #{tpu_custom_call.1} parent=103 // pred_fallthru
          _
        %s691 = sand.u32 %s42, 1
        %s692 = scalar_lea.sflag [#allocation6], %s691
        %s693 = sand.u32 %s97, 1
        %s694 = scalar_lea.vmem [#allocation5], %s693
        // Predicated region
        $region109: #{tpu_custom_call.1} parent=103 // pred_check
          %p695 = pneg %p110
        $region110: #{tpu_custom_call.1} parent=103 // pred_check_branch
          %697 = sbr.rel (%p695) target = $region112
        $region111: #{tpu_custom_call.1} parent=103 // pred_region
          %698 = dma.done %s692, 16
        $region112: #{tpu_custom_call.1} parent=103 // pred_fallthru
          _
        // Predicated region
        $region113: #{tpu_custom_call.1} parent=103 // pred_check
          %p699 = pneg %p152
        $region114: #{tpu_custom_call.1} parent=103 // pred_check_branch
          %701 = sbr.rel (%p699) target = $region116
        $region115: #{tpu_custom_call.1} parent=103 // pred_region
          %702 = dma.done [#allocation6], 16
        $region116: #{tpu_custom_call.1} parent=103 // pred_fallthru
          _
        // Predicated region
        $region117: #{tpu_custom_call.1} parent=103 // pred_check
          %p703 = pneg %p194
        $region118: #{tpu_custom_call.1} parent=103 // pred_check_branch
          %705 = sbr.rel (%p703) target = $region120
        $region119: #{tpu_custom_call.1} parent=103 // pred_region
          %706 = dma.done [#allocation9], 32
        $region120: #{tpu_custom_call.1} parent=103 // pred_fallthru
          _
        // Predicated region
        $region121: #{tpu_custom_call.1} parent=103 // pred_check
          %p707 = pneg %p236
        $region122: #{tpu_custom_call.1} parent=103 // pred_check_branch
          %709 = sbr.rel (%p707) target = $region124
        $region123: #{tpu_custom_call.1} parent=103 // pred_region
          %710 = dma.done [#allocation9], 32
        $region124: #{tpu_custom_call.1} parent=103 // pred_fallthru
          _
        // Predicated region
        $region125: #{tpu_custom_call.1} parent=103 // pred_check
          %p711 = pneg %p257
        $region126: #{tpu_custom_call.1} parent=103 // pred_check_branch
          %713 = sbr.rel (%p711) target = $region128
        $region127: #{tpu_custom_call.1} parent=103 // pred_region
          %714 = dma.done [#allocation12], 32
        $region128: #{tpu_custom_call.1} parent=103 // pred_fallthru
          _
        // Predicated region
        $region129: #{tpu_custom_call.1} parent=103 // pred_check
          %p715 = pneg %p278
        $region130: #{tpu_custom_call.1} parent=103 // pred_check_branch
          %717 = sbr.rel (%p715) target = $region132
        $region131: #{tpu_custom_call.1} parent=103 // pred_region
          %718 = dma.done [#allocation12], 32
        $region132: #{tpu_custom_call.1} parent=103 // pred_fallthru
          _
        // Predicated region
        $region133: #{tpu_custom_call.1} parent=103 // pred_check
          %p719 = pneg %p320
        $region134: #{tpu_custom_call.1} parent=103 // pred_check_branch
          %721 = sbr.rel (%p719) target = $region136
        $region135: #{tpu_custom_call.1} parent=103 // pred_region
          %722 = dma.done [#allocation15], 32
        $region136: #{tpu_custom_call.1} parent=103 // pred_fallthru
          _
        %p723 = scmp.lt.s32.totalorder %s42, 1
        %s724 = scalar_select %p723, %s42, 1
        %s725 = smul.addr %s724, 8
        %s726 = scalar_lea.vmem %s0, %s725
        %p727 = pneg %p63
        %p728 = pneg %p60
        %p729 = pneg %p84
        %p730 = pneg %p81
        %s731 = sand.u32 %s42, 1
        %s732 = scalar_lea.sflag [#allocation6], %s731
        %s733 = sand.u32 %s97, 1
        %s734 = scalar_lea.vmem [#allocation5], %s733
        %p735 = pneg %p110
        %p736 = pneg %p107
        %p737 = pneg %p131
        %p738 = pneg %p128
        %p739 = pneg %p152
        %p740 = pneg %p149
        %p741 = pneg %p173
        %p742 = pneg %p170
        %p743 = pneg %p194
        %p744 = pneg %p191
        %p745 = pneg %p215
        %p746 = pneg %p212
        %p747 = pneg %p236
        %p748 = pneg %p233
        %p749 = pneg %p257
        %p750 = pneg %p254
        %p751 = pneg %p278
        %p752 = pneg %p275
        %p753 = pneg %p299
        %p754 = pneg %p296
        %p755 = pneg %p320
        %p756 = pneg %p317
        %p757 = pneg %p341
        %p758 = pneg %p338
        %p759 = pneg %p362
        %p760 = pneg %p359
        %p761 = pneg %p383
        %p762 = pneg %p380
        %p763 = pneg %p404
        %p764 = pneg %p401
        %p765 = pneg %p425
        %p766 = pneg %p422
        %p767 = pneg %p446
        %p768 = pneg %p443
        %p769 = pneg %p467
        %p770 = pneg %p464
        %p771 = pneg %p488
        %p772 = pneg %p485
        %p773 = pneg %p514
        %p774 = pneg %p511
        %s775 = sand.u32 %s501, 1
        %s776 = scalar_lea.sflag [#allocation4], %s775
        %s777 = sand.u32 %s501, 1
        %s778 = scalar_lea.vmem [#allocation16], %s777
        %p779 = scmp.lt.s32.totalorder %s42, 1
        %s780 = scalar_select %p779, %s42, 1
        %s781 = smul.addr %s780, 8
        %s782 = scalar_lea.vmem %s0, %s781
        %v784 = vld [vmem:[%s782] sm:$0xff]
        %v785 = vld [vmem:[#allocation2] sm:$0xff]
        %v786 = vadd.f32 %v784, %v785
        %v787 = vld [vmem:[%s3] sm:$0x1]
        %v788 = vld [vmem:[#allocation7] sm:$0x1]
        %vm789 = vcmask 261120
        %v790 = vsel %vm789, %v786, 0.0
        %791 = vadd.xlane.f32.xlu0 %v790
        %v792 = vpop.xlane.xlu0 %791
        %v793 = vrcp.pop 32.0
        %v794 = vmul.f32 %v792, %v793
        %v795 = vsub.f32 %v786, %v794
        %v796 = vmul.f32 %v795, %v795
        %v797 = vsel %vm789, %v796, 0.0
        %798 = vadd.xlane.f32.xlu0 %v797
        %v799 = vpop.xlane.xlu0 %798
        %v800 = vmul.f32 %v799, %v793
        %v801 = vadd.f32 %v800, 1e-12
        %v802 = vrsqrt.pop %v801
        %v804 = vlaneseq
        %v805 = vshrl.u32 %v804, 7
        %v806 = vsub.s32 0, %v805
        %v807 = vrot.slane %v787, %v806
        %v809 = vmul.f32 %v802, %v807
        %v810 = vmul.f32 %v795, %v809
        %v812 = vlaneseq
        %v813 = vshrl.u32 %v812, 7
        %v814 = vsub.s32 0, %v813
        %v815 = vrot.slane %v788, %v814
        %v817 = vadd.f32 %v810, %v815
        %v818 = vld [vmem:[%s694] sm:$0x1]
        %v819 = vpack.c.bf16 %v817, %v817
        %v820 = vld [vmem:[%s5] sm:$0xf]
        %v821 = vld [vmem:[%s5 + $0x4] sm:$0xf]
        %v822 = vld [vmem:[%s5 + $0x8] sm:$0xf]
        %v823 = vld [vmem:[%s5 + $0xc] sm:$0xf]
        %v824 = vld [vmem:[#allocation8] sm:$0x1]
        %v826 = vlaneseq
        %v827 = vshrl.u32 %v826, 7
        %v828 = vsub.s32 0, %v827
        %v829 = vrot.slane %v824, %v828
        %v835 = vunpack.c.l.b16 %v820
        %v836 = vunpack.c.l.b16 %v821
        %v837 = vunpack.c.l.b16 %v822
        %v838 = vunpack.c.l.b16 %v823
        %v839 = vpack.c.b16 %v836, %v835
        %v840 = vpack.c.b16 %v838, %v837
        %v844 = vsel %vm789, %v819, 0
        %846 = vmatprep.subr.bf16.mxu0 0
        %847 = vmatpush1.bf16.msra.mxu0 %v839
        %848 = vmatprep.subr.bf16.mxu0 0
        %849 = vmatpush1.bf16.msra.mxu0 %v840
        %850 = vmatprep.subr.bf16.mxu0 0
        %851 = vmatpush1.bf16.msra.mxu0 0
        %852 = vmatprep.subr.bf16.mxu0 0
        %853 = vmatpush1.bf16.msra.mxu0 0
        %854 = vmatprep.subr.bf16.mxu0 0
        %855 = vmatpush1.bf16.msra.mxu0 0
        %856 = vmatprep.subr.bf16.mxu0 0
        %857 = vmatpush1.bf16.msra.mxu0 0
        %858 = vmatprep.subr.bf16.mxu0 0
        %859 = vmatpush1.bf16.msra.mxu0 0
        %860 = vmatprep.subr.bf16.mxu0 0
        %861 = vmatpush1.bf16.msra.mxu0 0
        %862 = vmatprep.subr.bf16.mxu0 0
        %863 = vmatpush1.bf16.msra.mxu0 0
        %864 = vmatprep.subr.bf16.mxu0 0
        %865 = vmatpush1.bf16.msra.mxu0 0
        %866 = vmatprep.subr.bf16.mxu0 0
        %867 = vmatpush1.bf16.msra.mxu0 0
        %868 = vmatprep.subr.bf16.mxu0 0
        %869 = vmatpush1.bf16.msra.mxu0 0
        %870 = vmatprep.subr.bf16.mxu0 0
        %871 = vmatpush1.bf16.msra.mxu0 0
        %872 = vmatprep.subr.bf16.mxu0 0
        %873 = vmatpush1.bf16.msra.mxu0 0
        %874 = vmatprep.subr.bf16.mxu0 0
        %875 = vmatpush1.bf16.msra.mxu0 0
        %876 = vmatprep.subr.bf16.mxu0 0
        %877 = vmatpush1.bf16.msra.mxu0 0
        %878 = vmatprep.mubr.bf16.mxu0 0
        %879 = vmatmul.mubr.bf16.gmra.mrb[0].mxu0 %v844
        %v880 = vpop.f32.mrb[0].mxu0
        %v881 = vadd.f32 %v829, %v880
        %v882 = vpop.f32.mrb[0].mxu0
        %v883 = vpop.f32.mrb[0].mxu0
        %v884 = vpop.f32.mrb[0].mxu0
        %885 = vdwg.mxu0
        %v886 = vpack.c.bf16 %v881, %v881
        %888 = vrot.lane.b32.xlu0 %v886, 96
        %v889 = vpop.permute.xlu0 %888
        %vm890 = vcmask 64512
        %v892 = vsel %vm890, %v886, 0
        %v895 = vsel %vm890, %v889, 0
        %897 = vmatprep.subr.bf16.mxu0 0
        %898 = vmatpush1.bf16.xpose.msra.mxu0 %v895
        %899 = vmatprep.subr.bf16.mxu0 0
        %900 = vmatpush1.bf16.xpose.msra.mxu0 0
        %901 = vmatprep.subr.bf16.mxu0 0
        %902 = vmatpush1.bf16.xpose.msra.mxu0 0
        %903 = vmatprep.subr.bf16.mxu0 0
        %904 = vmatpush1.bf16.xpose.msra.mxu0 0
        %905 = vmatprep.subr.bf16.mxu0 0
        %906 = vmatpush1.bf16.xpose.msra.mxu0 0
        %907 = vmatprep.subr.bf16.mxu0 0
        %908 = vmatpush1.bf16.xpose.msra.mxu0 0
        %909 = vmatprep.subr.bf16.mxu0 0
        %910 = vmatpush1.bf16.xpose.msra.mxu0 0
        %911 = vmatprep.subr.bf16.mxu0 0
        %912 = vmatpush1.bf16.xpose.msra.mxu0 0
        %913 = vmatprep.subr.bf16.mxu0 0
        %914 = vmatpush1.bf16.xpose.msra.mxu0 0
        %915 = vmatprep.subr.bf16.mxu0 0
        %916 = vmatpush1.bf16.xpose.msra.mxu0 0
        %917 = vmatprep.subr.bf16.mxu0 0
        %918 = vmatpush1.bf16.xpose.msra.mxu0 0
        %919 = vmatprep.subr.bf16.mxu0 0
        %920 = vmatpush1.bf16.xpose.msra.mxu0 0
        %921 = vmatprep.subr.bf16.mxu0 0
        %922 = vmatpush1.bf16.xpose.msra.mxu0 0
        %923 = vmatprep.subr.bf16.mxu0 0
        %924 = vmatpush1.bf16.xpose.msra.mxu0 0
        %925 = vmatprep.subr.bf16.mxu0 0
        %926 = vmatpush1.bf16.xpose.msra.mxu0 0
        %927 = vmatprep.subr.bf16.mxu0 0
        %928 = vmatpush1.bf16.xpose.msra.mxu0 0
        %929 = vmatprep.mubr.bf16.mxu0 0
        %930 = vmatmul.mubr.bf16.gmra.mrb[0].mxu0 %v892
        %v931 = vpop.f32.mrb[0].mxu0
        %v932 = vadd.f32 0.0, %v931
        %v933 = vpop.f32.mrb[0].mxu0
        %v934 = vpop.f32.mrb[0].mxu0
        %v935 = vpop.f32.mrb[0].mxu0
        %936 = vdwg.mxu0
        %v937 = vmul.f32 %v932, 0.35355338
        %v939 = vlaneseq
        %v940 = vshrl.u32 %v939, 7
        %v941 = vsub.s32 0, %v940
        %v942 = vrot.slane %v818, %v941
        %v944 = vadd.f32 %v937, %v942
        %v945 = vsel %vm890, %v944, -inf
        %946 = vmax.xlane.f32.xlu0 %v945
        %v947 = vpop.xlane.xlu0 %946
        %v948 = vsub.f32 %v944, %v947
        %v949 = vmul.f32 %v948, 1.442695
        %v950 = vpow.pop %v949
        %v951 = vsel %vm890, %v950, 0.0
        %952 = vadd.xlane.f32.xlu0 %v951
        %v953 = vpop.xlane.xlu0 %952
        %v954 = vrcp.pop %v953
        %v955 = vmul.f32 %v950, %v954
        %v956 = vpack.c.bf16 %v955, %v955
        %957 = vrot.lane.b32.xlu0 %v886, 64
        %v958 = vpop.permute.xlu0 %957
        %v960 = vsel %vm890, %v956, 0
        %vm962 = vcmask 1043456
        %v964 = vsel %vm962, %v958, 0
        %966 = vmatprep.subr.bf16.mxu0 0
        %967 = vmatpush1.bf16.msra.mxu0 %v964
        %968 = vmatprep.subr.bf16.mxu0 0
        %969 = vmatpush1.bf16.msra.mxu0 0
        %970 = vmatprep.subr.bf16.mxu0 0
        %971 = vmatpush1.bf16.msra.mxu0 0
        %972 = vmatprep.subr.bf16.mxu0 0
        %973 = vmatpush1.bf16.msra.mxu0 0
        %974 = vmatprep.subr.bf16.mxu0 0
        %975 = vmatpush1.bf16.msra.mxu0 0
        %976 = vmatprep.subr.bf16.mxu0 0
        %977 = vmatpush1.bf16.msra.mxu0 0
        %978 = vmatprep.subr.bf16.mxu0 0
        %979 = vmatpush1.bf16.msra.mxu0 0
        %980 = vmatprep.subr.bf16.mxu0 0
        %981 = vmatpush1.bf16.msra.mxu0 0
        %982 = vmatprep.subr.bf16.mxu0 0
        %983 = vmatpush1.bf16.msra.mxu0 0
        %984 = vmatprep.subr.bf16.mxu0 0
        %985 = vmatpush1.bf16.msra.mxu0 0
        %986 = vmatprep.subr.bf16.mxu0 0
        %987 = vmatpush1.bf16.msra.mxu0 0
        %988 = vmatprep.subr.bf16.mxu0 0
        %989 = vmatpush1.bf16.msra.mxu0 0
        %990 = vmatprep.subr.bf16.mxu0 0
        %991 = vmatpush1.bf16.msra.mxu0 0
        %992 = vmatprep.subr.bf16.mxu0 0
        %993 = vmatpush1.bf16.msra.mxu0 0
        %994 = vmatprep.subr.bf16.mxu0 0
        %995 = vmatpush1.bf16.msra.mxu0 0
        %996 = vmatprep.subr.bf16.mxu0 0
        %997 = vmatpush1.bf16.msra.mxu0 0
        %998 = vmatprep.mubr.bf16.mxu0 0
        %999 = vmatmul.mubr.bf16.gmra.mrb[0].mxu0 %v960
        %v1000 = vpop.f32.mrb[0].mxu0
        %v1001 = vadd.f32 0.0, %v1000
        %v1002 = vpop.f32.mrb[0].mxu0
        %v1003 = vpop.f32.mrb[0].mxu0
        %v1004 = vpop.f32.mrb[0].mxu0
        %1005 = vdwg.mxu0
        %1006 = vrot.lane.b32.xlu0 %v886, 120
        %v1007 = vpop.permute.xlu0 %1006
        %1008 = vrot.lane.b32.xlu0 %v886, 88
        %v1009 = vpop.permute.xlu0 %1008
        %v1011 = vsel %vm890, %v1007, 0
        %v1014 = vsel %vm890, %v1009, 0
        %1016 = vmatprep.subr.bf16.mxu0 0
        %1017 = vmatpush1.bf16.xpose.msra.mxu0 %v1014
        %1018 = vmatprep.subr.bf16.mxu0 0
        %1019 = vmatpush1.bf16.xpose.msra.mxu0 0
        %1020 = vmatprep.subr.bf16.mxu0 0
        %1021 = vmatpush1.bf16.xpose.msra.mxu0 0
        %1022 = vmatprep.subr.bf16.mxu0 0
        %1023 = vmatpush1.bf16.xpose.msra.mxu0 0
        %1024 = vmatprep.subr.bf16.mxu0 0
        %1025 = vmatpush1.bf16.xpose.msra.mxu0 0
        %1026 = vmatprep.subr.bf16.mxu0 0
        %1027 = vmatpush1.bf16.xpose.msra.mxu0 0
        %1028 = vmatprep.subr.bf16.mxu0 0
        %1029 = vmatpush1.bf16.xpose.msra.mxu0 0
        %1030 = vmatprep.subr.bf16.mxu0 0
        %1031 = vmatpush1.bf16.xpose.msra.mxu0 0
        %1032 = vmatprep.subr.bf16.mxu0 0
        %1033 = vmatpush1.bf16.xpose.msra.mxu0 0
        %1034 = vmatprep.subr.bf16.mxu0 0
        %1035 = vmatpush1.bf16.xpose.msra.mxu0 0
        %1036 = vmatprep.subr.bf16.mxu0 0
        %1037 = vmatpush1.bf16.xpose.msra.mxu0 0
        %1038 = vmatprep.subr.bf16.mxu0 0
        %1039 = vmatpush1.bf16.xpose.msra.mxu0 0
        %1040 = vmatprep.subr.bf16.mxu0 0
        %1041 = vmatpush1.bf16.xpose.msra.mxu0 0
        %1042 = vmatprep.subr.bf16.mxu0 0
        %1043 = vmatpush1.bf16.xpose.msra.mxu0 0
        %1044 = vmatprep.subr.bf16.mxu0 0
        %1045 = vmatpush1.bf16.xpose.msra.mxu0 0
        %1046 = vmatprep.subr.bf16.mxu0 0
        %1047 = vmatpush1.bf16.xpose.msra.mxu0 0
        %1048 = vmatprep.mubr.bf16.mxu0 0
        %1049 = vmatmul.mubr.bf16.gmra.mrb[0].mxu0 %v1011
        %v1050 = vpop.f32.mrb[0].mxu0
        %v1051 = vadd.f32 0.0, %v1050
        %v1052 = vpop.f32.mrb[0].mxu0
        %v1053 = vpop.f32.mrb[0].mxu0
        %v1054 = vpop.f32.mrb[0].mxu0
        %1055 = vdwg.mxu0
        %v1056 = vmul.f32 %v1051, 0.35355338
        %v1057 = vadd.f32 %v1056, %v942
        %v1058 = vsel %vm890, %v1057, -inf
        %1059 = vmax.xlane.f32.xlu0 %v1058
        %v1060 = vpop.xlane.xlu0 %1059
        %v1061 = vsub.f32 %v1057, %v1060
        %v1062 = vmul.f32 %v1061, 1.442695
        %v1063 = vpow.pop %v1062
        %v1064 = vsel %vm890, %v1063, 0.0
        %1065 = vadd.xlane.f32.xlu0 %v1064
        %v1066 = vpop.xlane.xlu0 %1065
        %v1067 = vrcp.pop %v1066
        %v1068 = vmul.f32 %v1063, %v1067
        %v1069 = vpack.c.bf16 %v1068, %v1068
        %1070 = vrot.lane.b32.xlu0 %v886, 56
        %v1071 = vpop.permute.xlu0 %1070
        %v1073 = vsel %vm890, %v1069, 0
        %v1076 = vsel %vm962, %v1071, 0
        %1078 = vmatprep.subr.bf16.mxu0 0
        %1079 = vmatpush1.bf16.msra.mxu0 %v1076
        %1080 = vmatprep.subr.bf16.mxu0 0
        %1081 = vmatpush1.bf16.msra.mxu0 0
        %1082 = vmatprep.subr.bf16.mxu0 0
        %1083 = vmatpush1.bf16.msra.mxu0 0
        %1084 = vmatprep.subr.bf16.mxu0 0
        %1085 = vmatpush1.bf16.msra.mxu0 0
        %1086 = vmatprep.subr.bf16.mxu0 0
        %1087 = vmatpush1.bf16.msra.mxu0 0
        %1088 = vmatprep.subr.bf16.mxu0 0
        %1089 = vmatpush1.bf16.msra.mxu0 0
        %1090 = vmatprep.subr.bf16.mxu0 0
        %1091 = vmatpush1.bf16.msra.mxu0 0
        %1092 = vmatprep.subr.bf16.mxu0 0
        %1093 = vmatpush1.bf16.msra.mxu0 0
        %1094 = vmatprep.subr.bf16.mxu0 0
        %1095 = vmatpush1.bf16.msra.mxu0 0
        %1096 = vmatprep.subr.bf16.mxu0 0
        %1097 = vmatpush1.bf16.msra.mxu0 0
        %1098 = vmatprep.subr.bf16.mxu0 0
        %1099 = vmatpush1.bf16.msra.mxu0 0
        %1100 = vmatprep.subr.bf16.mxu0 0
        %1101 = vmatpush1.bf16.msra.mxu0 0
        %1102 = vmatprep.subr.bf16.mxu0 0
        %1103 = vmatpush1.bf16.msra.mxu0 0
        %1104 = vmatprep.subr.bf16.mxu0 0
        %1105 = vmatpush1.bf16.msra.mxu0 0
        %1106 = vmatprep.subr.bf16.mxu0 0
        %1107 = vmatpush1.bf16.msra.mxu0 0
        %1108 = vmatprep.subr.bf16.mxu0 0
        %1109 = vmatpush1.bf16.msra.mxu0 0
        %1110 = vmatprep.mubr.bf16.mxu0 0
        %1111 = vmatmul.mubr.bf16.gmra.mrb[0].mxu0 %v1073
        %v1112 = vpop.f32.mrb[0].mxu0
        %v1113 = vadd.f32 0.0, %v1112
        %v1114 = vpop.f32.mrb[0].mxu0
        %v1115 = vpop.f32.mrb[0].mxu0
        %v1116 = vpop.f32.mrb[0].mxu0
        %1117 = vdwg.mxu0
        %1118 = vrot.lane.b32.xlu0 %v886, 112
        %v1119 = vpop.permute.xlu0 %1118
        %1120 = vrot.lane.b32.xlu0 %v886, 80
        %v1121 = vpop.permute.xlu0 %1120
        %v1123 = vsel %vm890, %v1119, 0
        %v1126 = vsel %vm890, %v1121, 0
        %1128 = vmatprep.subr.bf16.mxu0 0
        %1129 = vmatpush1.bf16.xpose.msra.mxu0 %v1126
        %1130 = vmatprep.subr.bf16.mxu0 0
        %1131 = vmatpush1.bf16.xpose.msra.mxu0 0
        %1132 = vmatprep.subr.bf16.mxu0 0
        %1133 = vmatpush1.bf16.xpose.msra.mxu0 0
        %1134 = vmatprep.subr.bf16.mxu0 0
        %1135 = vmatpush1.bf16.xpose.msra.mxu0 0
        %1136 = vmatprep.subr.bf16.mxu0 0
        %1137 = vmatpush1.bf16.xpose.msra.mxu0 0
        %1138 = vmatprep.subr.bf16.mxu0 0
        %1139 = vmatpush1.bf16.xpose.msra.mxu0 0
        %1140 = vmatprep.subr.bf16.mxu0 0
        %1141 = vmatpush1.bf16.xpose.msra.mxu0 0
        %1142 = vmatprep.subr.bf16.mxu0 0
        %1143 = vmatpush1.bf16.xpose.msra.mxu0 0
        %1144 = vmatprep.subr.bf16.mxu0 0
        %1145 = vmatpush1.bf16.xpose.msra.mxu0 0
        %1146 = vmatprep.subr.bf16.mxu0 0
        %1147 = vmatpush1.bf16.xpose.msra.mxu0 0
        %1148 = vmatprep.subr.bf16.mxu0 0
        %1149 = vmatpush1.bf16.xpose.msra.mxu0 0
        %1150 = vmatprep.subr.bf16.mxu0 0
        %1151 = vmatpush1.bf16.xpose.msra.mxu0 0
        %1152 = vmatprep.subr.bf16.mxu0 0
        %1153 = vmatpush1.bf16.xpose.msra.mxu0 0
        %1154 = vmatprep.subr.bf16.mxu0 0
        %1155 = vmatpush1.bf16.xpose.msra.mxu0 0
        %1156 = vmatprep.subr.bf16.mxu0 0
        %1157 = vmatpush1.bf16.xpose.msra.mxu0 0
        %1158 = vmatprep.subr.bf16.mxu0 0
        %1159 = vmatpush1.bf16.xpose.msra.mxu0 0
        %1160 = vmatprep.mubr.bf16.mxu0 0
        %1161 = vmatmul.mubr.bf16.gmra.mrb[0].mxu0 %v1123
        %v1162 = vpop.f32.mrb[0].mxu0
        %v1163 = vadd.f32 0.0, %v1162
        %v1164 = vpop.f32.mrb[0].mxu0
        %v1165 = vpop.f32.mrb[0].mxu0
        %v1166 = vpop.f32.mrb[0].mxu0
        %1167 = vdwg.mxu0
        %v1168 = vmul.f32 %v1163, 0.35355338
        %v1169 = vadd.f32 %v1168, %v942
        %v1170 = vsel %vm890, %v1169, -inf
        %1171 = vmax.xlane.f32.xlu0 %v1170
        %v1172 = vpop.xlane.xlu0 %1171
        %v1173 = vsub.f32 %v1169, %v1172
        %v1174 = vmul.f32 %v1173, 1.442695
        %v1175 = vpow.pop %v1174
        %v1176 = vsel %vm890, %v1175, 0.0
        %1177 = vadd.xlane.f32.xlu0 %v1176
        %v1178 = vpop.xlane.xlu0 %1177
        %v1179 = vrcp.pop %v1178
        %v1180 = vmul.f32 %v1175, %v1179
        %v1181 = vpack.c.bf16 %v1180, %v1180
        %1182 = vrot.lane.b32.xlu0 %v886, 48
        %v1183 = vpop.permute.xlu0 %1182
        %v1185 = vsel %vm890, %v1181, 0
        %v1188 = vsel %vm962, %v1183, 0
        %1190 = vmatprep.subr.bf16.mxu0 0
        %1191 = vmatpush1.bf16.msra.mxu0 %v1188
        %1192 = vmatprep.subr.bf16.mxu0 0
        %1193 = vmatpush1.bf16.msra.mxu0 0
        %1194 = vmatprep.subr.bf16.mxu0 0
        %1195 = vmatpush1.bf16.msra.mxu0 0
        %1196 = vmatprep.subr.bf16.mxu0 0
        %1197 = vmatpush1.bf16.msra.mxu0 0
        %1198 = vmatprep.subr.bf16.mxu0 0
        %1199 = vmatpush1.bf16.msra.mxu0 0
        %1200 = vmatprep.subr.bf16.mxu0 0
        %1201 = vmatpush1.bf16.msra.mxu0 0
        %1202 = vmatprep.subr.bf16.mxu0 0
        %1203 = vmatpush1.bf16.msra.mxu0 0
        %1204 = vmatprep.subr.bf16.mxu0 0
        %1205 = vmatpush1.bf16.msra.mxu0 0
        %1206 = vmatprep.subr.bf16.mxu0 0
        %1207 = vmatpush1.bf16.msra.mxu0 0
        %1208 = vmatprep.subr.bf16.mxu0 0
        %1209 = vmatpush1.bf16.msra.mxu0 0
        %1210 = vmatprep.subr.bf16.mxu0 0
        %1211 = vmatpush1.bf16.msra.mxu0 0
        %1212 = vmatprep.subr.bf16.mxu0 0
        %1213 = vmatpush1.bf16.msra.mxu0 0
        %1214 = vmatprep.subr.bf16.mxu0 0
        %1215 = vmatpush1.bf16.msra.mxu0 0
        %1216 = vmatprep.subr.bf16.mxu0 0
        %1217 = vmatpush1.bf16.msra.mxu0 0
        %1218 = vmatprep.subr.bf16.mxu0 0
        %1219 = vmatpush1.bf16.msra.mxu0 0
        %1220 = vmatprep.subr.bf16.mxu0 0
        %1221 = vmatpush1.bf16.msra.mxu0 0
        %1222 = vmatprep.mubr.bf16.mxu0 0
        %1223 = vmatmul.mubr.bf16.gmra.mrb[0].mxu0 %v1185
        %v1224 = vpop.f32.mrb[0].mxu0
        %v1225 = vadd.f32 0.0, %v1224
        %v1226 = vpop.f32.mrb[0].mxu0
        %v1227 = vpop.f32.mrb[0].mxu0
        %v1228 = vpop.f32.mrb[0].mxu0
        %1229 = vdwg.mxu0
        %1230 = vrot.lane.b32.xlu0 %v886, 104
        %v1231 = vpop.permute.xlu0 %1230
        %1232 = vrot.lane.b32.xlu0 %v886, 72
        %v1233 = vpop.permute.xlu0 %1232
        %v1235 = vsel %vm890, %v1231, 0
        %v1238 = vsel %vm890, %v1233, 0
        %1240 = vmatprep.subr.bf16.mxu0 0
        %1241 = vmatpush1.bf16.xpose.msra.mxu0 %v1238
        %1242 = vmatprep.subr.bf16.mxu0 0
        %1243 = vmatpush1.bf16.xpose.msra.mxu0 0
        %1244 = vmatprep.subr.bf16.mxu0 0
        %1245 = vmatpush1.bf16.xpose.msra.mxu0 0
        %1246 = vmatprep.subr.bf16.mxu0 0
        %1247 = vmatpush1.bf16.xpose.msra.mxu0 0
        %1248 = vmatprep.subr.bf16.mxu0 0
        %1249 = vmatpush1.bf16.xpose.msra.mxu0 0
        %1250 = vmatprep.subr.bf16.mxu0 0
        %1251 = vmatpush1.bf16.xpose.msra.mxu0 0
        %1252 = vmatprep.subr.bf16.mxu0 0
        %1253 = vmatpush1.bf16.xpose.msra.mxu0 0
        %1254 = vmatprep.subr.bf16.mxu0 0
        %1255 = vmatpush1.bf16.xpose.msra.mxu0 0
        %1256 = vmatprep.subr.bf16.mxu0 0
        %1257 = vmatpush1.bf16.xpose.msra.mxu0 0
        %1258 = vmatprep.subr.bf16.mxu0 0
        %1259 = vmatpush1.bf16.xpose.msra.mxu0 0
        %1260 = vmatprep.subr.bf16.mxu0 0
        %1261 = vmatpush1.bf16.xpose.msra.mxu0 0
        %1262 = vmatprep.subr.bf16.mxu0 0
        %1263 = vmatpush1.bf16.xpose.msra.mxu0 0
        %1264 = vmatprep.subr.bf16.mxu0 0
        %1265 = vmatpush1.bf16.xpose.msra.mxu0 0
        %1266 = vmatprep.subr.bf16.mxu0 0
        %1267 = vmatpush1.bf16.xpose.msra.mxu0 0
        %1268 = vmatprep.subr.bf16.mxu0 0
        %1269 = vmatpush1.bf16.xpose.msra.mxu0 0
        %1270 = vmatprep.subr.bf16.mxu0 0
        %1271 = vmatpush1.bf16.xpose.msra.mxu0 0
        %1272 = vmatprep.mubr.bf16.mxu0 0
        %1273 = vmatmul.mubr.bf16.gmra.mrb[0].mxu0 %v1235
        %v1274 = vpop.f32.mrb[0].mxu0
        %v1275 = vadd.f32 0.0, %v1274
        %v1276 = vpop.f32.mrb[0].mxu0
        %v1277 = vpop.f32.mrb[0].mxu0
        %v1278 = vpop.f32.mrb[0].mxu0
        %1279 = vdwg.mxu0
        %v1280 = vmul.f32 %v1275, 0.35355338
        %v1281 = vadd.f32 %v1280, %v942
        %v1282 = vsel %vm890, %v1281, -inf
        %1283 = vmax.xlane.f32.xlu0 %v1282
        %v1284 = vpop.xlane.xlu0 %1283
        %v1285 = vsub.f32 %v1281, %v1284
        %v1286 = vmul.f32 %v1285, 1.442695
        %v1287 = vpow.pop %v1286
        %v1288 = vsel %vm890, %v1287, 0.0
        %1289 = vadd.xlane.f32.xlu0 %v1288
        %v1290 = vpop.xlane.xlu0 %1289
        %v1291 = vrcp.pop %v1290
        %v1292 = vmul.f32 %v1287, %v1291
        %v1293 = vpack.c.bf16 %v1292, %v1292
        %1294 = vrot.lane.b32.xlu0 %v886, 40
        %v1295 = vpop.permute.xlu0 %1294
        %v1297 = vsel %vm890, %v1293, 0
        %v1300 = vsel %vm962, %v1295, 0
        %1302 = vmatprep.subr.bf16.mxu0 0
        %1303 = vmatpush1.bf16.msra.mxu0 %v1300
        %1304 = vmatprep.subr.bf16.mxu0 0
        %1305 = vmatpush1.bf16.msra.mxu0 0
        %1306 = vmatprep.subr.bf16.mxu0 0
        %1307 = vmatpush1.bf16.msra.mxu0 0
        %1308 = vmatprep.subr.bf16.mxu0 0
        %1309 = vmatpush1.bf16.msra.mxu0 0
        %1310 = vmatprep.subr.bf16.mxu0 0
        %1311 = vmatpush1.bf16.msra.mxu0 0
        %1312 = vmatprep.subr.bf16.mxu0 0
        %1313 = vmatpush1.bf16.msra.mxu0 0
        %1314 = vmatprep.subr.bf16.mxu0 0
        %1315 = vmatpush1.bf16.msra.mxu0 0
        %1316 = vmatprep.subr.bf16.mxu0 0
        %1317 = vmatpush1.bf16.msra.mxu0 0
        %1318 = vmatprep.subr.bf16.mxu0 0
        %1319 = vmatpush1.bf16.msra.mxu0 0
        %1320 = vmatprep.subr.bf16.mxu0 0
        %1321 = vmatpush1.bf16.msra.mxu0 0
        %1322 = vmatprep.subr.bf16.mxu0 0
        %1323 = vmatpush1.bf16.msra.mxu0 0
        %1324 = vmatprep.subr.bf16.mxu0 0
        %1325 = vmatpush1.bf16.msra.mxu0 0
        %1326 = vmatprep.subr.bf16.mxu0 0
        %1327 = vmatpush1.bf16.msra.mxu0 0
        %1328 = vmatprep.subr.bf16.mxu0 0
        %1329 = vmatpush1.bf16.msra.mxu0 0
        %1330 = vmatprep.subr.bf16.mxu0 0
        %1331 = vmatpush1.bf16.msra.mxu0 0
        %1332 = vmatprep.subr.bf16.mxu0 0
        %1333 = vmatpush1.bf16.msra.mxu0 0
        %1334 = vmatprep.mubr.bf16.mxu0 0
        %1335 = vmatmul.mubr.bf16.gmra.mrb[0].mxu0 %v1297
        %v1336 = vpop.f32.mrb[0].mxu0
        %v1337 = vadd.f32 0.0, %v1336
        %v1338 = vpop.f32.mrb[0].mxu0
        %v1339 = vpop.f32.mrb[0].mxu0
        %v1340 = vpop.f32.mrb[0].mxu0
        %1341 = vdwg.mxu0
        %1343 = vrot.lane.b32.xlu0 %v1113, 8
        %v1344 = vpop.permute.xlu0 %1343
        %1347 = vrot.lane.b32.xlu0 %v1225, 16
        %v1348 = vpop.permute.xlu0 %1347
        %1351 = vrot.lane.b32.xlu0 %v1337, 24
        %v1352 = vpop.permute.xlu0 %1351
        %v1354 = vsel %vm890, %v1001, %v1344
        %vm1355 = vcmask 130048
        %v1356 = vsel %vm1355, %v1354, %v1348
        %vm1357 = vcmask 195584
        %v1358 = vsel %vm1357, %v1356, %v1352
        %v1359 = vpack.c.bf16 %v1358, %v1358
        %v1360 = vld [vmem:[%s7] sm:$0xf]
        %v1361 = vld [vmem:[%s7 + $0x4] sm:$0xf]
        %v1362 = vld [vmem:[%s7 + $0x8] sm:$0xf]
        %v1363 = vld [vmem:[%s7 + $0xc] sm:$0xf]
        %v1364 = vld [vmem:[#allocation10] sm:$0x1]
        %v1366 = vlaneseq
        %v1367 = vshrl.u32 %v1366, 7
        %v1368 = vsub.s32 0, %v1367
        %v1369 = vrot.slane %v1364, %v1368
        %v1375 = vunpack.c.l.b16 %v1360
        %v1376 = vunpack.c.l.b16 %v1361
        %v1377 = vunpack.c.l.b16 %v1362
        %v1378 = vunpack.c.l.b16 %v1363
        %v1379 = vpack.c.b16 %v1376, %v1375
        %v1380 = vpack.c.b16 %v1378, %v1377
        %v1384 = vsel %vm789, %v1359, 0
        %1386 = vmatprep.subr.bf16.mxu0 0
        %1387 = vmatpush1.bf16.msra.mxu0 %v1379
        %1388 = vmatprep.subr.bf16.mxu0 0
        %1389 = vmatpush1.bf16.msra.mxu0 %v1380
        %1390 = vmatprep.subr.bf16.mxu0 0
        %1391 = vmatpush1.bf16.msra.mxu0 0
        %1392 = vmatprep.subr.bf16.mxu0 0
        %1393 = vmatpush1.bf16.msra.mxu0 0
        %1394 = vmatprep.subr.bf16.mxu0 0
        %1395 = vmatpush1.bf16.msra.mxu0 0
        %1396 = vmatprep.subr.bf16.mxu0 0
        %1397 = vmatpush1.bf16.msra.mxu0 0
        %1398 = vmatprep.subr.bf16.mxu0 0
        %1399 = vmatpush1.bf16.msra.mxu0 0
        %1400 = vmatprep.subr.bf16.mxu0 0
        %1401 = vmatpush1.bf16.msra.mxu0 0
        %1402 = vmatprep.subr.bf16.mxu0 0
        %1403 = vmatpush1.bf16.msra.mxu0 0
        %1404 = vmatprep.subr.bf16.mxu0 0
        %1405 = vmatpush1.bf16.msra.mxu0 0
        %1406 = vmatprep.subr.bf16.mxu0 0
        %1407 = vmatpush1.bf16.msra.mxu0 0
        %1408 = vmatprep.subr.bf16.mxu0 0
        %1409 = vmatpush1.bf16.msra.mxu0 0
        %1410 = vmatprep.subr.bf16.mxu0 0
        %1411 = vmatpush1.bf16.msra.mxu0 0
        %1412 = vmatprep.subr.bf16.mxu0 0
        %1413 = vmatpush1.bf16.msra.mxu0 0
        %1414 = vmatprep.subr.bf16.mxu0 0
        %1415 = vmatpush1.bf16.msra.mxu0 0
        %1416 = vmatprep.subr.bf16.mxu0 0
        %1417 = vmatpush1.bf16.msra.mxu0 0
        %1418 = vmatprep.mubr.bf16.mxu0 0
        %1419 = vmatmul.mubr.bf16.gmra.mrb[0].mxu0 %v1384
        %v1420 = vpop.f32.mrb[0].mxu0
        %v1421 = vadd.f32 %v1369, %v1420
        %v1422 = vpop.f32.mrb[0].mxu0
        %v1423 = vpop.f32.mrb[0].mxu0
        %v1424 = vpop.f32.mrb[0].mxu0
        %1425 = vdwg.mxu0
        %v1426 = vadd.f32 %v1421, %v817
        %v1427 = vld [vmem:[#allocation11] sm:$0x1]
        %v1428 = vld [vmem:[#allocation13] sm:$0x1]
        %v1429 = vsel %vm789, %v1426, 0.0
        %1430 = vadd.xlane.f32.xlu0 %v1429
        %v1431 = vpop.xlane.xlu0 %1430
        %v1432 = vmul.f32 %v1431, %v793
        %v1433 = vsub.f32 %v1426, %v1432
        %v1434 = vmul.f32 %v1433, %v1433
        %v1435 = vsel %vm789, %v1434, 0.0
        %1436 = vadd.xlane.f32.xlu0 %v1435
        %v1437 = vpop.xlane.xlu0 %1436
        %v1438 = vmul.f32 %v1437, %v793
        %v1439 = vadd.f32 %v1438, 1e-12
        %v1440 = vrsqrt.pop %v1439
        %v1442 = vlaneseq
        %v1443 = vshrl.u32 %v1442, 7
        %v1444 = vsub.s32 0, %v1443
        %v1445 = vrot.slane %v1427, %v1444
        %v1447 = vmul.f32 %v1440, %v1445
        %v1448 = vmul.f32 %v1433, %v1447
        %v1450 = vlaneseq
        %v1451 = vshrl.u32 %v1450, 7
        %v1452 = vsub.s32 0, %v1451
        %v1453 = vrot.slane %v1428, %v1452
        %v1455 = vadd.f32 %v1448, %v1453
        %v1456 = vpack.c.bf16 %v1455, %v1455
        %v1457 = vld [vmem:[%s11] sm:$0xf]
        %v1458 = vld [vmem:[%s11 + $0x4] sm:$0xf]
        %v1459 = vld [vmem:[%s11 + $0x8] sm:$0xf]
        %v1460 = vld [vmem:[%s11 + $0xc] sm:$0xf]
        %v1461 = vld [vmem:[#allocation14] sm:$0x1]
        %v1463 = vlaneseq
        %v1464 = vshrl.u32 %v1463, 7
        %v1465 = vsub.s32 0, %v1464
        %v1466 = vrot.slane %v1461, %v1465
        %v1472 = vunpack.c.l.b16 %v1457
        %v1473 = vunpack.c.l.b16 %v1458
        %v1474 = vunpack.c.l.b16 %v1459
        %v1475 = vunpack.c.l.b16 %v1460
        %v1476 = vpack.c.b16 %v1473, %v1472
        %v1477 = vpack.c.b16 %v1475, %v1474
        %v1481 = vsel %vm789, %v1456, 0
        %1483 = vmatprep.subr.bf16.mxu0 0
        %1484 = vmatpush1.bf16.msra.mxu0 %v1476
        %1485 = vmatprep.subr.bf16.mxu0 0
        %1486 = vmatpush1.bf16.msra.mxu0 %v1477
        %1487 = vmatprep.subr.bf16.mxu0 0
        %1488 = vmatpush1.bf16.msra.mxu0 0
        %1489 = vmatprep.subr.bf16.mxu0 0
        %1490 = vmatpush1.bf16.msra.mxu0 0
        %1491 = vmatprep.subr.bf16.mxu0 0
        %1492 = vmatpush1.bf16.msra.mxu0 0
        %1493 = vmatprep.subr.bf16.mxu0 0
        %1494 = vmatpush1.bf16.msra.mxu0 0
        %1495 = vmatprep.subr.bf16.mxu0 0
        %1496 = vmatpush1.bf16.msra.mxu0 0
        %1497 = vmatprep.subr.bf16.mxu0 0
        %1498 = vmatpush1.bf16.msra.mxu0 0
        %1499 = vmatprep.subr.bf16.mxu0 0
        %1500 = vmatpush1.bf16.msra.mxu0 0
        %1501 = vmatprep.subr.bf16.mxu0 0
        %1502 = vmatpush1.bf16.msra.mxu0 0
        %1503 = vmatprep.subr.bf16.mxu0 0
        %1504 = vmatpush1.bf16.msra.mxu0 0
        %1505 = vmatprep.subr.bf16.mxu0 0
        %1506 = vmatpush1.bf16.msra.mxu0 0
        %1507 = vmatprep.subr.bf16.mxu0 0
        %1508 = vmatpush1.bf16.msra.mxu0 0
        %1509 = vmatprep.subr.bf16.mxu0 0
        %1510 = vmatpush1.bf16.msra.mxu0 0
        %1511 = vmatprep.subr.bf16.mxu0 0
        %1512 = vmatpush1.bf16.msra.mxu0 0
        %1513 = vmatprep.subr.bf16.mxu0 0
        %1514 = vmatpush1.bf16.msra.mxu0 0
        %1515 = vmatprep.mubr.bf16.mxu0 0
        %1516 = vmatmul.mubr.bf16.gmra.mrb[0].mxu0 %v1481
        %v1517 = vpop.f32.mrb[0].mxu0
        %v1518 = vadd.f32 %v1466, %v1517
        %v1519 = vpop.f32.mrb[0].mxu0
        %v1520 = vpop.f32.mrb[0].mxu0
        %v1521 = vpop.f32.mrb[0].mxu0
        %1522 = vdwg.mxu0
        %v1523 = vmul.f32 %v1518, %v1518
        %v1524 = vmul.f32 %v1518, %v1523
        %v1525 = vmul.f32 %v1524, 0.044715
        %v1526 = vadd.f32 %v1518, %v1525
        %v1527 = vmul.f32 %v1526, 0.7978846
        %v1528 = vtanh.pop %v1527
        %v1529 = vadd.f32 %v1528, 1.0
        %v1530 = vmul.f32 %v1529, 0.5
        %v1531 = vmul.f32 %v1518, %v1530
        %v1532 = vpack.c.bf16 %v1531, %v1531
        %v1533 = vld [vmem:[%s13] sm:$0xf]
        %v1534 = vld [vmem:[%s13 + $0x4] sm:$0xf]
        %v1535 = vld [vmem:[%s13 + $0x8] sm:$0xf]
        %v1536 = vld [vmem:[%s13 + $0xc] sm:$0xf]
        %v1537 = vld [vmem:[%s13 + $0x10] sm:$0xf]
        %v1538 = vld [vmem:[%s13 + $0x14] sm:$0xf]
        %v1539 = vld [vmem:[%s13 + $0x18] sm:$0xf]
        %v1540 = vld [vmem:[%s13 + $0x1c] sm:$0xf]
        %v1541 = vld [vmem:[%s14] sm:$0x1]
        %v1543 = vlaneseq
        %v1544 = vshrl.u32 %v1543, 7
        %v1545 = vsub.s32 0, %v1544
        %v1546 = vrot.slane %v1541, %v1545
        %v1556 = vunpack.c.l.b16 %v1533
        %v1557 = vunpack.c.l.b16 %v1534
        %v1558 = vunpack.c.l.b16 %v1535
        %v1559 = vunpack.c.l.b16 %v1536
        %v1560 = vunpack.c.l.b16 %v1537
        %v1561 = vunpack.c.l.b16 %v1538
        %v1562 = vunpack.c.l.b16 %v1539
        %v1563 = vunpack.c.l.b16 %v1540
        %v1564 = vpack.c.b16 %v1557, %v1556
        %v1565 = vpack.c.b16 %v1559, %v1558
        %v1566 = vpack.c.b16 %v1561, %v1560
        %v1567 = vpack.c.b16 %v1563, %v1562
        %vm1572 = vcmask 523264
        %v1574 = vsel %vm1572, %v1532, 0
        %1576 = vmatprep.subr.bf16.mxu0 0
        %1577 = vmatpush1.bf16.msra.mxu0 %v1564
        %1578 = vmatprep.subr.bf16.mxu0 0
        %1579 = vmatpush1.bf16.msra.mxu0 %v1565
        %1580 = vmatprep.subr.bf16.mxu0 0
        %1581 = vmatpush1.bf16.msra.mxu0 %v1566
        %1582 = vmatprep.subr.bf16.mxu0 0
        %1583 = vmatpush1.bf16.msra.mxu0 %v1567
        %1584 = vmatprep.subr.bf16.mxu0 0
        %1585 = vmatpush1.bf16.msra.mxu0 0
        %1586 = vmatprep.subr.bf16.mxu0 0
        %1587 = vmatpush1.bf16.msra.mxu0 0
        %1588 = vmatprep.subr.bf16.mxu0 0
        %1589 = vmatpush1.bf16.msra.mxu0 0
        %1590 = vmatprep.subr.bf16.mxu0 0
        %1591 = vmatpush1.bf16.msra.mxu0 0
        %1592 = vmatprep.subr.bf16.mxu0 0
        %1593 = vmatpush1.bf16.msra.mxu0 0
        %1594 = vmatprep.subr.bf16.mxu0 0
        %1595 = vmatpush1.bf16.msra.mxu0 0
        %1596 = vmatprep.subr.bf16.mxu0 0
        %1597 = vmatpush1.bf16.msra.mxu0 0
        %1598 = vmatprep.subr.bf16.mxu0 0
        %1599 = vmatpush1.bf16.msra.mxu0 0
        %1600 = vmatprep.subr.bf16.mxu0 0
        %1601 = vmatpush1.bf16.msra.mxu0 0
        %1602 = vmatprep.subr.bf16.mxu0 0
        %1603 = vmatpush1.bf16.msra.mxu0 0
        %1604 = vmatprep.subr.bf16.mxu0 0
        %1605 = vmatpush1.bf16.msra.mxu0 0
        %1606 = vmatprep.subr.bf16.mxu0 0
        %1607 = vmatpush1.bf16.msra.mxu0 0
        %1608 = vmatprep.mubr.bf16.mxu0 0
        %1609 = vmatmul.mubr.bf16.gmra.mrb[0].mxu0 %v1574
        %v1610 = vpop.f32.mrb[0].mxu0
        %v1611 = vadd.f32 %v1546, %v1610
        %v1612 = vpop.f32.mrb[0].mxu0
        %v1613 = vpop.f32.mrb[0].mxu0
        %v1614 = vpop.f32.mrb[0].mxu0
        %1615 = vdwg.mxu0
        %v1616 = vadd.f32 %v1611, %v1455
        %v1617 = vld [vmem:[%s15] sm:$0x1]
        %v1618 = vld [vmem:[%s16] sm:$0x1]
        %v1619 = vsel %vm789, %v1616, 0.0
        %1620 = vadd.xlane.f32.xlu0 %v1619
        %v1621 = vpop.xlane.xlu0 %1620
        %v1622 = vmul.f32 %v1621, %v793
        %v1623 = vsub.f32 %v1616, %v1622
        %v1624 = vmul.f32 %v1623, %v1623
        %v1625 = vsel %vm789, %v1624, 0.0
        %1626 = vadd.xlane.f32.xlu0 %v1625
        %v1627 = vpop.xlane.xlu0 %1626
        %v1628 = vmul.f32 %v1627, %v793
        %v1629 = vadd.f32 %v1628, 1e-12
        %v1630 = vrsqrt.pop %v1629
        %v1632 = vlaneseq
        %v1633 = vshrl.u32 %v1632, 7
        %v1634 = vsub.s32 0, %v1633
        %v1635 = vrot.slane %v1617, %v1634
        %v1637 = vmul.f32 %v1630, %v1635
        %v1638 = vmul.f32 %v1623, %v1637
        %v1640 = vlaneseq
        %v1641 = vshrl.u32 %v1640, 7
        %v1642 = vsub.s32 0, %v1641
        %v1643 = vrot.slane %v1618, %v1642
        %v1645 = vadd.f32 %v1638, %v1643
        %v1646 = vpack.c.bf16 %v1645, %v1645
        %s1647 = scalar_lea.vmem %s5, 16
        %v1648 = vld [vmem:[%s1647] sm:$0xf]
        %v1649 = vld [vmem:[%s1647 + $0x4] sm:$0xf]
        %v1650 = vld [vmem:[%s1647 + $0x8] sm:$0xf]
        %v1651 = vld [vmem:[%s1647 + $0xc] sm:$0xf]
        %s1652 = scalar_lea.vmem [#allocation8], 1
        %v1653 = vld [vmem:[%s1652] sm:$0x1]
        %v1655 = vlaneseq
        %v1656 = vshrl.u32 %v1655, 7
        %v1657 = vsub.s32 0, %v1656
        %v1658 = vrot.slane %v1653, %v1657
        %v1664 = vunpack.c.l.b16 %v1648
        %v1665 = vunpack.c.l.b16 %v1649
        %v1666 = vunpack.c.l.b16 %v1650
        %v1667 = vunpack.c.l.b16 %v1651
        %v1668 = vpack.c.b16 %v1665, %v1664
        %v1669 = vpack.c.b16 %v1667, %v1666
        %v1673 = vsel %vm789, %v1646, 0
        %1675 = vmatprep.subr.bf16.mxu0 0
        %1676 = vmatpush1.bf16.msra.mxu0 %v1668
        %1677 = vmatprep.subr.bf16.mxu0 0
        %1678 = vmatpush1.bf16.msra.mxu0 %v1669
        %1679 = vmatprep.subr.bf16.mxu0 0
        %1680 = vmatpush1.bf16.msra.mxu0 0
        %1681 = vmatprep.subr.bf16.mxu0 0
        %1682 = vmatpush1.bf16.msra.mxu0 0
        %1683 = vmatprep.subr.bf16.mxu0 0
        %1684 = vmatpush1.bf16.msra.mxu0 0
        %1685 = vmatprep.subr.bf16.mxu0 0
        %1686 = vmatpush1.bf16.msra.mxu0 0
        %1687 = vmatprep.subr.bf16.mxu0 0
        %1688 = vmatpush1.bf16.msra.mxu0 0
        %1689 = vmatprep.subr.bf16.mxu0 0
        %1690 = vmatpush1.bf16.msra.mxu0 0
        %1691 = vmatprep.subr.bf16.mxu0 0
        %1692 = vmatpush1.bf16.msra.mxu0 0
        %1693 = vmatprep.subr.bf16.mxu0 0
        %1694 = vmatpush1.bf16.msra.mxu0 0
        %1695 = vmatprep.subr.bf16.mxu0 0
        %1696 = vmatpush1.bf16.msra.mxu0 0
        %1697 = vmatprep.subr.bf16.mxu0 0
        %1698 = vmatpush1.bf16.msra.mxu0 0
        %1699 = vmatprep.subr.bf16.mxu0 0
        %1700 = vmatpush1.bf16.msra.mxu0 0
        %1701 = vmatprep.subr.bf16.mxu0 0
        %1702 = vmatpush1.bf16.msra.mxu0 0
        %1703 = vmatprep.subr.bf16.mxu0 0
        %1704 = vmatpush1.bf16.msra.mxu0 0
        %1705 = vmatprep.subr.bf16.mxu0 0
        %1706 = vmatpush1.bf16.msra.mxu0 0
        %1707 = vmatprep.mubr.bf16.mxu0 0
        %1708 = vmatmul.mubr.bf16.gmra.mrb[0].mxu0 %v1673
        %v1709 = vpop.f32.mrb[0].mxu0
        %v1710 = vadd.f32 %v1658, %v1709
        %v1711 = vpop.f32.mrb[0].mxu0
        %v1712 = vpop.f32.mrb[0].mxu0
        %v1713 = vpop.f32.mrb[0].mxu0
        %1714 = vdwg.mxu0
        %v1715 = vpack.c.bf16 %v1710, %v1710
        %1717 = vrot.lane.b32.xlu0 %v1715, 96
        %v1718 = vpop.permute.xlu0 %1717
        %v1720 = vsel %vm890, %v1715, 0
        %v1723 = vsel %vm890, %v1718, 0
        %1725 = vmatprep.subr.bf16.mxu0 0
        %1726 = vmatpush1.bf16.xpose.msra.mxu0 %v1723
        %1727 = vmatprep.subr.bf16.mxu0 0
        %1728 = vmatpush1.bf16.xpose.msra.mxu0 0
        %1729 = vmatprep.subr.bf16.mxu0 0
        %1730 = vmatpush1.bf16.xpose.msra.mxu0 0
        %1731 = vmatprep.subr.bf16.mxu0 0
        %1732 = vmatpush1.bf16.xpose.msra.mxu0 0
        %1733 = vmatprep.subr.bf16.mxu0 0
        %1734 = vmatpush1.bf16.xpose.msra.mxu0 0
        %1735 = vmatprep.subr.bf16.mxu0 0
        %1736 = vmatpush1.bf16.xpose.msra.mxu0 0
        %1737 = vmatprep.subr.bf16.mxu0 0
        %1738 = vmatpush1.bf16.xpose.msra.mxu0 0
        %1739 = vmatprep.subr.bf16.mxu0 0
        %1740 = vmatpush1.bf16.xpose.msra.mxu0 0
        %1741 = vmatprep.subr.bf16.mxu0 0
        %1742 = vmatpush1.bf16.xpose.msra.mxu0 0
        %1743 = vmatprep.subr.bf16.mxu0 0
        %1744 = vmatpush1.bf16.xpose.msra.mxu0 0
        %1745 = vmatprep.subr.bf16.mxu0 0
        %1746 = vmatpush1.bf16.xpose.msra.mxu0 0
        %1747 = vmatprep.subr.bf16.mxu0 0
        %1748 = vmatpush1.bf16.xpose.msra.mxu0 0
        %1749 = vmatprep.subr.bf16.mxu0 0
        %1750 = vmatpush1.bf16.xpose.msra.mxu0 0
        %1751 = vmatprep.subr.bf16.mxu0 0
        %1752 = vmatpush1.bf16.xpose.msra.mxu0 0
        %1753 = vmatprep.subr.bf16.mxu0 0
        %1754 = vmatpush1.bf16.xpose.msra.mxu0 0
        %1755 = vmatprep.subr.bf16.mxu0 0
        %1756 = vmatpush1.bf16.xpose.msra.mxu0 0
        %1757 = vmatprep.mubr.bf16.mxu0 0
        %1758 = vmatmul.mubr.bf16.gmra.mrb[0].mxu0 %v1720
        %v1759 = vpop.f32.mrb[0].mxu0
        %v1760 = vadd.f32 0.0, %v1759
        %v1761 = vpop.f32.mrb[0].mxu0
        %v1762 = vpop.f32.mrb[0].mxu0
        %v1763 = vpop.f32.mrb[0].mxu0
        %1764 = vdwg.mxu0
        %v1765 = vmul.f32 %v1760, 0.35355338
        %v1766 = vadd.f32 %v1765, %v942
        %v1767 = vsel %vm890, %v1766, -inf
        %1768 = vmax.xlane.f32.xlu0 %v1767
        %v1769 = vpop.xlane.xlu0 %1768
        %v1770 = vsub.f32 %v1766, %v1769
        %v1771 = vmul.f32 %v1770, 1.442695
        %v1772 = vpow.pop %v1771
        %v1773 = vsel %vm890, %v1772, 0.0
        %1774 = vadd.xlane.f32.xlu0 %v1773
        %v1775 = vpop.xlane.xlu0 %1774
        %v1776 = vrcp.pop %v1775
        %v1777 = vmul.f32 %v1772, %v1776
        %v1778 = vpack.c.bf16 %v1777, %v1777
        %1779 = vrot.lane.b32.xlu0 %v1715, 64
        %v1780 = vpop.permute.xlu0 %1779
        %v1782 = vsel %vm890, %v1778, 0
        %v1785 = vsel %vm962, %v1780, 0
        %1787 = vmatprep.subr.bf16.mxu0 0
        %1788 = vmatpush1.bf16.msra.mxu0 %v1785
        %1789 = vmatprep.subr.bf16.mxu0 0
        %1790 = vmatpush1.bf16.msra.mxu0 0
        %1791 = vmatprep.subr.bf16.mxu0 0
        %1792 = vmatpush1.bf16.msra.mxu0 0
        %1793 = vmatprep.subr.bf16.mxu0 0
        %1794 = vmatpush1.bf16.msra.mxu0 0
        %1795 = vmatprep.subr.bf16.mxu0 0
        %1796 = vmatpush1.bf16.msra.mxu0 0
        %1797 = vmatprep.subr.bf16.mxu0 0
        %1798 = vmatpush1.bf16.msra.mxu0 0
        %1799 = vmatprep.subr.bf16.mxu0 0
        %1800 = vmatpush1.bf16.msra.mxu0 0
        %1801 = vmatprep.subr.bf16.mxu0 0
        %1802 = vmatpush1.bf16.msra.mxu0 0
        %1803 = vmatprep.subr.bf16.mxu0 0
        %1804 = vmatpush1.bf16.msra.mxu0 0
        %1805 = vmatprep.subr.bf16.mxu0 0
        %1806 = vmatpush1.bf16.msra.mxu0 0
        %1807 = vmatprep.subr.bf16.mxu0 0
        %1808 = vmatpush1.bf16.msra.mxu0 0
        %1809 = vmatprep.subr.bf16.mxu0 0
        %1810 = vmatpush1.bf16.msra.mxu0 0
        %1811 = vmatprep.subr.bf16.mxu0 0
        %1812 = vmatpush1.bf16.msra.mxu0 0
        %1813 = vmatprep.subr.bf16.mxu0 0
        %1814 = vmatpush1.bf16.msra.mxu0 0
        %1815 = vmatprep.subr.bf16.mxu0 0
        %1816 = vmatpush1.bf16.msra.mxu0 0
        %1817 = vmatprep.subr.bf16.mxu0 0
        %1818 = vmatpush1.bf16.msra.mxu0 0
        %1819 = vmatprep.mubr.bf16.mxu0 0
        %1820 = vmatmul.mubr.bf16.gmra.mrb[0].mxu0 %v1782
        %v1821 = vpop.f32.mrb[0].mxu0
        %v1822 = vadd.f32 0.0, %v1821
        %v1823 = vpop.f32.mrb[0].mxu0
        %v1824 = vpop.f32.mrb[0].mxu0
        %v1825 = vpop.f32.mrb[0].mxu0
        %1826 = vdwg.mxu0
        %1827 = vrot.lane.b32.xlu0 %v1715, 120
        %v1828 = vpop.permute.xlu0 %1827
        %1829 = vrot.lane.b32.xlu0 %v1715, 88
        %v1830 = vpop.permute.xlu0 %1829
        %v1832 = vsel %vm890, %v1828, 0
        %v1835 = vsel %vm890, %v1830, 0
        %1837 = vmatprep.subr.bf16.mxu0 0
        %1838 = vmatpush1.bf16.xpose.msra.mxu0 %v1835
        %1839 = vmatprep.subr.bf16.mxu0 0
        %1840 = vmatpush1.bf16.xpose.msra.mxu0 0
        %1841 = vmatprep.subr.bf16.mxu0 0
        %1842 = vmatpush1.bf16.xpose.msra.mxu0 0
        %1843 = vmatprep.subr.bf16.mxu0 0
        %1844 = vmatpush1.bf16.xpose.msra.mxu0 0
        %1845 = vmatprep.subr.bf16.mxu0 0
        %1846 = vmatpush1.bf16.xpose.msra.mxu0 0
        %1847 = vmatprep.subr.bf16.mxu0 0
        %1848 = vmatpush1.bf16.xpose.msra.mxu0 0
        %1849 = vmatprep.subr.bf16.mxu0 0
        %1850 = vmatpush1.bf16.xpose.msra.mxu0 0
        %1851 = vmatprep.subr.bf16.mxu0 0
        %1852 = vmatpush1.bf16.xpose.msra.mxu0 0
        %1853 = vmatprep.subr.bf16.mxu0 0
        %1854 = vmatpush1.bf16.xpose.msra.mxu0 0
        %1855 = vmatprep.subr.bf16.mxu0 0
        %1856 = vmatpush1.bf16.xpose.msra.mxu0 0
        %1857 = vmatprep.subr.bf16.mxu0 0
        %1858 = vmatpush1.bf16.xpose.msra.mxu0 0
        %1859 = vmatprep.subr.bf16.mxu0 0
        %1860 = vmatpush1.bf16.xpose.msra.mxu0 0
        %1861 = vmatprep.subr.bf16.mxu0 0
        %1862 = vmatpush1.bf16.xpose.msra.mxu0 0
        %1863 = vmatprep.subr.bf16.mxu0 0
        %1864 = vmatpush1.bf16.xpose.msra.mxu0 0
        %1865 = vmatprep.subr.bf16.mxu0 0
        %1866 = vmatpush1.bf16.xpose.msra.mxu0 0
        %1867 = vmatprep.subr.bf16.mxu0 0
        %1868 = vmatpush1.bf16.xpose.msra.mxu0 0
        %1869 = vmatprep.mubr.bf16.mxu0 0
        %1870 = vmatmul.mubr.bf16.gmra.mrb[0].mxu0 %v1832
        %v1871 = vpop.f32.mrb[0].mxu0
        %v1872 = vadd.f32 0.0, %v1871
        %v1873 = vpop.f32.mrb[0].mxu0
        %v1874 = vpop.f32.mrb[0].mxu0
        %v1875 = vpop.f32.mrb[0].mxu0
        %1876 = vdwg.mxu0
        %v1877 = vmul.f32 %v1872, 0.35355338
        %v1878 = vadd.f32 %v1877, %v942
        %v1879 = vsel %vm890, %v1878, -inf
        %1880 = vmax.xlane.f32.xlu0 %v1879
        %v1881 = vpop.xlane.xlu0 %1880
        %v1882 = vsub.f32 %v1878, %v1881
        %v1883 = vmul.f32 %v1882, 1.442695
        %v1884 = vpow.pop %v1883
        %v1885 = vsel %vm890, %v1884, 0.0
        %1886 = vadd.xlane.f32.xlu0 %v1885
        %v1887 = vpop.xlane.xlu0 %1886
        %v1888 = vrcp.pop %v1887
        %v1889 = vmul.f32 %v1884, %v1888
        %v1890 = vpack.c.bf16 %v1889, %v1889
        %1891 = vrot.lane.b32.xlu0 %v1715, 56
        %v1892 = vpop.permute.xlu0 %1891
        %v1894 = vsel %vm890, %v1890, 0
        %v1897 = vsel %vm962, %v1892, 0
        %1899 = vmatprep.subr.bf16.mxu0 0
        %1900 = vmatpush1.bf16.msra.mxu0 %v1897
        %1901 = vmatprep.subr.bf16.mxu0 0
        %1902 = vmatpush1.bf16.msra.mxu0 0
        %1903 = vmatprep.subr.bf16.mxu0 0
        %1904 = vmatpush1.bf16.msra.mxu0 0
        %1905 = vmatprep.subr.bf16.mxu0 0
        %1906 = vmatpush1.bf16.msra.mxu0 0
        %1907 = vmatprep.subr.bf16.mxu0 0
        %1908 = vmatpush1.bf16.msra.mxu0 0
        %1909 = vmatprep.subr.bf16.mxu0 0
        %1910 = vmatpush1.bf16.msra.mxu0 0
        %1911 = vmatprep.subr.bf16.mxu0 0
        %1912 = vmatpush1.bf16.msra.mxu0 0
        %1913 = vmatprep.subr.bf16.mxu0 0
        %1914 = vmatpush1.bf16.msra.mxu0 0
        %1915 = vmatprep.subr.bf16.mxu0 0
        %1916 = vmatpush1.bf16.msra.mxu0 0
        %1917 = vmatprep.subr.bf16.mxu0 0
        %1918 = vmatpush1.bf16.msra.mxu0 0
        %1919 = vmatprep.subr.bf16.mxu0 0
        %1920 = vmatpush1.bf16.msra.mxu0 0
        %1921 = vmatprep.subr.bf16.mxu0 0
        %1922 = vmatpush1.bf16.msra.mxu0 0
        %1923 = vmatprep.subr.bf16.mxu0 0
        %1924 = vmatpush1.bf16.msra.mxu0 0
        %1925 = vmatprep.subr.bf16.mxu0 0
        %1926 = vmatpush1.bf16.msra.mxu0 0
        %1927 = vmatprep.subr.bf16.mxu0 0
        %1928 = vmatpush1.bf16.msra.mxu0 0
        %1929 = vmatprep.subr.bf16.mxu0 0
        %1930 = vmatpush1.bf16.msra.mxu0 0
        %1931 = vmatprep.mubr.bf16.mxu0 0
        %1932 = vmatmul.mubr.bf16.gmra.mrb[0].mxu0 %v1894
        %v1933 = vpop.f32.mrb[0].mxu0
        %v1934 = vadd.f32 0.0, %v1933
        %v1935 = vpop.f32.mrb[0].mxu0
        %v1936 = vpop.f32.mrb[0].mxu0
        %v1937 = vpop.f32.mrb[0].mxu0
        %1938 = vdwg.mxu0
        %1939 = vrot.lane.b32.xlu0 %v1715, 112
        %v1940 = vpop.permute.xlu0 %1939
        %1941 = vrot.lane.b32.xlu0 %v1715, 80
        %v1942 = vpop.permute.xlu0 %1941
        %v1944 = vsel %vm890, %v1940, 0
        %v1947 = vsel %vm890, %v1942, 0
        %1949 = vmatprep.subr.bf16.mxu0 0
        %1950 = vmatpush1.bf16.xpose.msra.mxu0 %v1947
        %1951 = vmatprep.subr.bf16.mxu0 0
        %1952 = vmatpush1.bf16.xpose.msra.mxu0 0
        %1953 = vmatprep.subr.bf16.mxu0 0
        %1954 = vmatpush1.bf16.xpose.msra.mxu0 0
        %1955 = vmatprep.subr.bf16.mxu0 0
        %1956 = vmatpush1.bf16.xpose.msra.mxu0 0
        %1957 = vmatprep.subr.bf16.mxu0 0
        %1958 = vmatpush1.bf16.xpose.msra.mxu0 0
        %1959 = vmatprep.subr.bf16.mxu0 0
        %1960 = vmatpush1.bf16.xpose.msra.mxu0 0
        %1961 = vmatprep.subr.bf16.mxu0 0
        %1962 = vmatpush1.bf16.xpose.msra.mxu0 0
        %1963 = vmatprep.subr.bf16.mxu0 0
        %1964 = vmatpush1.bf16.xpose.msra.mxu0 0
        %1965 = vmatprep.subr.bf16.mxu0 0
        %1966 = vmatpush1.bf16.xpose.msra.mxu0 0
        %1967 = vmatprep.subr.bf16.mxu0 0
        %1968 = vmatpush1.bf16.xpose.msra.mxu0 0
        %1969 = vmatprep.subr.bf16.mxu0 0
        %1970 = vmatpush1.bf16.xpose.msra.mxu0 0
        %1971 = vmatprep.subr.bf16.mxu0 0
        %1972 = vmatpush1.bf16.xpose.msra.mxu0 0
        %1973 = vmatprep.subr.bf16.mxu0 0
        %1974 = vmatpush1.bf16.xpose.msra.mxu0 0
        %1975 = vmatprep.subr.bf16.mxu0 0
        %1976 = vmatpush1.bf16.xpose.msra.mxu0 0
        %1977 = vmatprep.subr.bf16.mxu0 0
        %1978 = vmatpush1.bf16.xpose.msra.mxu0 0
        %1979 = vmatprep.subr.bf16.mxu0 0
        %1980 = vmatpush1.bf16.xpose.msra.mxu0 0
        %1981 = vmatprep.mubr.bf16.mxu0 0
        %1982 = vmatmul.mubr.bf16.gmra.mrb[0].mxu0 %v1944
        %v1983 = vpop.f32.mrb[0].mxu0
        %v1984 = vadd.f32 0.0, %v1983
        %v1985 = vpop.f32.mrb[0].mxu0
        %v1986 = vpop.f32.mrb[0].mxu0
        %v1987 = vpop.f32.mrb[0].mxu0
        %1988 = vdwg.mxu0
        %v1989 = vmul.f32 %v1984, 0.35355338
        %v1990 = vadd.f32 %v1989, %v942
        %v1991 = vsel %vm890, %v1990, -inf
        %1992 = vmax.xlane.f32.xlu0 %v1991
        %v1993 = vpop.xlane.xlu0 %1992
        %v1994 = vsub.f32 %v1990, %v1993
        %v1995 = vmul.f32 %v1994, 1.442695
        %v1996 = vpow.pop %v1995
        %v1997 = vsel %vm890, %v1996, 0.0
        %1998 = vadd.xlane.f32.xlu0 %v1997
        %v1999 = vpop.xlane.xlu0 %1998
        %v2000 = vrcp.pop %v1999
        %v2001 = vmul.f32 %v1996, %v2000
        %v2002 = vpack.c.bf16 %v2001, %v2001
        %2003 = vrot.lane.b32.xlu0 %v1715, 48
        %v2004 = vpop.permute.xlu0 %2003
        %v2006 = vsel %vm890, %v2002, 0
        %v2009 = vsel %vm962, %v2004, 0
        %2011 = vmatprep.subr.bf16.mxu0 0
        %2012 = vmatpush1.bf16.msra.mxu0 %v2009
        %2013 = vmatprep.subr.bf16.mxu0 0
        %2014 = vmatpush1.bf16.msra.mxu0 0
        %2015 = vmatprep.subr.bf16.mxu0 0
        %2016 = vmatpush1.bf16.msra.mxu0 0
        %2017 = vmatprep.subr.bf16.mxu0 0
        %2018 = vmatpush1.bf16.msra.mxu0 0
        %2019 = vmatprep.subr.bf16.mxu0 0
        %2020 = vmatpush1.bf16.msra.mxu0 0
        %2021 = vmatprep.subr.bf16.mxu0 0
        %2022 = vmatpush1.bf16.msra.mxu0 0
        %2023 = vmatprep.subr.bf16.mxu0 0
        %2024 = vmatpush1.bf16.msra.mxu0 0
        %2025 = vmatprep.subr.bf16.mxu0 0
        %2026 = vmatpush1.bf16.msra.mxu0 0
        %2027 = vmatprep.subr.bf16.mxu0 0
        %2028 = vmatpush1.bf16.msra.mxu0 0
        %2029 = vmatprep.subr.bf16.mxu0 0
        %2030 = vmatpush1.bf16.msra.mxu0 0
        %2031 = vmatprep.subr.bf16.mxu0 0
        %2032 = vmatpush1.bf16.msra.mxu0 0
        %2033 = vmatprep.subr.bf16.mxu0 0
        %2034 = vmatpush1.bf16.msra.mxu0 0
        %2035 = vmatprep.subr.bf16.mxu0 0
        %2036 = vmatpush1.bf16.msra.mxu0 0
        %2037 = vmatprep.subr.bf16.mxu0 0
        %2038 = vmatpush1.bf16.msra.mxu0 0
        %2039 = vmatprep.subr.bf16.mxu0 0
        %2040 = vmatpush1.bf16.msra.mxu0 0
        %2041 = vmatprep.subr.bf16.mxu0 0
        %2042 = vmatpush1.bf16.msra.mxu0 0
        %2043 = vmatprep.mubr.bf16.mxu0 0
        %2044 = vmatmul.mubr.bf16.gmra.mrb[0].mxu0 %v2006
        %v2045 = vpop.f32.mrb[0].mxu0
        %v2046 = vadd.f32 0.0, %v2045
        %v2047 = vpop.f32.mrb[0].mxu0
        %v2048 = vpop.f32.mrb[0].mxu0
        %v2049 = vpop.f32.mrb[0].mxu0
        %2050 = vdwg.mxu0
        %2051 = vrot.lane.b32.xlu0 %v1715, 104
        %v2052 = vpop.permute.xlu0 %2051
        %2053 = vrot.lane.b32.xlu0 %v1715, 72
        %v2054 = vpop.permute.xlu0 %2053
        %v2056 = vsel %vm890, %v2052, 0
        %v2059 = vsel %vm890, %v2054, 0
        %2061 = vmatprep.subr.bf16.mxu0 0
        %2062 = vmatpush1.bf16.xpose.msra.mxu0 %v2059
        %2063 = vmatprep.subr.bf16.mxu0 0
        %2064 = vmatpush1.bf16.xpose.msra.mxu0 0
        %2065 = vmatprep.subr.bf16.mxu0 0
        %2066 = vmatpush1.bf16.xpose.msra.mxu0 0
        %2067 = vmatprep.subr.bf16.mxu0 0
        %2068 = vmatpush1.bf16.xpose.msra.mxu0 0
        %2069 = vmatprep.subr.bf16.mxu0 0
        %2070 = vmatpush1.bf16.xpose.msra.mxu0 0
        %2071 = vmatprep.subr.bf16.mxu0 0
        %2072 = vmatpush1.bf16.xpose.msra.mxu0 0
        %2073 = vmatprep.subr.bf16.mxu0 0
        %2074 = vmatpush1.bf16.xpose.msra.mxu0 0
        %2075 = vmatprep.subr.bf16.mxu0 0
        %2076 = vmatpush1.bf16.xpose.msra.mxu0 0
        %2077 = vmatprep.subr.bf16.mxu0 0
        %2078 = vmatpush1.bf16.xpose.msra.mxu0 0
        %2079 = vmatprep.subr.bf16.mxu0 0
        %2080 = vmatpush1.bf16.xpose.msra.mxu0 0
        %2081 = vmatprep.subr.bf16.mxu0 0
        %2082 = vmatpush1.bf16.xpose.msra.mxu0 0
        %2083 = vmatprep.subr.bf16.mxu0 0
        %2084 = vmatpush1.bf16.xpose.msra.mxu0 0
        %2085 = vmatprep.subr.bf16.mxu0 0
        %2086 = vmatpush1.bf16.xpose.msra.mxu0 0
        %2087 = vmatprep.subr.bf16.mxu0 0
        %2088 = vmatpush1.bf16.xpose.msra.mxu0 0
        %2089 = vmatprep.subr.bf16.mxu0 0
        %2090 = vmatpush1.bf16.xpose.msra.mxu0 0
        %2091 = vmatprep.subr.bf16.mxu0 0
        %2092 = vmatpush1.bf16.xpose.msra.mxu0 0
        %2093 = vmatprep.mubr.bf16.mxu0 0
        %2094 = vmatmul.mubr.bf16.gmra.mrb[0].mxu0 %v2056
        %v2095 = vpop.f32.mrb[0].mxu0
        %v2096 = vadd.f32 0.0, %v2095
        %v2097 = vpop.f32.mrb[0].mxu0
        %v2098 = vpop.f32.mrb[0].mxu0
        %v2099 = vpop.f32.mrb[0].mxu0
        %2100 = vdwg.mxu0
        %v2101 = vmul.f32 %v2096, 0.35355338
        %v2102 = vadd.f32 %v2101, %v942
        %v2103 = vsel %vm890, %v2102, -inf
        %2104 = vmax.xlane.f32.xlu0 %v2103
        %v2105 = vpop.xlane.xlu0 %2104
        %v2106 = vsub.f32 %v2102, %v2105
        %v2107 = vmul.f32 %v2106, 1.442695
        %v2108 = vpow.pop %v2107
        %v2109 = vsel %vm890, %v2108, 0.0
        %2110 = vadd.xlane.f32.xlu0 %v2109
        %v2111 = vpop.xlane.xlu0 %2110
        %v2112 = vrcp.pop %v2111
        %v2113 = vmul.f32 %v2108, %v2112
        %v2114 = vpack.c.bf16 %v2113, %v2113
        %2115 = vrot.lane.b32.xlu0 %v1715, 40
        %v2116 = vpop.permute.xlu0 %2115
        %v2118 = vsel %vm890, %v2114, 0
        %v2121 = vsel %vm962, %v2116, 0
        %2123 = vmatprep.subr.bf16.mxu0 0
        %2124 = vmatpush1.bf16.msra.mxu0 %v2121
        %2125 = vmatprep.subr.bf16.mxu0 0
        %2126 = vmatpush1.bf16.msra.mxu0 0
        %2127 = vmatprep.subr.bf16.mxu0 0
        %2128 = vmatpush1.bf16.msra.mxu0 0
        %2129 = vmatprep.subr.bf16.mxu0 0
        %2130 = vmatpush1.bf16.msra.mxu0 0
        %2131 = vmatprep.subr.bf16.mxu0 0
        %2132 = vmatpush1.bf16.msra.mxu0 0
        %2133 = vmatprep.subr.bf16.mxu0 0
        %2134 = vmatpush1.bf16.msra.mxu0 0
        %2135 = vmatprep.subr.bf16.mxu0 0
        %2136 = vmatpush1.bf16.msra.mxu0 0
        %2137 = vmatprep.subr.bf16.mxu0 0
        %2138 = vmatpush1.bf16.msra.mxu0 0
        %2139 = vmatprep.subr.bf16.mxu0 0
        %2140 = vmatpush1.bf16.msra.mxu0 0
        %2141 = vmatprep.subr.bf16.mxu0 0
        %2142 = vmatpush1.bf16.msra.mxu0 0
        %2143 = vmatprep.subr.bf16.mxu0 0
        %2144 = vmatpush1.bf16.msra.mxu0 0
        %2145 = vmatprep.subr.bf16.mxu0 0
        %2146 = vmatpush1.bf16.msra.mxu0 0
        %2147 = vmatprep.subr.bf16.mxu0 0
        %2148 = vmatpush1.bf16.msra.mxu0 0
        %2149 = vmatprep.subr.bf16.mxu0 0
        %2150 = vmatpush1.bf16.msra.mxu0 0
        %2151 = vmatprep.subr.bf16.mxu0 0
        %2152 = vmatpush1.bf16.msra.mxu0 0
        %2153 = vmatprep.subr.bf16.mxu0 0
        %2154 = vmatpush1.bf16.msra.mxu0 0
        %2155 = vmatprep.mubr.bf16.mxu0 0
        %2156 = vmatmul.mubr.bf16.gmra.mrb[0].mxu0 %v2118
        %v2157 = vpop.f32.mrb[0].mxu0
        %v2158 = vadd.f32 0.0, %v2157
        %v2159 = vpop.f32.mrb[0].mxu0
        %v2160 = vpop.f32.mrb[0].mxu0
        %v2161 = vpop.f32.mrb[0].mxu0
        %2162 = vdwg.mxu0
        %2164 = vrot.lane.b32.xlu0 %v1934, 8
        %v2165 = vpop.permute.xlu0 %2164
        %2168 = vrot.lane.b32.xlu0 %v2046, 16
        %v2169 = vpop.permute.xlu0 %2168
        %2172 = vrot.lane.b32.xlu0 %v2158, 24
        %v2173 = vpop.permute.xlu0 %2172
        %v2175 = vsel %vm890, %v1822, %v2165
        %v2176 = vsel %vm1355, %v2175, %v2169
        %v2177 = vsel %vm1357, %v2176, %v2173
        %v2178 = vpack.c.bf16 %v2177, %v2177
        %s2179 = scalar_lea.vmem %s7, 16
        %v2180 = vld [vmem:[%s2179] sm:$0xf]
        %v2181 = vld [vmem:[%s2179 + $0x4] sm:$0xf]
        %v2182 = vld [vmem:[%s2179 + $0x8] sm:$0xf]
        %v2183 = vld [vmem:[%s2179 + $0xc] sm:$0xf]
        %s2184 = scalar_lea.vmem [#allocation10], 1
        %v2185 = vld [vmem:[%s2184] sm:$0x1]
        %v2187 = vlaneseq
        %v2188 = vshrl.u32 %v2187, 7
        %v2189 = vsub.s32 0, %v2188
        %v2190 = vrot.slane %v2185, %v2189
        %v2196 = vunpack.c.l.b16 %v2180
        %v2197 = vunpack.c.l.b16 %v2181
        %v2198 = vunpack.c.l.b16 %v2182
        %v2199 = vunpack.c.l.b16 %v2183
        %v2200 = vpack.c.b16 %v2197, %v2196
        %v2201 = vpack.c.b16 %v2199, %v2198
        %v2205 = vsel %vm789, %v2178, 0
        %2207 = vmatprep.subr.bf16.mxu0 0
        %2208 = vmatpush1.bf16.msra.mxu0 %v2200
        %2209 = vmatprep.subr.bf16.mxu0 0
        %2210 = vmatpush1.bf16.msra.mxu0 %v2201
        %2211 = vmatprep.subr.bf16.mxu0 0
        %2212 = vmatpush1.bf16.msra.mxu0 0
        %2213 = vmatprep.subr.bf16.mxu0 0
        %2214 = vmatpush1.bf16.msra.mxu0 0
        %2215 = vmatprep.subr.bf16.mxu0 0
        %2216 = vmatpush1.bf16.msra.mxu0 0
        %2217 = vmatprep.subr.bf16.mxu0 0
        %2218 = vmatpush1.bf16.msra.mxu0 0
        %2219 = vmatprep.subr.bf16.mxu0 0
        %2220 = vmatpush1.bf16.msra.mxu0 0
        %2221 = vmatprep.subr.bf16.mxu0 0
        %2222 = vmatpush1.bf16.msra.mxu0 0
        %2223 = vmatprep.subr.bf16.mxu0 0
        %2224 = vmatpush1.bf16.msra.mxu0 0
        %2225 = vmatprep.subr.bf16.mxu0 0
        %2226 = vmatpush1.bf16.msra.mxu0 0
        %2227 = vmatprep.subr.bf16.mxu0 0
        %2228 = vmatpush1.bf16.msra.mxu0 0
        %2229 = vmatprep.subr.bf16.mxu0 0
        %2230 = vmatpush1.bf16.msra.mxu0 0
        %2231 = vmatprep.subr.bf16.mxu0 0
        %2232 = vmatpush1.bf16.msra.mxu0 0
        %2233 = vmatprep.subr.bf16.mxu0 0
        %2234 = vmatpush1.bf16.msra.mxu0 0
        %2235 = vmatprep.subr.bf16.mxu0 0
        %2236 = vmatpush1.bf16.msra.mxu0 0
        %2237 = vmatprep.subr.bf16.mxu0 0
        %2238 = vmatpush1.bf16.msra.mxu0 0
        %2239 = vmatprep.mubr.bf16.mxu0 0
        %2240 = vmatmul.mubr.bf16.gmra.mrb[0].mxu0 %v2205
        %v2241 = vpop.f32.mrb[0].mxu0
        %v2242 = vadd.f32 %v2190, %v2241
        %v2243 = vpop.f32.mrb[0].mxu0
        %v2244 = vpop.f32.mrb[0].mxu0
        %v2245 = vpop.f32.mrb[0].mxu0
        %2246 = vdwg.mxu0
        %v2247 = vadd.f32 %v2242, %v1645
        %s2248 = scalar_lea.vmem [#allocation11], 1
        %v2249 = vld [vmem:[%s2248] sm:$0x1]
        %s2250 = scalar_lea.vmem [#allocation13], 1
        %v2251 = vld [vmem:[%s2250] sm:$0x1]
        %v2252 = vsel %vm789, %v2247, 0.0
        %2253 = vadd.xlane.f32.xlu0 %v2252
        %v2254 = vpop.xlane.xlu0 %2253
        %v2255 = vmul.f32 %v2254, %v793
        %v2256 = vsub.f32 %v2247, %v2255
        %v2257 = vmul.f32 %v2256, %v2256
        %v2258 = vsel %vm789, %v2257, 0.0
        %2259 = vadd.xlane.f32.xlu0 %v2258
        %v2260 = vpop.xlane.xlu0 %2259
        %v2261 = vmul.f32 %v2260, %v793
        %v2262 = vadd.f32 %v2261, 1e-12
        %v2263 = vrsqrt.pop %v2262
        %v2265 = vlaneseq
        %v2266 = vshrl.u32 %v2265, 7
        %v2267 = vsub.s32 0, %v2266
        %v2268 = vrot.slane %v2249, %v2267
        %v2270 = vmul.f32 %v2263, %v2268
        %v2271 = vmul.f32 %v2256, %v2270
        %v2273 = vlaneseq
        %v2274 = vshrl.u32 %v2273, 7
        %v2275 = vsub.s32 0, %v2274
        %v2276 = vrot.slane %v2251, %v2275
        %v2278 = vadd.f32 %v2271, %v2276
        %v2279 = vpack.c.bf16 %v2278, %v2278
        %s2280 = scalar_lea.vmem %s11, 16
        %v2281 = vld [vmem:[%s2280] sm:$0xf]
        %v2282 = vld [vmem:[%s2280 + $0x4] sm:$0xf]
        %v2283 = vld [vmem:[%s2280 + $0x8] sm:$0xf]
        %v2284 = vld [vmem:[%s2280 + $0xc] sm:$0xf]
        %s2285 = scalar_lea.vmem [#allocation14], 1
        %v2286 = vld [vmem:[%s2285] sm:$0x1]
        %v2288 = vlaneseq
        %v2289 = vshrl.u32 %v2288, 7
        %v2290 = vsub.s32 0, %v2289
        %v2291 = vrot.slane %v2286, %v2290
        %v2297 = vunpack.c.l.b16 %v2281
        %v2298 = vunpack.c.l.b16 %v2282
        %v2299 = vunpack.c.l.b16 %v2283
        %v2300 = vunpack.c.l.b16 %v2284
        %v2301 = vpack.c.b16 %v2298, %v2297
        %v2302 = vpack.c.b16 %v2300, %v2299
        %v2306 = vsel %vm789, %v2279, 0
        %2308 = vmatprep.subr.bf16.mxu0 0
        %2309 = vmatpush1.bf16.msra.mxu0 %v2301
        %2310 = vmatprep.subr.bf16.mxu0 0
        %2311 = vmatpush1.bf16.msra.mxu0 %v2302
        %2312 = vmatprep.subr.bf16.mxu0 0
        %2313 = vmatpush1.bf16.msra.mxu0 0
        %2314 = vmatprep.subr.bf16.mxu0 0
        %2315 = vmatpush1.bf16.msra.mxu0 0
        %2316 = vmatprep.subr.bf16.mxu0 0
        %2317 = vmatpush1.bf16.msra.mxu0 0
        %2318 = vmatprep.subr.bf16.mxu0 0
        %2319 = vmatpush1.bf16.msra.mxu0 0
        %2320 = vmatprep.subr.bf16.mxu0 0
        %2321 = vmatpush1.bf16.msra.mxu0 0
        %2322 = vmatprep.subr.bf16.mxu0 0
        %2323 = vmatpush1.bf16.msra.mxu0 0
        %2324 = vmatprep.subr.bf16.mxu0 0
        %2325 = vmatpush1.bf16.msra.mxu0 0
        %2326 = vmatprep.subr.bf16.mxu0 0
        %2327 = vmatpush1.bf16.msra.mxu0 0
        %2328 = vmatprep.subr.bf16.mxu0 0
        %2329 = vmatpush1.bf16.msra.mxu0 0
        %2330 = vmatprep.subr.bf16.mxu0 0
        %2331 = vmatpush1.bf16.msra.mxu0 0
        %2332 = vmatprep.subr.bf16.mxu0 0
        %2333 = vmatpush1.bf16.msra.mxu0 0
        %2334 = vmatprep.subr.bf16.mxu0 0
        %2335 = vmatpush1.bf16.msra.mxu0 0
        %2336 = vmatprep.subr.bf16.mxu0 0
        %2337 = vmatpush1.bf16.msra.mxu0 0
        %2338 = vmatprep.subr.bf16.mxu0 0
        %2339 = vmatpush1.bf16.msra.mxu0 0
        %2340 = vmatprep.mubr.bf16.mxu0 0
        %2341 = vmatmul.mubr.bf16.gmra.mrb[0].mxu0 %v2306
        %v2342 = vpop.f32.mrb[0].mxu0
        %v2343 = vadd.f32 %v2291, %v2342
        %v2344 = vpop.f32.mrb[0].mxu0
        %v2345 = vpop.f32.mrb[0].mxu0
        %v2346 = vpop.f32.mrb[0].mxu0
        %2347 = vdwg.mxu0
        %v2348 = vmul.f32 %v2343, %v2343
        %v2349 = vmul.f32 %v2343, %v2348
        %v2350 = vmul.f32 %v2349, 0.044715
        %v2351 = vadd.f32 %v2343, %v2350
        %v2352 = vmul.f32 %v2351, 0.7978846
        %v2353 = vtanh.pop %v2352
        %v2354 = vadd.f32 %v2353, 1.0
        %v2355 = vmul.f32 %v2354, 0.5
        %v2356 = vmul.f32 %v2343, %v2355
        %v2357 = vpack.c.bf16 %v2356, %v2356
        %s2358 = scalar_lea.vmem %s13, 32
        %v2359 = vld [vmem:[%s2358] sm:$0xf]
        %v2360 = vld [vmem:[%s2358 + $0x4] sm:$0xf]
        %v2361 = vld [vmem:[%s2358 + $0x8] sm:$0xf]
        %v2362 = vld [vmem:[%s2358 + $0xc] sm:$0xf]
        %v2363 = vld [vmem:[%s2358 + $0x10] sm:$0xf]
        %v2364 = vld [vmem:[%s2358 + $0x14] sm:$0xf]
        %v2365 = vld [vmem:[%s2358 + $0x18] sm:$0xf]
        %v2366 = vld [vmem:[%s2358 + $0x1c] sm:$0xf]
        %s2367 = scalar_lea.vmem %s14, 1
        %v2368 = vld [vmem:[%s2367] sm:$0x1]
        %v2370 = vlaneseq
        %v2371 = vshrl.u32 %v2370, 7
        %v2372 = vsub.s32 0, %v2371
        %v2373 = vrot.slane %v2368, %v2372
        %v2383 = vunpack.c.l.b16 %v2359
        %v2384 = vunpack.c.l.b16 %v2360
        %v2385 = vunpack.c.l.b16 %v2361
        %v2386 = vunpack.c.l.b16 %v2362
        %v2387 = vunpack.c.l.b16 %v2363
        %v2388 = vunpack.c.l.b16 %v2364
        %v2389 = vunpack.c.l.b16 %v2365
        %v2390 = vunpack.c.l.b16 %v2366
        %v2391 = vpack.c.b16 %v2384, %v2383
        %v2392 = vpack.c.b16 %v2386, %v2385
        %v2393 = vpack.c.b16 %v2388, %v2387
        %v2394 = vpack.c.b16 %v2390, %v2389
        %v2400 = vsel %vm1572, %v2357, 0
        %2402 = vmatprep.subr.bf16.mxu0 0
        %2403 = vmatpush1.bf16.msra.mxu0 %v2391
        %2404 = vmatprep.subr.bf16.mxu0 0
        %2405 = vmatpush1.bf16.msra.mxu0 %v2392
        %2406 = vmatprep.subr.bf16.mxu0 0
        %2407 = vmatpush1.bf16.msra.mxu0 %v2393
        %2408 = vmatprep.subr.bf16.mxu0 0
        %2409 = vmatpush1.bf16.msra.mxu0 %v2394
        %2410 = vmatprep.subr.bf16.mxu0 0
        %2411 = vmatpush1.bf16.msra.mxu0 0
        %2412 = vmatprep.subr.bf16.mxu0 0
        %2413 = vmatpush1.bf16.msra.mxu0 0
        %2414 = vmatprep.subr.bf16.mxu0 0
        %2415 = vmatpush1.bf16.msra.mxu0 0
        %2416 = vmatprep.subr.bf16.mxu0 0
        %2417 = vmatpush1.bf16.msra.mxu0 0
        %2418 = vmatprep.subr.bf16.mxu0 0
        %2419 = vmatpush1.bf16.msra.mxu0 0
        %2420 = vmatprep.subr.bf16.mxu0 0
        %2421 = vmatpush1.bf16.msra.mxu0 0
        %2422 = vmatprep.subr.bf16.mxu0 0
        %2423 = vmatpush1.bf16.msra.mxu0 0
        %2424 = vmatprep.subr.bf16.mxu0 0
        %2425 = vmatpush1.bf16.msra.mxu0 0
        %2426 = vmatprep.subr.bf16.mxu0 0
        %2427 = vmatpush1.bf16.msra.mxu0 0
        %2428 = vmatprep.subr.bf16.mxu0 0
        %2429 = vmatpush1.bf16.msra.mxu0 0
        %2430 = vmatprep.subr.bf16.mxu0 0
        %2431 = vmatpush1.bf16.msra.mxu0 0
        %2432 = vmatprep.subr.bf16.mxu0 0
        %2433 = vmatpush1.bf16.msra.mxu0 0
        %2434 = vmatprep.mubr.bf16.mxu0 0
        %2435 = vmatmul.mubr.bf16.gmra.mrb[0].mxu0 %v2400
        %v2436 = vpop.f32.mrb[0].mxu0
        %v2437 = vadd.f32 %v2373, %v2436
        %v2438 = vpop.f32.mrb[0].mxu0
        %v2439 = vpop.f32.mrb[0].mxu0
        %v2440 = vpop.f32.mrb[0].mxu0
        %2441 = vdwg.mxu0
        %v2442 = vadd.f32 %v2437, %v2278
        %s2443 = scalar_lea.vmem %s15, 1
        %v2444 = vld [vmem:[%s2443] sm:$0x1]
        %s2445 = scalar_lea.vmem %s16, 1
        %v2446 = vld [vmem:[%s2445] sm:$0x1]
        %v2447 = vsel %vm789, %v2442, 0.0
        %2448 = vadd.xlane.f32.xlu0 %v2447
        %v2449 = vpop.xlane.xlu0 %2448
        %v2450 = vmul.f32 %v2449, %v793
        %v2451 = vsub.f32 %v2442, %v2450
        %v2452 = vmul.f32 %v2451, %v2451
        %v2453 = vsel %vm789, %v2452, 0.0
        %2454 = vadd.xlane.f32.xlu0 %v2453
        %v2455 = vpop.xlane.xlu0 %2454
        %v2456 = vmul.f32 %v2455, %v793
        %v2457 = vadd.f32 %v2456, 1e-12
        %v2458 = vrsqrt.pop %v2457
        %v2460 = vlaneseq
        %v2461 = vshrl.u32 %v2460, 7
        %v2462 = vsub.s32 0, %v2461
        %v2463 = vrot.slane %v2444, %v2462
        %v2465 = vmul.f32 %v2458, %v2463
        %v2466 = vmul.f32 %v2451, %v2465
        %v2468 = vlaneseq
        %v2469 = vshrl.u32 %v2468, 7
        %v2470 = vsub.s32 0, %v2469
        %v2471 = vrot.slane %v2446, %v2470
        %v2473 = vadd.f32 %v2466, %v2471
        %v2474 = vpack.c.bf16 %v2473, %v2473
        %v2475 = vld [vmem:[%s17] sm:$0xf]
        %v2476 = vld [vmem:[%s17 + $0x4] sm:$0xf]
        %v2477 = vld [vmem:[%s17 + $0x8] sm:$0xf]
        %v2478 = vld [vmem:[%s17 + $0xc] sm:$0xf]
        %v2479 = vld [vmem:[%s18] sm:$0x1]
        %v2484 = vunpack.c.l.b16 %v2475
        %v2485 = vunpack.c.l.b16 %v2476
        %v2486 = vunpack.c.l.b16 %v2477
        %v2487 = vunpack.c.l.b16 %v2478
        %v2488 = vpack.c.b16 %v2485, %v2484
        %v2489 = vpack.c.b16 %v2487, %v2486
        %v2493 = vsel %vm789, %v2474, 0
        %2495 = vmatprep.subr.bf16.mxu0 0
        %2496 = vmatpush1.bf16.msra.mxu0 %v2488
        %2497 = vmatprep.subr.bf16.mxu0 0
        %2498 = vmatpush1.bf16.msra.mxu0 %v2489
        %2499 = vmatprep.subr.bf16.mxu0 0
        %2500 = vmatpush1.bf16.msra.mxu0 0
        %2501 = vmatprep.subr.bf16.mxu0 0
        %2502 = vmatpush1.bf16.msra.mxu0 0
        %2503 = vmatprep.subr.bf16.mxu0 0
        %2504 = vmatpush1.bf16.msra.mxu0 0
        %2505 = vmatprep.subr.bf16.mxu0 0
        %2506 = vmatpush1.bf16.msra.mxu0 0
        %2507 = vmatprep.subr.bf16.mxu0 0
        %2508 = vmatpush1.bf16.msra.mxu0 0
        %2509 = vmatprep.subr.bf16.mxu0 0
        %2510 = vmatpush1.bf16.msra.mxu0 0
        %2511 = vmatprep.subr.bf16.mxu0 0
        %2512 = vmatpush1.bf16.msra.mxu0 0
        %2513 = vmatprep.subr.bf16.mxu0 0
        %2514 = vmatpush1.bf16.msra.mxu0 0
        %2515 = vmatprep.subr.bf16.mxu0 0
        %2516 = vmatpush1.bf16.msra.mxu0 0
        %2517 = vmatprep.subr.bf16.mxu0 0
        %2518 = vmatpush1.bf16.msra.mxu0 0
        %2519 = vmatprep.subr.bf16.mxu0 0
        %2520 = vmatpush1.bf16.msra.mxu0 0
        %2521 = vmatprep.subr.bf16.mxu0 0
        %2522 = vmatpush1.bf16.msra.mxu0 0
        %2523 = vmatprep.subr.bf16.mxu0 0
        %2524 = vmatpush1.bf16.msra.mxu0 0
        %2525 = vmatprep.subr.bf16.mxu0 0
        %2526 = vmatpush1.bf16.msra.mxu0 0
        %2527 = vmatprep.mubr.bf16.mxu0 0
        %2528 = vmatmul.mubr.bf16.gmra.mrb[0].mxu0 %v2493
        %v2529 = vpop.f32.mrb[0].mxu0
        %v2530 = vadd.f32 %v2479, %v2529
        %v2531 = vpop.f32.mrb[0].mxu0
        %v2532 = vpop.f32.mrb[0].mxu0
        %v2533 = vpop.f32.mrb[0].mxu0
        %2534 = vdwg.mxu0
        %v2535 = vtanh.pop %v2530
        %v2536 = vpack.c.bf16 %v2535, %v2535
        %v2537 = vld [vmem:[%s19] sm:$0xf]
        %v2538 = vld [vmem:[%s19 + $0x4] sm:$0xf]
        %v2539 = vld [vmem:[%s19 + $0x8] sm:$0xf]
        %v2540 = vld [vmem:[%s19 + $0xc] sm:$0xf]
        %v2541 = vld [vmem:[%s20] sm:$0x1]
        %v2546 = vunpack.c.l.b16 %v2537
        %v2547 = vunpack.c.l.b16 %v2538
        %v2548 = vunpack.c.l.b16 %v2539
        %v2549 = vunpack.c.l.b16 %v2540
        %v2550 = vpack.c.b16 %v2547, %v2546
        %v2551 = vpack.c.b16 %v2549, %v2548
        %v2555 = vsel %vm789, %v2536, 0
        %2557 = vmatprep.subr.bf16.mxu0 0
        %2558 = vmatpush1.bf16.msra.mxu0 %v2550
        %2559 = vmatprep.subr.bf16.mxu0 0
        %2560 = vmatpush1.bf16.msra.mxu0 %v2551
        %2561 = vmatprep.subr.bf16.mxu0 0
        %2562 = vmatpush1.bf16.msra.mxu0 0
        %2563 = vmatprep.subr.bf16.mxu0 0
        %2564 = vmatpush1.bf16.msra.mxu0 0
        %2565 = vmatprep.subr.bf16.mxu0 0
        %2566 = vmatpush1.bf16.msra.mxu0 0
        %2567 = vmatprep.subr.bf16.mxu0 0
        %2568 = vmatpush1.bf16.msra.mxu0 0
        %2569 = vmatprep.subr.bf16.mxu0 0
        %2570 = vmatpush1.bf16.msra.mxu0 0
        %2571 = vmatprep.subr.bf16.mxu0 0
        %2572 = vmatpush1.bf16.msra.mxu0 0
        %2573 = vmatprep.subr.bf16.mxu0 0
        %2574 = vmatpush1.bf16.msra.mxu0 0
        %2575 = vmatprep.subr.bf16.mxu0 0
        %2576 = vmatpush1.bf16.msra.mxu0 0
        %2577 = vmatprep.subr.bf16.mxu0 0
        %2578 = vmatpush1.bf16.msra.mxu0 0
        %2579 = vmatprep.subr.bf16.mxu0 0
        %2580 = vmatpush1.bf16.msra.mxu0 0
        %2581 = vmatprep.subr.bf16.mxu0 0
        %2582 = vmatpush1.bf16.msra.mxu0 0
        %2583 = vmatprep.subr.bf16.mxu0 0
        %2584 = vmatpush1.bf16.msra.mxu0 0
        %2585 = vmatprep.subr.bf16.mxu0 0
        %2586 = vmatpush1.bf16.msra.mxu0 0
        %2587 = vmatprep.subr.bf16.mxu0 0
        %2588 = vmatpush1.bf16.msra.mxu0 0
        %2589 = vmatprep.mubr.bf16.mxu0 0
        %2590 = vmatmul.mubr.bf16.gmra.mrb[0].mxu0 %v2555
        %v2591 = vpop.f32.mrb[0].mxu0
        %v2592 = vadd.f32 %v2541, %v2591
        %v2593 = vpop.f32.mrb[0].mxu0
        %v2594 = vpop.f32.mrb[0].mxu0
        %v2595 = vpop.f32.mrb[0].mxu0
        %2596 = vdwg.mxu0
        %vm2597 = vcmask 32768
        %2598 = vst.msk [vmem:[%s778] sm:$0x1] %vm2597, %v2592
        %s2599 = sand.u32 %s501, 1
        %s2600 = scalar_lea.sflag [#allocation4], %s2599
        %s2601 = sand.u32 %s501, 1
        %s2602 = scalar_lea.vmem [#allocation16], %s2601
        // Predicated region
        $region137: #{tpu_custom_call.1} parent=103 // pred_check
          %p2603 = pneg %p511
        $region138: #{tpu_custom_call.1} parent=103 // pred_check_branch
          %2605 = sbr.rel (%p2603) target = $region140
        $region139: #{tpu_custom_call.1} parent=103 // pred_region
          %s2607 = ssub.s32 16, 16
          %2608 = vsyncadd %s2600, %s2607
          %s2609 = smul.addr %s42, 16
          %s2610 = scalar_lea.hbm %s21, %s2609
          %s2612 = sshll.u32 %s2602, 4
          %s2613 = int_to_ptr.vmem [resolvable:$true] %s2612
          %2615 = dma.vmem_to_hbm [thread:$0]  %s2613, 16, %s2610, %s2600
        $region140: #{tpu_custom_call.1} parent=103 // pred_fallthru
          _
      $region104: #{tpu_custom_call.1} parent=5 // pred_fallthru
        _
      %p2616 = scmp.le.s32.totalorder 2, %s37
      // Predicated region
      $region141: #{tpu_custom_call.1} parent=5 // pred_check
        %p2617 = pneg %p2616
      $region142: #{tpu_custom_call.1} parent=5 // pred_check_branch
        %2619 = sbr.rel (%p2617) target = $region144
      $region143: #{tpu_custom_call.1} parent=5 // pred_region
        %s2620 = ssub.s32 %s37, 2
        // Predicated region
        $region145: #{tpu_custom_call.1} parent=143 // pred_check
          %p2621 = pneg %p517
        $region146: #{tpu_custom_call.1} parent=143 // pred_check_branch
          %2623 = sbr.rel (%p2621) target = $region148
        $region147: #{tpu_custom_call.1} parent=143 // pred_region
          %s2624 = sand.u32 %s502, 1
          %s2625 = scalar_lea.sflag [#allocation4], %s2624
          %s2626 = sand.u32 %s502, 1
          %s2627 = scalar_lea.vmem [#allocation16], %s2626
          %2628 = dma.done %s2625, 16
        $region148: #{tpu_custom_call.1} parent=143 // pred_fallthru
          _
      $region144: #{tpu_custom_call.1} parent=5 // pred_fallthru
        _
    $region6: #{tpu_custom_call.1} parent=1 // loop_footer
      %s41 = sadd.s32 1, %s37
    $region7: #{tpu_custom_call.1} parent=1 // loop_footer_branch
      %36 = sbr.rel target = $region3
    $region8: #{tpu_custom_call.1} parent=1 // loop_exit
      _
    %2629 = vsyncpa [#allocation3], 1
    %s2630 = scalar_lea.sflag [#allocation3], 1
    %2631 = vsyncpa %s2630, 1
    %2632 = vsyncpa [#allocation6], 1
    %s2633 = scalar_lea.sflag [#allocation6], 1
    %2634 = vsyncpa %s2633, 1
    %2635 = vsyncpa [#allocation9], 1
    %2636 = vsyncpa [#allocation12], 1
    %2637 = vsyncpa [#allocation15], 1
    %2638 = vsyncpa [#allocation4], 1
    %s2639 = scalar_lea.sflag [#allocation4], 1
    %2640 = vsyncpa %s2639, 1

</llo_original>
